<compile_context>
chip_gen: v7x
topology: tpu7x:2x2x1
jax: 0.10.0
libtpu: 0.0.40
codegen_flags: <defaults>
</compile_context>

<pallas_src>
import functools

import jax
import jax.numpy as jnp
from jax.experimental import pallas as pl
from jax.experimental.pallas import tpu as pltpu


# ---------------------------------------------------------------------------
# kernel
# ---------------------------------------------------------------------------
def _window_attention_kernel(x_ref, wqkv_ref, bqkv_ref, wproj_ref, bproj_ref,
                             rpb_ref, *rest, num_heads, tokens, win_per_img,
                             mask_mode):
    if mask_mode == "none":
        (o_ref,) = rest
        mask_ref = None
    else:
        mask_ref, o_ref = rest

    TBN, C = x_ref.shape
    N = tokens
    TB = TBN // N
    H = num_heads
    hd = C // H

    # ---- fused qkv projection (bf16 MXU, f32 accumulate) -------------------
    # q-scale is already folded into wqkv / bqkv in the wrapper.
    x = x_ref[...].astype(jnp.bfloat16)
    qkv = jnp.dot(x, wqkv_ref[...], preferred_element_type=jnp.float32)
    qkv = qkv + bqkv_ref[...]                                  # (TBN, 3C) f32

    # ---- split heads into one head-major batch (H*TB, N, hd) ---------------
    def split_heads(base):
        parts = [qkv[:, base + h * hd: base + (h + 1) * hd].reshape(TB, N, hd)
                 for h in range(H)]
        return jnp.concatenate(parts, axis=0)                  # (H*TB, N, hd)

    q = split_heads(0).astype(jnp.bfloat16)
    k = split_heads(C).astype(jnp.bfloat16)
    v = split_heads(2 * C).astype(jnp.bfloat16)

    # ---- one batched score matmul over all (head, window) pairs ------------
    s = jnp.einsum("bnd,bmd->bnm", q, k,
                   preferred_element_type=jnp.float32)         # (H*TB, N, N)

    # ---- add relative-position bias (+ attention mask) in-kernel, f32 ------
    s = s.reshape(H, TB, N, N) + rpb_ref[...][:, None, :, :]
    if mask_mode == "full":                      # TB is a multiple of nW
        nW = win_per_img
        s = s.reshape(H, TB // nW, nW, N, N) + mask_ref[...][None, None]
    elif mask_mode == "block":                   # TB divides nW (block of mask)
        s = s + mask_ref[...][None, :, :, :]
    s = s.reshape(H * TB, N, N)

    # ---- softmax (f32); normalize after p@v via EUP reciprocal -------------
    m = jnp.max(s, axis=-1, keepdims=True)
    p = jnp.exp(s - m)
    l = jnp.sum(p, axis=-1, keepdims=True)
    ctx = jnp.einsum("bnm,bmd->bnd", p.astype(jnp.bfloat16), v,
                     preferred_element_type=jnp.float32)       # (H*TB, N, hd)
    ctx = ctx * pl.reciprocal(l, approx=True)

    # ---- merge heads back to (TBN, C) (head-major channels) and project ----
    ctx2d = jnp.concatenate(
        [ctx[h * TB:(h + 1) * TB].reshape(TBN, hd) for h in range(H)], axis=-1)
    out = jnp.dot(ctx2d.astype(jnp.bfloat16), wproj_ref[...],
                  preferred_element_type=jnp.float32)
    out = out + bproj_ref[...]
    o_ref[...] = out.astype(o_ref.dtype)


# ---------------------------------------------------------------------------
# tile selection
# ---------------------------------------------------------------------------
def _vmem_capacity_bytes():
    try:
        info = pltpu.get_tpu_info()
        return int(getattr(info, "vmem_capacity_bytes", 64 * 1024 * 1024))
    except Exception:
        return 64 * 1024 * 1024          # conservative (v7x-sized) fallback


def _multi_core():
    """Best-effort: does dimension_semantics=('parallel',) shard the grid
    across >1 TensorCore on this chip?"""
    try:
        d = jax.devices()[0]
        kind = str(getattr(d, "device_kind", "")).lower()
        return getattr(d, "num_cores", 1) > 1 or "v7" in kind
    except Exception:
        return False


def _pick_tile(B_, N, C, H, nW, x_bytes, out_bytes, has_mask):
    """Largest window tile TB that divides B_, is compatible with the mask
    window count, keeps (TB*N, C) blocks 8-sublane aligned, and fits a
    per-generation VMEM budget (weights resident + double-buffered I/O)."""
    vmem_cap = _vmem_capacity_bytes()

    # resident across grid steps: bf16 weights, f32 biases, rpb (+ mask)
    resident = 2 * C * 3 * C + 2 * C * C + 4 * (4 * C) + 4 * H * N * N
    if has_mask:
        resident += 4 * nW * N * N

    # per-window live bytes inside one step (x/out double-buffered blocks,
    # f32 qkv slab, bf16 q/k/v stacks, ctx, f32 scores/probs + bf16 probs).
    per_window = N * C * (2 * x_bytes + 2 * out_bytes + 28) + 12 * H * N * N

    usable = max(int(vmem_cap * 0.6) - resident, per_window)

    def ok_mask(tb):
        return (not has_mask) or (tb % nW == 0) or (nW % tb == 0)

    def ok_align(tb):
        return ((tb * N) % 8 == 0) or (tb == B_)

    divs = [d for d in range(1, B_ + 1) if B_ % d == 0]
    cands = [d for d in divs
             if ok_mask(d) and ok_align(d) and d * per_window <= usable]
    if not cands:
        cands = [d for d in divs if ok_mask(d) and ok_align(d)]
    if not cands:
        cands = [d for d in divs if ok_mask(d)]
    if not cands:
        cands = [B_]

    best = max(cands)                      # single TC: biggest tile that fits
    if _multi_core():                      # multi-TC chips: keep >= 2 steps
        two = [d for d in cands if B_ // d >= 2]
        if two:
            best = max(two)
    return best, vmem_cap


# ---------------------------------------------------------------------------
# wrapper
# ---------------------------------------------------------------------------
def window_attention(x, qkv_weight, qkv_bias, proj_weight, proj_bias,
                     rel_pos_bias_table, rel_pos_index, *, num_heads,
                     window_size, qk_scale=None, mask=None):
    """x: (B_, N, C); qkv_weight: (3C, C); qkv_bias: (3C,);
    proj_weight: (C, C); proj_bias: (C,);
    rel_pos_bias_table: ((2Wh-1)*(2Ww-1), H); rel_pos_index: (N, N) int;
    mask: optional (nW, N, N).  Returns (B_, N, C)."""
    B_, N, C = x.shape
    Wh, Ww = window_size
    assert N == Wh * Ww, "window tokens do not match window_size"
    H = num_heads
    hd = C // H
    assert H * hd == C
    scale = qk_scale if qk_scale is not None else float(hd) ** -0.5

    # fold q scale into the qkv projection (torch: out = x @ W.T + b); cast
    # the resident weights to bf16 ONCE here (no per-step casts in-kernel).
    wq = qkv_weight[:C].T * scale
    wk = qkv_weight[C:2 * C].T
    wv = qkv_weight[2 * C:].T
    wqkv = jnp.concatenate([wq, wk, wv], axis=1).astype(jnp.bfloat16)  # (C,3C)
    bqkv = jnp.concatenate([qkv_bias[:C] * scale, qkv_bias[C:]],
                           axis=0).reshape(1, 3 * C).astype(jnp.float32)
    wproj = proj_weight.T.astype(jnp.bfloat16)                          # (C,C)
    bproj = proj_bias.reshape(1, C).astype(jnp.float32)

    # relative position bias gather (tiny, done once, plain JAX) -> (H, N, N)
    rpb = rel_pos_bias_table[rel_pos_index.reshape(-1)]
    rpb = rpb.reshape(N, N, H).transpose(2, 0, 1).astype(jnp.float32)

    has_mask = mask is not None
    if has_mask:
        nW = int(mask.shape[0])
        assert B_ % nW == 0, "windows must be image-major (B_ = B * nW)"
        mask_f32 = mask.astype(jnp.float32)
    else:
        nW = 1

    x_bytes = jnp.dtype(x.dtype).itemsize
    TB, vmem_cap = _pick_tile(B_, N, C, H, nW, x_bytes, x_bytes, has_mask)
    grid = (B_ // TB,)

    if not has_mask:
        mask_mode = "none"
    elif TB % nW == 0:
        mask_mode = "full"
    else:
        mask_mode = "block"

    # lane-dense 2-D views of x / out (wrapper reshape is free layout plumbing)
    x2d = x.reshape(B_ * N, C)

    in_specs = [
        pl.BlockSpec((TB * N, C), lambda i: (i, 0)),      # x tile
        pl.BlockSpec((C, 3 * C), lambda i: (0, 0)),       # qkv weight (resident)
        pl.BlockSpec((1, 3 * C), lambda i: (0, 0)),       # qkv bias
        pl.BlockSpec((C, C), lambda i: (0, 0)),           # proj weight
        pl.BlockSpec((1, C), lambda i: (0, 0)),           # proj bias
        pl.BlockSpec((H, N, N), lambda i: (0, 0, 0)),     # rel-pos bias
    ]
    inputs = [x2d, wqkv, bqkv, wproj, bproj, rpb]
    if mask_mode == "full":
        in_specs.append(pl.BlockSpec((nW, N, N), lambda i: (0, 0, 0)))
        inputs.append(mask_f32)
    elif mask_mode == "block":
        nblk = nW // TB
        in_specs.append(pl.BlockSpec((TB, N, N), lambda i: (i % nblk, 0, 0)))
        inputs.append(mask_f32)

    kernel = functools.partial(_window_attention_kernel, num_heads=H,
                               tokens=N, win_per_img=nW, mask_mode=mask_mode)

    out2d = pl.pallas_call(
        kernel,
        out_shape=jax.ShapeDtypeStruct((B_ * N, C), x.dtype),
        grid_spec=pltpu.PrefetchScalarGridSpec(
            num_scalar_prefetch=0,
            grid=grid,
            in_specs=in_specs,
            out_specs=pl.BlockSpec((TB * N, C), lambda i: (i, 0)),
        ),
        compiler_params=pltpu.CompilerParams(
            dimension_semantics=("parallel",),
            vmem_limit_bytes=int(vmem_cap * 0.85)),
    )(*inputs)
    return out2d.reshape(B_, N, C)


# ---------------------------------------------------------------------------
# reference & test
# ---------------------------------------------------------------------------
def _make_relative_position_index(Wh, Ww):
    coords_h = jnp.arange(Wh)
    coords_w = jnp.arange(Ww)
    coords = jnp.stack(jnp.meshgrid(coords_h, coords_w, indexing="ij"))
    coords_flatten = coords.reshape(2, -1)
    rel = coords_flatten[:, :, None] - coords_flatten[:, None, :]
    rel = rel.transpose(1, 2, 0)
    rel0 = (rel[..., 0] + Wh - 1) * (2 * Ww - 1)
    rel1 = rel[..., 1] + Ww - 1
    return rel0 + rel1


def _reference(x, qkv_w, qkv_b, proj_w, proj_b, table, rel_index, num_heads,
               scale, mask=None):
    B_, N, C = x.shape
    H = num_heads
    hd = C // H
    qkv = x @ qkv_w.T + qkv_b
    qkv = qkv.reshape(B_, N, 3, H, hd).transpose(2, 0, 3, 1, 4)
    q, k, v = qkv[0], qkv[1], qkv[2]
    q = q * scale
    attn = jnp.einsum("bhnd,bhmd->bhnm", q, k)
    rpb = table[rel_index.reshape(-1)].reshape(N, N, H).transpose(2, 0, 1)
    attn = attn + rpb[None]
    if mask is not None:
        nW = mask.shape[0]
        attn = attn.reshape(B_ // nW, nW, H, N, N) + mask[None, :, None]
        attn = attn.reshape(B_, H, N, N)
    attn = jax.nn.softmax(attn, axis=-1)
    out = jnp.einsum("bhnm,bhmd->bhnd", attn, v)
    out = out.transpose(0, 2, 1, 3).reshape(B_, N, C)
    return out @ proj_w.T + proj_b


if __name__ == "__main__":
    # Small shapes consistent with the module: dim=32, window 4x4, 4 heads,
    # batch = 2 images * 4 windows = 8 windows.
    B = 2
    Wh, Ww = 4, 4
    nW = 4
    C = 32
    H_heads = 4
    N = Wh * Ww
    B_ = B * nW
    hd = C // H_heads
    scale = float(hd) ** -0.5

    key = jax.random.PRNGKey(0)
    kx, kt, kqw, kqb, kpw, kpb = jax.random.split(key, 6)

    x = jax.random.normal(kx, (B_, N, C), dtype=jnp.float32)
    table = 0.02 * jax.random.normal(
        kt, ((2 * Wh - 1) * (2 * Ww - 1), H_heads), dtype=jnp.float32)
    bound = float(C) ** -0.5
    qkv_w = jax.random.uniform(kqw, (3 * C, C), jnp.float32, -bound, bound)
    qkv_b = jax.random.uniform(kqb, (3 * C,), jnp.float32, -bound, bound)
    proj_w = jax.random.uniform(kpw, (C, C), jnp.float32, -bound, bound)
    proj_b = jax.random.uniform(kpb, (C,), jnp.float32, -bound, bound)

    rel_index = _make_relative_position_index(Wh, Ww)

    # deterministic Swin-style shifted-window mask (0 / -100 per window)
    splits = jnp.array([4, 6, 8, 10])
    tok = jnp.arange(N)
    grp = (tok[None, :] >= splits[:, None]).astype(jnp.int32)       # (nW, N)
    same = grp[:, :, None] == grp[:, None, :]
    attn_mask = jnp.where(same, 0.0, -100.0).astype(jnp.float32)    # (nW, N, N)

    # --- no-mask path ------------------------------------------------------
    out = window_attention(x, qkv_w, qkv_b, proj_w, proj_b, table, rel_index,
                           num_heads=H_heads, window_size=(Wh, Ww), mask=None)
    out = jax.block_until_ready(out)
    ref = _reference(x, qkv_w, qkv_b, proj_w, proj_b, table, rel_index,
                     H_heads, scale, mask=None)
    assert out.shape == (B_, N, C)
    assert jnp.allclose(out, ref, atol=5e-2, rtol=5e-2), \
        "mismatch vs reference (no mask)"

    # --- masked (shifted-window) path --------------------------------------
    out_m = window_attention(x, qkv_w, qkv_b, proj_w, proj_b, table, rel_index,
                             num_heads=H_heads, window_size=(Wh, Ww),
                             mask=attn_mask)
    out_m = jax.block_until_ready(out_m)
    ref_m = _reference(x, qkv_w, qkv_b, proj_w, proj_b, table, rel_index,
                       H_heads, scale, mask=attn_mask)
    assert out_m.shape == (B_, N, C)
    assert jnp.allclose(out_m, ref_m, atol=5e-2, rtol=5e-2), \
        "mismatch vs reference (masked)"

    print("KERNEL_OK")
</pallas_src>

<mosaic_0001>
module attributes {stable_mosaic.version = 11 : i64} {
  func.func @_window_attention_kernel(%arg0: i32, %arg1: memref<128x32xf32, #tpu.memory_space<vmem>>, %arg2: memref<32x96xbf16, #tpu.memory_space<vmem>>, %arg3: memref<1x96xf32, #tpu.memory_space<vmem>>, %arg4: memref<32x32xbf16, #tpu.memory_space<vmem>>, %arg5: memref<1x32xf32, #tpu.memory_space<vmem>>, %arg6: memref<4x16x16xf32, #tpu.memory_space<vmem>>, %arg7: memref<128x32xf32, #tpu.memory_space<vmem>>) attributes {dimension_semantics = [#tpu.dimension_semantics<parallel>], iteration_bounds = array<i64: 1>, scalar_prefetch = 0 : i64, scratch_operands = 0 : i64, tpu.core_type = #tpu.core_type<tc>, window_params = [{transform_indices = @transform_0, window_bounds = array<i64: 128, 32>}, {pipeline_mode = #tpu.pipeline_mode<synchronous>, transform_indices = @transform_1, window_bounds = array<i64: 32, 96>}, {pipeline_mode = #tpu.pipeline_mode<synchronous>, transform_indices = @transform_2, window_bounds = array<i64: 1, 96>}, {pipeline_mode = #tpu.pipeline_mode<synchronous>, transform_indices = @transform_3, window_bounds = array<i64: 32, 32>}, {pipeline_mode = #tpu.pipeline_mode<synchronous>, transform_indices = @transform_4, window_bounds = array<i64: 1, 32>}, {pipeline_mode = #tpu.pipeline_mode<synchronous>, transform_indices = @transform_5, window_bounds = array<i64: 4, 16, 16>}, {transform_indices = @transform_6, window_bounds = array<i64: 128, 32>}]} {
    %c0 = arith.constant 0 : index
    %c0_0 = arith.constant 0 : index
    %0 = vector.load %arg1[%c0, %c0_0] : memref<128x32xf32, #tpu.memory_space<vmem>>, vector<128x32xf32>
    %1 = arith.truncf %0 : vector<128x32xf32> to vector<128x32xbf16>
    %c0_1 = arith.constant 0 : index
    %c0_2 = arith.constant 0 : index
    %2 = vector.load %arg2[%c0_1, %c0_2] : memref<32x96xbf16, #tpu.memory_space<vmem>>, vector<32x96xbf16>
    %cst = arith.constant dense<0.000000e+00> : vector<128x96xf32>
    %3 = tpu.matmul %1, %2, %cst {dimension_numbers = #tpu.dot_dimension_numbers<[1], [0], [0], [1], [0, 0, 1, 1], [], []>} : vector<128x32xbf16>, vector<32x96xbf16>, vector<128x96xf32> -> vector<128x96xf32>
    %c0_3 = arith.constant 0 : index
    %c0_4 = arith.constant 0 : index
    %4 = vector.load %arg3[%c0_3, %c0_4] : memref<1x96xf32, #tpu.memory_space<vmem>>, vector<1x96xf32>
    %5 = vector.broadcast %4 : vector<1x96xf32> to vector<128x96xf32>
    %6 = arith.addf %3, %5 : vector<128x96xf32>
    %7 = vector.extract_strided_slice %6 {offsets = [0, 0], sizes = [128, 8], strides = [1, 1]} : vector<128x96xf32> to vector<128x8xf32>
    %8 = vector.shape_cast %7 : vector<128x8xf32> to vector<8x16x8xf32>
    %9 = vector.extract_strided_slice %6 {offsets = [0, 8], sizes = [128, 8], strides = [1, 1]} : vector<128x96xf32> to vector<128x8xf32>
    %10 = vector.shape_cast %9 : vector<128x8xf32> to vector<8x16x8xf32>
    %11 = vector.extract_strided_slice %6 {offsets = [0, 16], sizes = [128, 8], strides = [1, 1]} : vector<128x96xf32> to vector<128x8xf32>
    %12 = vector.shape_cast %11 : vector<128x8xf32> to vector<8x16x8xf32>
    %13 = vector.extract_strided_slice %6 {offsets = [0, 24], sizes = [128, 8], strides = [1, 1]} : vector<128x96xf32> to vector<128x8xf32>
    %14 = vector.shape_cast %13 : vector<128x8xf32> to vector<8x16x8xf32>
    %15 = tpu.concatenate %8, %10, %12, %14 in 0 : vector<8x16x8xf32>, vector<8x16x8xf32>, vector<8x16x8xf32>, vector<8x16x8xf32> -> vector<32x16x8xf32>
    %16 = arith.truncf %15 : vector<32x16x8xf32> to vector<32x16x8xbf16>
    %17 = vector.extract_strided_slice %6 {offsets = [0, 32], sizes = [128, 8], strides = [1, 1]} : vector<128x96xf32> to vector<128x8xf32>
    %18 = vector.shape_cast %17 : vector<128x8xf32> to vector<8x16x8xf32>
    %19 = vector.extract_strided_slice %6 {offsets = [0, 40], sizes = [128, 8], strides = [1, 1]} : vector<128x96xf32> to vector<128x8xf32>
    %20 = vector.shape_cast %19 : vector<128x8xf32> to vector<8x16x8xf32>
    %21 = vector.extract_strided_slice %6 {offsets = [0, 48], sizes = [128, 8], strides = [1, 1]} : vector<128x96xf32> to vector<128x8xf32>
    %22 = vector.shape_cast %21 : vector<128x8xf32> to vector<8x16x8xf32>
    %23 = vector.extract_strided_slice %6 {offsets = [0, 56], sizes = [128, 8], strides = [1, 1]} : vector<128x96xf32> to vector<128x8xf32>
    %24 = vector.shape_cast %23 : vector<128x8xf32> to vector<8x16x8xf32>
    %25 = tpu.concatenate %18, %20, %22, %24 in 0 : vector<8x16x8xf32>, vector<8x16x8xf32>, vector<8x16x8xf32>, vector<8x16x8xf32> -> vector<32x16x8xf32>
    %26 = arith.truncf %25 : vector<32x16x8xf32> to vector<32x16x8xbf16>
    %27 = vector.extract_strided_slice %6 {offsets = [0, 64], sizes = [128, 8], strides = [1, 1]} : vector<128x96xf32> to vector<128x8xf32>
    %28 = vector.shape_cast %27 : vector<128x8xf32> to vector<8x16x8xf32>
    %29 = vector.extract_strided_slice %6 {offsets = [0, 72], sizes = [128, 8], strides = [1, 1]} : vector<128x96xf32> to vector<128x8xf32>
    %30 = vector.shape_cast %29 : vector<128x8xf32> to vector<8x16x8xf32>
    %31 = vector.extract_strided_slice %6 {offsets = [0, 80], sizes = [128, 8], strides = [1, 1]} : vector<128x96xf32> to vector<128x8xf32>
    %32 = vector.shape_cast %31 : vector<128x8xf32> to vector<8x16x8xf32>
    %33 = vector.extract_strided_slice %6 {offsets = [0, 88], sizes = [128, 8], strides = [1, 1]} : vector<128x96xf32> to vector<128x8xf32>
    %34 = vector.shape_cast %33 : vector<128x8xf32> to vector<8x16x8xf32>
    %35 = tpu.concatenate %28, %30, %32, %34 in 0 : vector<8x16x8xf32>, vector<8x16x8xf32>, vector<8x16x8xf32>, vector<8x16x8xf32> -> vector<32x16x8xf32>
    %36 = arith.truncf %35 : vector<32x16x8xf32> to vector<32x16x8xbf16>
    "tpu.trace_start"() <{level = 10 : i32, message = "bnd,bmd->bnm"}> : () -> ()
    %cst_5 = arith.constant dense<0.000000e+00> : vector<32x16x16xf32>
    %37 = tpu.matmul %16, %26, %cst_5 {dimension_numbers = #tpu.dot_dimension_numbers<[2], [2], [1], [1], [0, 0, 0, 1, 1, 1], [0], [0]>} : vector<32x16x8xbf16>, vector<32x16x8xbf16>, vector<32x16x16xf32> -> vector<32x16x16xf32>
    "tpu.trace_stop"() : () -> ()
    %38 = vector.shape_cast %37 : vector<32x16x16xf32> to vector<4x8x16x16xf32>
    %c0_6 = arith.constant 0 : index
    %c0_7 = arith.constant 0 : index
    %c0_8 = arith.constant 0 : index
    %39 = vector.load %arg6[%c0_6, %c0_7, %c0_8] : memref<4x16x16xf32, #tpu.memory_space<vmem>>, vector<4x16x16xf32>
    %40 = vector.shape_cast %39 : vector<4x16x16xf32> to vector<4x1x16x16xf32>
    %41 = vector.broadcast %40 : vector<4x1x16x16xf32> to vector<4x8x16x16xf32>
    %42 = arith.addf %38, %41 : vector<4x8x16x16xf32>
    %43 = vector.shape_cast %42 : vector<4x8x16x16xf32> to vector<32x16x16xf32>
    %cst_9 = arith.constant dense<0xFF800000> : vector<32x16xf32>
    %44 = vector.multi_reduction <maximumf>, %43, %cst_9 [2] : vector<32x16x16xf32> to vector<32x16xf32>
    %45 = vector.shape_cast %44 : vector<32x16xf32> to vector<32x16x1xf32>
    %46 = vector.broadcast %45 : vector<32x16x1xf32> to vector<32x16x16xf32>
    %47 = arith.subf %43, %46 : vector<32x16x16xf32>
    %48 = math.exp %47 : vector<32x16x16xf32>
    %cst_10 = arith.constant dense<0.000000e+00> : vector<32x16xf32>
    %49 = vector.multi_reduction <add>, %48, %cst_10 [2] : vector<32x16x16xf32> to vector<32x16xf32>
    %50 = vector.shape_cast %49 : vector<32x16xf32> to vector<32x16x1xf32>
    %51 = arith.truncf %48 : vector<32x16x16xf32> to vector<32x16x16xbf16>
    "tpu.trace_start"() <{level = 10 : i32, message = "bnm,bmd->bnd"}> : () -> ()
    %cst_11 = arith.constant dense<0.000000e+00> : vector<32x16x8xf32>
    %52 = tpu.matmul %51, %36, %cst_11 {dimension_numbers = #tpu.dot_dimension_numbers<[2], [1], [1], [2], [0, 0, 0, 1, 1, 2], [0], [0]>} : vector<32x16x16xbf16>, vector<32x16x8xbf16>, vector<32x16x8xf32> -> vector<32x16x8xf32>
    "tpu.trace_stop"() : () -> ()
    %53 = tpu.reciprocal %50 {approx = true} : vector<32x16x1xf32> -> vector<32x16x1xf32>
    %54 = vector.broadcast %53 : vector<32x16x1xf32> to vector<32x16x8xf32>
    %55 = arith.mulf %52, %54 : vector<32x16x8xf32>
    %56 = vector.extract_strided_slice %55 {offsets = [0, 0, 0], sizes = [8, 16, 8], strides = [1, 1, 1]} : vector<32x16x8xf32> to vector<8x16x8xf32>
    %57 = vector.shape_cast %56 : vector<8x16x8xf32> to vector<128x8xf32>
    %58 = vector.extract_strided_slice %55 {offsets = [8, 0, 0], sizes = [8, 16, 8], strides = [1, 1, 1]} : vector<32x16x8xf32> to vector<8x16x8xf32>
    %59 = vector.shape_cast %58 : vector<8x16x8xf32> to vector<128x8xf32>
    %60 = vector.extract_strided_slice %55 {offsets = [16, 0, 0], sizes = [8, 16, 8], strides = [1, 1, 1]} : vector<32x16x8xf32> to vector<8x16x8xf32>
    %61 = vector.shape_cast %60 : vector<8x16x8xf32> to vector<128x8xf32>
    %62 = vector.extract_strided_slice %55 {offsets = [24, 0, 0], sizes = [8, 16, 8], strides = [1, 1, 1]} : vector<32x16x8xf32> to vector<8x16x8xf32>
    %63 = vector.shape_cast %62 : vector<8x16x8xf32> to vector<128x8xf32>
    %64 = tpu.concatenate %57, %59, %61, %63 in 1 : vector<128x8xf32>, vector<128x8xf32>, vector<128x8xf32>, vector<128x8xf32> -> vector<128x32xf32>
    %65 = arith.truncf %64 : vector<128x32xf32> to vector<128x32xbf16>
    %c0_12 = arith.constant 0 : index
    %c0_13 = arith.constant 0 : index
    %66 = vector.load %arg4[%c0_12, %c0_13] : memref<32x32xbf16, #tpu.memory_space<vmem>>, vector<32x32xbf16>
    %cst_14 = arith.constant dense<0.000000e+00> : vector<128x32xf32>
    %67 = tpu.matmul %65, %66, %cst_14 {dimension_numbers = #tpu.dot_dimension_numbers<[1], [0], [0], [1], [0, 0, 1, 1], [], []>} : vector<128x32xbf16>, vector<32x32xbf16>, vector<128x32xf32> -> vector<128x32xf32>
    %c0_15 = arith.constant 0 : index
    %c0_16 = arith.constant 0 : index
    %68 = vector.load %arg5[%c0_15, %c0_16] : memref<1x32xf32, #tpu.memory_space<vmem>>, vector<1x32xf32>
    %69 = vector.broadcast %68 : vector<1x32xf32> to vector<128x32xf32>
    %70 = arith.addf %67, %69 : vector<128x32xf32>
    %c0_17 = arith.constant 0 : index
    %c0_18 = arith.constant 0 : index
    %71 = vector.load %arg7[%c0_17, %c0_18] : memref<128x32xf32, #tpu.memory_space<vmem>>, vector<128x32xf32>
    tpu.vector_store %arg7[%c0_17, %c0_18], %70 {strides = array<i32>} : memref<128x32xf32, #tpu.memory_space<vmem>>, vector<128x32xf32>,
    return
  }
  func.func @transform_0(%arg0: i32) -> (i32, i32) {
    %c0_i32 = arith.constant 0 : i32
    %c0_i32_0 = arith.constant 0 : i32
    return %arg0, %c0_i32 : i32, i32
  }
  func.func @transform_1(%arg0: i32) -> (i32, i32) {
    %c0_i32 = arith.constant 0 : i32
    %c0_i32_0 = arith.constant 0 : i32
    %c0_i32_1 = arith.constant 0 : i32
    return %c0_i32, %c0_i32_0 : i32, i32
  }
  func.func @transform_2(%arg0: i32) -> (i32, i32) {
    %c0_i32 = arith.constant 0 : i32
    %c0_i32_0 = arith.constant 0 : i32
    %c0_i32_1 = arith.constant 0 : i32
    return %c0_i32, %c0_i32_0 : i32, i32
  }
  func.func @transform_3(%arg0: i32) -> (i32, i32) {
    %c0_i32 = arith.constant 0 : i32
    %c0_i32_0 = arith.constant 0 : i32
    %c0_i32_1 = arith.constant 0 : i32
    return %c0_i32, %c0_i32_0 : i32, i32
  }
  func.func @transform_4(%arg0: i32) -> (i32, i32) {
    %c0_i32 = arith.constant 0 : i32
    %c0_i32_0 = arith.constant 0 : i32
    %c0_i32_1 = arith.constant 0 : i32
    return %c0_i32, %c0_i32_0 : i32, i32
  }
  func.func @transform_5(%arg0: i32) -> (i32, i32, i32) {
    %c0_i32 = arith.constant 0 : i32
    %c0_i32_0 = arith.constant 0 : i32
    %c0_i32_1 = arith.constant 0 : i32
    %c0_i32_2 = arith.constant 0 : i32
    return %c0_i32, %c0_i32_0, %c0_i32_1 : i32, i32, i32
  }
  func.func @transform_6(%arg0: i32) -> (i32, i32) {
    %c0_i32 = arith.constant 0 : i32
    %c0_i32_0 = arith.constant 0 : i32
    return %arg0, %c0_i32 : i32, i32
  }
}

</mosaic_0001>

<llo_original>
// kernel: tpu_custom_call.1
$region0: #{tpu_custom_call.1}
  #allocation0 [shape = 'u32[]', space=smem, size = 0x4, offset = 0x4, fixed_abs, tag = 'smem constant byte address 0x4 - core index']
  #allocation1 [shape = 'u32[144,128]{1,0:T(1,128)}', space=vmem, size = 0x12000, scoped, tag = 'internal scratch']
  %s0 = inlined_call_operand.vmem [shape: f32[128,32], index: 0, kind: input, shape index: {}]
  %s1 = inlined_call_operand.vmem [shape: bf16[32,96], index: 1, kind: input, shape index: {}]
  %s2 = inlined_call_operand.vmem [shape: f32[1,96], index: 2, kind: input, shape index: {}]
  %s3 = inlined_call_operand.vmem [shape: bf16[32,32], index: 3, kind: input, shape index: {}]
  %s4 = inlined_call_operand.vmem [shape: f32[1,32], index: 4, kind: input, shape index: {}]
  %s5 = inlined_call_operand.vmem [shape: f32[4,16,16], index: 5, kind: input, shape index: {}]
  %s6 = inlined_call_operand.vmem [shape: f32[128,32], index: 6, kind: output, shape index: {}]
  %s7 = sld [smem:[#allocation0]]
  $region34: #{tpu_custom_call.1} parent=0
    _
  %s9 = ssub.s32 1, %s7
  %s10 = scalar_select 0, %s9, %s7
  // Predicated region
  $region2: #{tpu_custom_call.1} parent=0 // pred_check
    _
  $region3: #{tpu_custom_call.1} parent=0 // pred_check_branch
    %12 = sbr.rel (0) target = $region5
  $region4: #{tpu_custom_call.1} parent=0 // pred_region
    _
  $region5: #{tpu_custom_call.1} parent=0 // pred_fallthru
    _
  // Predicated region
  $region6: #{tpu_custom_call.1} parent=0 // pred_check
    _
  $region7: #{tpu_custom_call.1} parent=0 // pred_check_branch
    %14 = sbr.rel (0) target = $region9
  $region8: #{tpu_custom_call.1} parent=0 // pred_region
    _
  $region9: #{tpu_custom_call.1} parent=0 // pred_fallthru
    _
  // Predicated region
  $region10: #{tpu_custom_call.1} parent=0 // pred_check
    _
  $region11: #{tpu_custom_call.1} parent=0 // pred_check_branch
    %16 = sbr.rel (0) target = $region13
  $region12: #{tpu_custom_call.1} parent=0 // pred_region
    _
  $region13: #{tpu_custom_call.1} parent=0 // pred_fallthru
    _
  // Predicated region
  $region14: #{tpu_custom_call.1} parent=0 // pred_check
    _
  $region15: #{tpu_custom_call.1} parent=0 // pred_check_branch
    %18 = sbr.rel (0) target = $region17
  $region16: #{tpu_custom_call.1} parent=0 // pred_region
    _
  $region17: #{tpu_custom_call.1} parent=0 // pred_fallthru
    _
  // Predicated region
  $region18: #{tpu_custom_call.1} parent=0 // pred_check
    _
  $region19: #{tpu_custom_call.1} parent=0 // pred_check_branch
    %20 = sbr.rel (0) target = $region21
  $region20: #{tpu_custom_call.1} parent=0 // pred_region
    _
  $region21: #{tpu_custom_call.1} parent=0 // pred_fallthru
    _
  // Predicated region
  $region22: #{tpu_custom_call.1} parent=0 // pred_check
    _
  $region23: #{tpu_custom_call.1} parent=0 // pred_check_branch
    %22 = sbr.rel (0) target = $region25
  $region24: #{tpu_custom_call.1} parent=0 // pred_region
    _
  $region25: #{tpu_custom_call.1} parent=0 // pred_fallthru
    _
  %v24 = vld [vmem:[%s0] sm:$0xff]
  %v25 = vld [vmem:[%s0 + $0x8] sm:$0xff]
  %v26 = vld [vmem:[%s0 + $0x10] sm:$0xff]
  %v27 = vld [vmem:[%s0 + $0x18] sm:$0xff]
  %v28 = vld [vmem:[%s0 + $0x20] sm:$0xff]
  %v29 = vld [vmem:[%s0 + $0x28] sm:$0xff]
  %v30 = vld [vmem:[%s0 + $0x30] sm:$0xff]
  %v31 = vld [vmem:[%s0 + $0x38] sm:$0xff]
  %v32 = vld [vmem:[%s0 + $0x40] sm:$0xff]
  %v33 = vld [vmem:[%s0 + $0x48] sm:$0xff]
  %v34 = vld [vmem:[%s0 + $0x50] sm:$0xff]
  %v35 = vld [vmem:[%s0 + $0x58] sm:$0xff]
  %v36 = vld [vmem:[%s0 + $0x60] sm:$0xff]
  %v37 = vld [vmem:[%s0 + $0x68] sm:$0xff]
  %v38 = vld [vmem:[%s0 + $0x70] sm:$0xff]
  %v39 = vld [vmem:[%s0 + $0x78] sm:$0xff]
  %v40 = vpack.c.bf16 %v25, %v24
  %v41 = vpack.c.bf16 %v27, %v26
  %v42 = vpack.c.bf16 %v29, %v28
  %v43 = vpack.c.bf16 %v31, %v30
  %v44 = vpack.c.bf16 %v33, %v32
  %v45 = vpack.c.bf16 %v35, %v34
  %v46 = vpack.c.bf16 %v37, %v36
  %v47 = vpack.c.bf16 %v39, %v38
  %v48 = vld [vmem:[%s1] sm:$0xf]
  %v49 = vld [vmem:[%s1 + $0x4] sm:$0xf]
  %v50 = vld [vmem:[%s1 + $0x8] sm:$0xf]
  %v51 = vld [vmem:[%s1 + $0xc] sm:$0xf]
  %v52 = vld [vmem:[%s2] sm:$0x1]
  %v54 = vlaneseq
  %v55 = vshrl.u32 %v54, 7
  %v56 = vsub.s32 0, %v55
  %v57 = vrot.slane %v52, %v56
  %v63 = vunpack.c.l.b16 %v48
  %v64 = vunpack.c.l.b16 %v49
  %v65 = vunpack.c.l.b16 %v50
  %v66 = vunpack.c.l.b16 %v51
  %v67 = vpack.c.b16 %v64, %v63
  %v68 = vpack.c.b16 %v66, %v65
  %vm71 = vcmask 261120
  %v73 = vsel %vm71, %v40, 0
  %v76 = vsel %vm71, %v41, 0
  %v79 = vsel %vm71, %v42, 0
  %v82 = vsel %vm71, %v43, 0
  %v85 = vsel %vm71, %v44, 0
  %v88 = vsel %vm71, %v45, 0
  %v91 = vsel %vm71, %v46, 0
  %v94 = vsel %vm71, %v47, 0
  %96 = vmatprep.subr.bf16.mxu0 0
  %97 = vmatpush1.bf16.msra.mxu0 %v67
  %98 = vmatprep.subr.bf16.mxu0 0
  %99 = vmatpush1.bf16.msra.mxu0 %v68
  %100 = vmatprep.subr.bf16.mxu0 0
  %101 = vmatpush1.bf16.msra.mxu0 0
  %102 = vmatprep.subr.bf16.mxu0 0
  %103 = vmatpush1.bf16.msra.mxu0 0
  %104 = vmatprep.subr.bf16.mxu0 0
  %105 = vmatpush1.bf16.msra.mxu0 0
  %106 = vmatprep.subr.bf16.mxu0 0
  %107 = vmatpush1.bf16.msra.mxu0 0
  %108 = vmatprep.subr.bf16.mxu0 0
  %109 = vmatpush1.bf16.msra.mxu0 0
  %110 = vmatprep.subr.bf16.mxu0 0
  %111 = vmatpush1.bf16.msra.mxu0 0
  %112 = vmatprep.subr.bf16.mxu0 0
  %113 = vmatpush1.bf16.msra.mxu0 0
  %114 = vmatprep.subr.bf16.mxu0 0
  %115 = vmatpush1.bf16.msra.mxu0 0
  %116 = vmatprep.subr.bf16.mxu0 0
  %117 = vmatpush1.bf16.msra.mxu0 0
  %118 = vmatprep.subr.bf16.mxu0 0
  %119 = vmatpush1.bf16.msra.mxu0 0
  %120 = vmatprep.subr.bf16.mxu0 0
  %121 = vmatpush1.bf16.msra.mxu0 0
  %122 = vmatprep.subr.bf16.mxu0 0
  %123 = vmatpush1.bf16.msra.mxu0 0
  %124 = vmatprep.subr.bf16.mxu0 0
  %125 = vmatpush1.bf16.msra.mxu0 0
  %126 = vmatprep.subr.bf16.mxu0 0
  %127 = vmatpush1.bf16.msra.mxu0 0
  %128 = vmatprep.mubr.bf16.mxu0 0
  %129 = vmatmul.mubr.bf16.gmra.mrb[0].mxu0 %v73
  %v130 = vpop.f32.mrb[0].mxu0
  %v131 = vadd.f32 %v57, %v130
  %v132 = vpop.f32.mrb[0].mxu0
  %v133 = vpop.f32.mrb[0].mxu0
  %v134 = vadd.f32 %v57, %v133
  %v135 = vpop.f32.mrb[0].mxu0
  %136 = vmatprep.mubr.bf16.mxu0 0
  %137 = vmatmul.mubr.bf16.gmra.mrb[0].mxu0 %v76
  %v138 = vpop.f32.mrb[0].mxu0
  %v139 = vadd.f32 %v57, %v138
  %v140 = vpop.f32.mrb[0].mxu0
  %v141 = vpop.f32.mrb[0].mxu0
  %v142 = vadd.f32 %v57, %v141
  %v143 = vpop.f32.mrb[0].mxu0
  %144 = vmatprep.mubr.bf16.mxu0 0
  %145 = vmatmul.mubr.bf16.gmra.mrb[0].mxu0 %v79
  %v146 = vpop.f32.mrb[0].mxu0
  %v147 = vadd.f32 %v57, %v146
  %v148 = vpop.f32.mrb[0].mxu0
  %v149 = vpop.f32.mrb[0].mxu0
  %v150 = vadd.f32 %v57, %v149
  %v151 = vpop.f32.mrb[0].mxu0
  %152 = vmatprep.mubr.bf16.mxu0 0
  %153 = vmatmul.mubr.bf16.gmra.mrb[0].mxu0 %v82
  %v154 = vpop.f32.mrb[0].mxu0
  %v155 = vadd.f32 %v57, %v154
  %v156 = vpop.f32.mrb[0].mxu0
  %v157 = vpop.f32.mrb[0].mxu0
  %v158 = vadd.f32 %v57, %v157
  %v159 = vpop.f32.mrb[0].mxu0
  %160 = vmatprep.mubr.bf16.mxu0 0
  %161 = vmatmul.mubr.bf16.gmra.mrb[0].mxu0 %v85
  %v162 = vpop.f32.mrb[0].mxu0
  %v163 = vadd.f32 %v57, %v162
  %v164 = vpop.f32.mrb[0].mxu0
  %v165 = vpop.f32.mrb[0].mxu0
  %v166 = vadd.f32 %v57, %v165
  %v167 = vpop.f32.mrb[0].mxu0
  %168 = vmatprep.mubr.bf16.mxu0 0
  %169 = vmatmul.mubr.bf16.gmra.mrb[0].mxu0 %v88
  %v170 = vpop.f32.mrb[0].mxu0
  %v171 = vadd.f32 %v57, %v170
  %v172 = vpop.f32.mrb[0].mxu0
  %v173 = vpop.f32.mrb[0].mxu0
  %v174 = vadd.f32 %v57, %v173
  %v175 = vpop.f32.mrb[0].mxu0
  %176 = vmatprep.mubr.bf16.mxu0 0
  %177 = vmatmul.mubr.bf16.gmra.mrb[0].mxu0 %v91
  %v178 = vpop.f32.mrb[0].mxu0
  %v179 = vadd.f32 %v57, %v178
  %v180 = vpop.f32.mrb[0].mxu0
  %v181 = vpop.f32.mrb[0].mxu0
  %v182 = vadd.f32 %v57, %v181
  %v183 = vpop.f32.mrb[0].mxu0
  %184 = vmatprep.mubr.bf16.mxu0 0
  %185 = vmatmul.mubr.bf16.gmra.mrb[0].mxu0 %v94
  %v186 = vpop.f32.mrb[0].mxu0
  %v187 = vadd.f32 %v57, %v186
  %v188 = vpop.f32.mrb[0].mxu0
  %v189 = vpop.f32.mrb[0].mxu0
  %v190 = vadd.f32 %v57, %v189
  %v191 = vpop.f32.mrb[0].mxu0
  %192 = vdwg.mxu0
  %209 = vrot.lane.b32.xlu0 %v131, 120
  %v210 = vpop.permute.xlu0 %209
  %211 = vrot.lane.b32.xlu0 %v134, 120
  %v212 = vpop.permute.xlu0 %211
  %213 = vrot.lane.b32.xlu0 %v139, 120
  %v214 = vpop.permute.xlu0 %213
  %215 = vrot.lane.b32.xlu0 %v142, 120
  %v216 = vpop.permute.xlu0 %215
  %217 = vrot.lane.b32.xlu0 %v147, 120
  %v218 = vpop.permute.xlu0 %217
  %219 = vrot.lane.b32.xlu0 %v150, 120
  %v220 = vpop.permute.xlu0 %219
  %221 = vrot.lane.b32.xlu0 %v155, 120
  %v222 = vpop.permute.xlu0 %221
  %223 = vrot.lane.b32.xlu0 %v158, 120
  %v224 = vpop.permute.xlu0 %223
  %225 = vrot.lane.b32.xlu0 %v163, 120
  %v226 = vpop.permute.xlu0 %225
  %227 = vrot.lane.b32.xlu0 %v166, 120
  %v228 = vpop.permute.xlu0 %227
  %229 = vrot.lane.b32.xlu0 %v171, 120
  %v230 = vpop.permute.xlu0 %229
  %231 = vrot.lane.b32.xlu0 %v174, 120
  %v232 = vpop.permute.xlu0 %231
  %233 = vrot.lane.b32.xlu0 %v179, 120
  %v234 = vpop.permute.xlu0 %233
  %235 = vrot.lane.b32.xlu0 %v182, 120
  %v236 = vpop.permute.xlu0 %235
  %237 = vrot.lane.b32.xlu0 %v187, 120
  %v238 = vpop.permute.xlu0 %237
  %239 = vrot.lane.b32.xlu0 %v190, 120
  %v240 = vpop.permute.xlu0 %239
  %257 = vrot.lane.b32.xlu0 %v131, 112
  %v258 = vpop.permute.xlu0 %257
  %259 = vrot.lane.b32.xlu0 %v134, 112
  %v260 = vpop.permute.xlu0 %259
  %261 = vrot.lane.b32.xlu0 %v139, 112
  %v262 = vpop.permute.xlu0 %261
  %263 = vrot.lane.b32.xlu0 %v142, 112
  %v264 = vpop.permute.xlu0 %263
  %265 = vrot.lane.b32.xlu0 %v147, 112
  %v266 = vpop.permute.xlu0 %265
  %267 = vrot.lane.b32.xlu0 %v150, 112
  %v268 = vpop.permute.xlu0 %267
  %269 = vrot.lane.b32.xlu0 %v155, 112
  %v270 = vpop.permute.xlu0 %269
  %271 = vrot.lane.b32.xlu0 %v158, 112
  %v272 = vpop.permute.xlu0 %271
  %273 = vrot.lane.b32.xlu0 %v163, 112
  %v274 = vpop.permute.xlu0 %273
  %275 = vrot.lane.b32.xlu0 %v166, 112
  %v276 = vpop.permute.xlu0 %275
  %277 = vrot.lane.b32.xlu0 %v171, 112
  %v278 = vpop.permute.xlu0 %277
  %279 = vrot.lane.b32.xlu0 %v174, 112
  %v280 = vpop.permute.xlu0 %279
  %281 = vrot.lane.b32.xlu0 %v179, 112
  %v282 = vpop.permute.xlu0 %281
  %283 = vrot.lane.b32.xlu0 %v182, 112
  %v284 = vpop.permute.xlu0 %283
  %285 = vrot.lane.b32.xlu0 %v187, 112
  %v286 = vpop.permute.xlu0 %285
  %287 = vrot.lane.b32.xlu0 %v190, 112
  %v288 = vpop.permute.xlu0 %287
  %305 = vrot.lane.b32.xlu0 %v131, 104
  %v306 = vpop.permute.xlu0 %305
  %307 = vrot.lane.b32.xlu0 %v134, 104
  %v308 = vpop.permute.xlu0 %307
  %309 = vrot.lane.b32.xlu0 %v139, 104
  %v310 = vpop.permute.xlu0 %309
  %311 = vrot.lane.b32.xlu0 %v142, 104
  %v312 = vpop.permute.xlu0 %311
  %313 = vrot.lane.b32.xlu0 %v147, 104
  %v314 = vpop.permute.xlu0 %313
  %315 = vrot.lane.b32.xlu0 %v150, 104
  %v316 = vpop.permute.xlu0 %315
  %317 = vrot.lane.b32.xlu0 %v155, 104
  %v318 = vpop.permute.xlu0 %317
  %319 = vrot.lane.b32.xlu0 %v158, 104
  %v320 = vpop.permute.xlu0 %319
  %321 = vrot.lane.b32.xlu0 %v163, 104
  %v322 = vpop.permute.xlu0 %321
  %323 = vrot.lane.b32.xlu0 %v166, 104
  %v324 = vpop.permute.xlu0 %323
  %325 = vrot.lane.b32.xlu0 %v171, 104
  %v326 = vpop.permute.xlu0 %325
  %327 = vrot.lane.b32.xlu0 %v174, 104
  %v328 = vpop.permute.xlu0 %327
  %329 = vrot.lane.b32.xlu0 %v179, 104
  %v330 = vpop.permute.xlu0 %329
  %331 = vrot.lane.b32.xlu0 %v182, 104
  %v332 = vpop.permute.xlu0 %331
  %333 = vrot.lane.b32.xlu0 %v187, 104
  %v334 = vpop.permute.xlu0 %333
  %335 = vrot.lane.b32.xlu0 %v190, 104
  %v336 = vpop.permute.xlu0 %335
  %v353 = vpack.c.bf16 %v134, %v131
  %v354 = vpack.c.bf16 %v142, %v139
  %v355 = vpack.c.bf16 %v150, %v147
  %v356 = vpack.c.bf16 %v158, %v155
  %v357 = vpack.c.bf16 %v166, %v163
  %v358 = vpack.c.bf16 %v174, %v171
  %v359 = vpack.c.bf16 %v182, %v179
  %v360 = vpack.c.bf16 %v190, %v187
  %v361 = vpack.c.bf16 %v212, %v210
  %v362 = vpack.c.bf16 %v216, %v214
  %v363 = vpack.c.bf16 %v220, %v218
  %v364 = vpack.c.bf16 %v224, %v222
  %v365 = vpack.c.bf16 %v228, %v226
  %v366 = vpack.c.bf16 %v232, %v230
  %v367 = vpack.c.bf16 %v236, %v234
  %v368 = vpack.c.bf16 %v240, %v238
  %v369 = vpack.c.bf16 %v260, %v258
  %v370 = vpack.c.bf16 %v264, %v262
  %v371 = vpack.c.bf16 %v268, %v266
  %v372 = vpack.c.bf16 %v272, %v270
  %v373 = vpack.c.bf16 %v276, %v274
  %v374 = vpack.c.bf16 %v280, %v278
  %v375 = vpack.c.bf16 %v284, %v282
  %v376 = vpack.c.bf16 %v288, %v286
  %v377 = vpack.c.bf16 %v308, %v306
  %v378 = vpack.c.bf16 %v312, %v310
  %v379 = vpack.c.bf16 %v316, %v314
  %v380 = vpack.c.bf16 %v320, %v318
  %v381 = vpack.c.bf16 %v324, %v322
  %v382 = vpack.c.bf16 %v328, %v326
  %v383 = vpack.c.bf16 %v332, %v330
  %v384 = vpack.c.bf16 %v336, %v334
  %386 = vrot.lane.b32.xlu0 %v353, 96
  %v387 = vpop.permute.xlu0 %386
  %vm388 = vcmask 64512
  %v390 = vsel %vm388, %v353, 0
  %v393 = vsel %vm388, %v387, 0
  %395 = vmatprep.subr.bf16.mxu0 0
  %396 = vmatpush1.bf16.xpose.msra.mxu0 %v393
  %397 = vmatprep.subr.bf16.mxu0 0
  %398 = vmatpush1.bf16.xpose.msra.mxu0 0
  %399 = vmatprep.subr.bf16.mxu0 0
  %400 = vmatpush1.bf16.xpose.msra.mxu0 0
  %401 = vmatprep.subr.bf16.mxu0 0
  %402 = vmatpush1.bf16.xpose.msra.mxu0 0
  %403 = vmatprep.subr.bf16.mxu0 0
  %404 = vmatpush1.bf16.xpose.msra.mxu0 0
  %405 = vmatprep.subr.bf16.mxu0 0
  %406 = vmatpush1.bf16.xpose.msra.mxu0 0
  %407 = vmatprep.subr.bf16.mxu0 0
  %408 = vmatpush1.bf16.xpose.msra.mxu0 0
  %409 = vmatprep.subr.bf16.mxu0 0
  %410 = vmatpush1.bf16.xpose.msra.mxu0 0
  %411 = vmatprep.subr.bf16.mxu0 0
  %412 = vmatpush1.bf16.xpose.msra.mxu0 0
  %413 = vmatprep.subr.bf16.mxu0 0
  %414 = vmatpush1.bf16.xpose.msra.mxu0 0
  %415 = vmatprep.subr.bf16.mxu0 0
  %416 = vmatpush1.bf16.xpose.msra.mxu0 0
  %417 = vmatprep.subr.bf16.mxu0 0
  %418 = vmatpush1.bf16.xpose.msra.mxu0 0
  %419 = vmatprep.subr.bf16.mxu0 0
  %420 = vmatpush1.bf16.xpose.msra.mxu0 0
  %421 = vmatprep.subr.bf16.mxu0 0
  %422 = vmatpush1.bf16.xpose.msra.mxu0 0
  %423 = vmatprep.subr.bf16.mxu0 0
  %424 = vmatpush1.bf16.xpose.msra.mxu0 0
  %425 = vmatprep.subr.bf16.mxu0 0
  %426 = vmatpush1.bf16.xpose.msra.mxu0 0
  %427 = vmatprep.mubr.bf16.mxu0 0
  %428 = vmatmul.mubr.bf16.gmra.mrb[0].mxu0 %v390
  %v429 = vpop.f32.mrb[0].mxu0
  %v430 = vadd.f32 0.0, %v429
  %v431 = vpop.f32.mrb[0].mxu0
  %v432 = vpop.f32.mrb[0].mxu0
  %v433 = vadd.f32 0.0, %v432
  %v434 = vpop.f32.mrb[0].mxu0
  %435 = vdwg.mxu0
  %437 = vrot.lane.b32.xlu0 %v354, 96
  %v438 = vpop.permute.xlu0 %437
  %v440 = vsel %vm388, %v354, 0
  %v443 = vsel %vm388, %v438, 0
  %445 = vmatprep.subr.bf16.mxu0 0
  %446 = vmatpush1.bf16.xpose.msra.mxu0 %v443
  %447 = vmatprep.subr.bf16.mxu0 0
  %448 = vmatpush1.bf16.xpose.msra.mxu0 0
  %449 = vmatprep.subr.bf16.mxu0 0
  %450 = vmatpush1.bf16.xpose.msra.mxu0 0
  %451 = vmatprep.subr.bf16.mxu0 0
  %452 = vmatpush1.bf16.xpose.msra.mxu0 0
  %453 = vmatprep.subr.bf16.mxu0 0
  %454 = vmatpush1.bf16.xpose.msra.mxu0 0
  %455 = vmatprep.subr.bf16.mxu0 0
  %456 = vmatpush1.bf16.xpose.msra.mxu0 0
  %457 = vmatprep.subr.bf16.mxu0 0
  %458 = vmatpush1.bf16.xpose.msra.mxu0 0
  %459 = vmatprep.subr.bf16.mxu0 0
  %460 = vmatpush1.bf16.xpose.msra.mxu0 0
  %461 = vmatprep.subr.bf16.mxu0 0
  %462 = vmatpush1.bf16.xpose.msra.mxu0 0
  %463 = vmatprep.subr.bf16.mxu0 0
  %464 = vmatpush1.bf16.xpose.msra.mxu0 0
  %465 = vmatprep.subr.bf16.mxu0 0
  %466 = vmatpush1.bf16.xpose.msra.mxu0 0
  %467 = vmatprep.subr.bf16.mxu0 0
  %468 = vmatpush1.bf16.xpose.msra.mxu0 0
  %469 = vmatprep.subr.bf16.mxu0 0
  %470 = vmatpush1.bf16.xpose.msra.mxu0 0
  %471 = vmatprep.subr.bf16.mxu0 0
  %472 = vmatpush1.bf16.xpose.msra.mxu0 0
  %473 = vmatprep.subr.bf16.mxu0 0
  %474 = vmatpush1.bf16.xpose.msra.mxu0 0
  %475 = vmatprep.subr.bf16.mxu0 0
  %476 = vmatpush1.bf16.xpose.msra.mxu0 0
  %477 = vmatprep.mubr.bf16.mxu0 0
  %478 = vmatmul.mubr.bf16.gmra.mrb[0].mxu0 %v440
  %v479 = vpop.f32.mrb[0].mxu0
  %v480 = vadd.f32 0.0, %v479
  %v481 = vpop.f32.mrb[0].mxu0
  %v482 = vpop.f32.mrb[0].mxu0
  %v483 = vadd.f32 0.0, %v482
  %v484 = vpop.f32.mrb[0].mxu0
  %485 = vdwg.mxu0
  %487 = vrot.lane.b32.xlu0 %v355, 96
  %v488 = vpop.permute.xlu0 %487
  %v490 = vsel %vm388, %v355, 0
  %v493 = vsel %vm388, %v488, 0
  %495 = vmatprep.subr.bf16.mxu0 0
  %496 = vmatpush1.bf16.xpose.msra.mxu0 %v493
  %497 = vmatprep.subr.bf16.mxu0 0
  %498 = vmatpush1.bf16.xpose.msra.mxu0 0
  %499 = vmatprep.subr.bf16.mxu0 0
  %500 = vmatpush1.bf16.xpose.msra.mxu0 0
  %501 = vmatprep.subr.bf16.mxu0 0
  %502 = vmatpush1.bf16.xpose.msra.mxu0 0
  %503 = vmatprep.subr.bf16.mxu0 0
  %504 = vmatpush1.bf16.xpose.msra.mxu0 0
  %505 = vmatprep.subr.bf16.mxu0 0
  %506 = vmatpush1.bf16.xpose.msra.mxu0 0
  %507 = vmatprep.subr.bf16.mxu0 0
  %508 = vmatpush1.bf16.xpose.msra.mxu0 0
  %509 = vmatprep.subr.bf16.mxu0 0
  %510 = vmatpush1.bf16.xpose.msra.mxu0 0
  %511 = vmatprep.subr.bf16.mxu0 0
  %512 = vmatpush1.bf16.xpose.msra.mxu0 0
  %513 = vmatprep.subr.bf16.mxu0 0
  %514 = vmatpush1.bf16.xpose.msra.mxu0 0
  %515 = vmatprep.subr.bf16.mxu0 0
  %516 = vmatpush1.bf16.xpose.msra.mxu0 0
  %517 = vmatprep.subr.bf16.mxu0 0
  %518 = vmatpush1.bf16.xpose.msra.mxu0 0
  %519 = vmatprep.subr.bf16.mxu0 0
  %520 = vmatpush1.bf16.xpose.msra.mxu0 0
  %521 = vmatprep.subr.bf16.mxu0 0
  %522 = vmatpush1.bf16.xpose.msra.mxu0 0
  %523 = vmatprep.subr.bf16.mxu0 0
  %524 = vmatpush1.bf16.xpose.msra.mxu0 0
  %525 = vmatprep.subr.bf16.mxu0 0
  %526 = vmatpush1.bf16.xpose.msra.mxu0 0
  %527 = vmatprep.mubr.bf16.mxu0 0
  %528 = vmatmul.mubr.bf16.gmra.mrb[0].mxu0 %v490
  %v529 = vpop.f32.mrb[0].mxu0
  %v530 = vadd.f32 0.0, %v529
  %v531 = vpop.f32.mrb[0].mxu0
  %v532 = vpop.f32.mrb[0].mxu0
  %v533 = vadd.f32 0.0, %v532
  %v534 = vpop.f32.mrb[0].mxu0
  %535 = vdwg.mxu0
  %537 = vrot.lane.b32.xlu0 %v356, 96
  %v538 = vpop.permute.xlu0 %537
  %v540 = vsel %vm388, %v356, 0
  %v543 = vsel %vm388, %v538, 0
  %545 = vmatprep.subr.bf16.mxu0 0
  %546 = vmatpush1.bf16.xpose.msra.mxu0 %v543
  %547 = vmatprep.subr.bf16.mxu0 0
  %548 = vmatpush1.bf16.xpose.msra.mxu0 0
  %549 = vmatprep.subr.bf16.mxu0 0
  %550 = vmatpush1.bf16.xpose.msra.mxu0 0
  %551 = vmatprep.subr.bf16.mxu0 0
  %552 = vmatpush1.bf16.xpose.msra.mxu0 0
  %553 = vmatprep.subr.bf16.mxu0 0
  %554 = vmatpush1.bf16.xpose.msra.mxu0 0
  %555 = vmatprep.subr.bf16.mxu0 0
  %556 = vmatpush1.bf16.xpose.msra.mxu0 0
  %557 = vmatprep.subr.bf16.mxu0 0
  %558 = vmatpush1.bf16.xpose.msra.mxu0 0
  %559 = vmatprep.subr.bf16.mxu0 0
  %560 = vmatpush1.bf16.xpose.msra.mxu0 0
  %561 = vmatprep.subr.bf16.mxu0 0
  %562 = vmatpush1.bf16.xpose.msra.mxu0 0
  %563 = vmatprep.subr.bf16.mxu0 0
  %564 = vmatpush1.bf16.xpose.msra.mxu0 0
  %565 = vmatprep.subr.bf16.mxu0 0
  %566 = vmatpush1.bf16.xpose.msra.mxu0 0
  %567 = vmatprep.subr.bf16.mxu0 0
  %568 = vmatpush1.bf16.xpose.msra.mxu0 0
  %569 = vmatprep.subr.bf16.mxu0 0
  %570 = vmatpush1.bf16.xpose.msra.mxu0 0
  %571 = vmatprep.subr.bf16.mxu0 0
  %572 = vmatpush1.bf16.xpose.msra.mxu0 0
  %573 = vmatprep.subr.bf16.mxu0 0
  %574 = vmatpush1.bf16.xpose.msra.mxu0 0
  %575 = vmatprep.subr.bf16.mxu0 0
  %576 = vmatpush1.bf16.xpose.msra.mxu0 0
  %577 = vmatprep.mubr.bf16.mxu0 0
  %578 = vmatmul.mubr.bf16.gmra.mrb[0].mxu0 %v540
  %v579 = vpop.f32.mrb[0].mxu0
  %v580 = vadd.f32 0.0, %v579
  %v581 = vpop.f32.mrb[0].mxu0
  %v582 = vpop.f32.mrb[0].mxu0
  %v583 = vadd.f32 0.0, %v582
  %v584 = vpop.f32.mrb[0].mxu0
  %585 = vdwg.mxu0
  %587 = vrot.lane.b32.xlu0 %v357, 96
  %v588 = vpop.permute.xlu0 %587
  %v590 = vsel %vm388, %v357, 0
  %v593 = vsel %vm388, %v588, 0
  %595 = vmatprep.subr.bf16.mxu0 0
  %596 = vmatpush1.bf16.xpose.msra.mxu0 %v593
  %597 = vmatprep.subr.bf16.mxu0 0
  %598 = vmatpush1.bf16.xpose.msra.mxu0 0
  %599 = vmatprep.subr.bf16.mxu0 0
  %600 = vmatpush1.bf16.xpose.msra.mxu0 0
  %601 = vmatprep.subr.bf16.mxu0 0
  %602 = vmatpush1.bf16.xpose.msra.mxu0 0
  %603 = vmatprep.subr.bf16.mxu0 0
  %604 = vmatpush1.bf16.xpose.msra.mxu0 0
  %605 = vmatprep.subr.bf16.mxu0 0
  %606 = vmatpush1.bf16.xpose.msra.mxu0 0
  %607 = vmatprep.subr.bf16.mxu0 0
  %608 = vmatpush1.bf16.xpose.msra.mxu0 0
  %609 = vmatprep.subr.bf16.mxu0 0
  %610 = vmatpush1.bf16.xpose.msra.mxu0 0
  %611 = vmatprep.subr.bf16.mxu0 0
  %612 = vmatpush1.bf16.xpose.msra.mxu0 0
  %613 = vmatprep.subr.bf16.mxu0 0
  %614 = vmatpush1.bf16.xpose.msra.mxu0 0
  %615 = vmatprep.subr.bf16.mxu0 0
  %616 = vmatpush1.bf16.xpose.msra.mxu0 0
  %617 = vmatprep.subr.bf16.mxu0 0
  %618 = vmatpush1.bf16.xpose.msra.mxu0 0
  %619 = vmatprep.subr.bf16.mxu0 0
  %620 = vmatpush1.bf16.xpose.msra.mxu0 0
  %621 = vmatprep.subr.bf16.mxu0 0
  %622 = vmatpush1.bf16.xpose.msra.mxu0 0
  %623 = vmatprep.subr.bf16.mxu0 0
  %624 = vmatpush1.bf16.xpose.msra.mxu0 0
  %625 = vmatprep.subr.bf16.mxu0 0
  %626 = vmatpush1.bf16.xpose.msra.mxu0 0
  %627 = vmatprep.mubr.bf16.mxu0 0
  %628 = vmatmul.mubr.bf16.gmra.mrb[0].mxu0 %v590
  %v629 = vpop.f32.mrb[0].mxu0
  %v630 = vadd.f32 0.0, %v629
  %v631 = vpop.f32.mrb[0].mxu0
  %v632 = vpop.f32.mrb[0].mxu0
  %v633 = vadd.f32 0.0, %v632
  %v634 = vpop.f32.mrb[0].mxu0
  %635 = vdwg.mxu0
  %637 = vrot.lane.b32.xlu0 %v358, 96
  %v638 = vpop.permute.xlu0 %637
  %v640 = vsel %vm388, %v358, 0
  %v643 = vsel %vm388, %v638, 0
  %645 = vmatprep.subr.bf16.mxu0 0
  %646 = vmatpush1.bf16.xpose.msra.mxu0 %v643
  %647 = vmatprep.subr.bf16.mxu0 0
  %648 = vmatpush1.bf16.xpose.msra.mxu0 0
  %649 = vmatprep.subr.bf16.mxu0 0
  %650 = vmatpush1.bf16.xpose.msra.mxu0 0
  %651 = vmatprep.subr.bf16.mxu0 0
  %652 = vmatpush1.bf16.xpose.msra.mxu0 0
  %653 = vmatprep.subr.bf16.mxu0 0
  %654 = vmatpush1.bf16.xpose.msra.mxu0 0
  %655 = vmatprep.subr.bf16.mxu0 0
  %656 = vmatpush1.bf16.xpose.msra.mxu0 0
  %657 = vmatprep.subr.bf16.mxu0 0
  %658 = vmatpush1.bf16.xpose.msra.mxu0 0
  %659 = vmatprep.subr.bf16.mxu0 0
  %660 = vmatpush1.bf16.xpose.msra.mxu0 0
  %661 = vmatprep.subr.bf16.mxu0 0
  %662 = vmatpush1.bf16.xpose.msra.mxu0 0
  %663 = vmatprep.subr.bf16.mxu0 0
  %664 = vmatpush1.bf16.xpose.msra.mxu0 0
  %665 = vmatprep.subr.bf16.mxu0 0
  %666 = vmatpush1.bf16.xpose.msra.mxu0 0
  %667 = vmatprep.subr.bf16.mxu0 0
  %668 = vmatpush1.bf16.xpose.msra.mxu0 0
  %669 = vmatprep.subr.bf16.mxu0 0
  %670 = vmatpush1.bf16.xpose.msra.mxu0 0
  %671 = vmatprep.subr.bf16.mxu0 0
  %672 = vmatpush1.bf16.xpose.msra.mxu0 0
  %673 = vmatprep.subr.bf16.mxu0 0
  %674 = vmatpush1.bf16.xpose.msra.mxu0 0
  %675 = vmatprep.subr.bf16.mxu0 0
  %676 = vmatpush1.bf16.xpose.msra.mxu0 0
  %677 = vmatprep.mubr.bf16.mxu0 0
  %678 = vmatmul.mubr.bf16.gmra.mrb[0].mxu0 %v640
  %v679 = vpop.f32.mrb[0].mxu0
  %v680 = vadd.f32 0.0, %v679
  %v681 = vpop.f32.mrb[0].mxu0
  %v682 = vpop.f32.mrb[0].mxu0
  %v683 = vadd.f32 0.0, %v682
  %v684 = vpop.f32.mrb[0].mxu0
  %685 = vdwg.mxu0
  %687 = vrot.lane.b32.xlu0 %v359, 96
  %v688 = vpop.permute.xlu0 %687
  %v690 = vsel %vm388, %v359, 0
  %v693 = vsel %vm388, %v688, 0
  %695 = vmatprep.subr.bf16.mxu0 0
  %696 = vmatpush1.bf16.xpose.msra.mxu0 %v693
  %697 = vmatprep.subr.bf16.mxu0 0
  %698 = vmatpush1.bf16.xpose.msra.mxu0 0
  %699 = vmatprep.subr.bf16.mxu0 0
  %700 = vmatpush1.bf16.xpose.msra.mxu0 0
  %701 = vmatprep.subr.bf16.mxu0 0
  %702 = vmatpush1.bf16.xpose.msra.mxu0 0
  %703 = vmatprep.subr.bf16.mxu0 0
  %704 = vmatpush1.bf16.xpose.msra.mxu0 0
  %705 = vmatprep.subr.bf16.mxu0 0
  %706 = vmatpush1.bf16.xpose.msra.mxu0 0
  %707 = vmatprep.subr.bf16.mxu0 0
  %708 = vmatpush1.bf16.xpose.msra.mxu0 0
  %709 = vmatprep.subr.bf16.mxu0 0
  %710 = vmatpush1.bf16.xpose.msra.mxu0 0
  %711 = vmatprep.subr.bf16.mxu0 0
  %712 = vmatpush1.bf16.xpose.msra.mxu0 0
  %713 = vmatprep.subr.bf16.mxu0 0
  %714 = vmatpush1.bf16.xpose.msra.mxu0 0
  %715 = vmatprep.subr.bf16.mxu0 0
  %716 = vmatpush1.bf16.xpose.msra.mxu0 0
  %717 = vmatprep.subr.bf16.mxu0 0
  %718 = vmatpush1.bf16.xpose.msra.mxu0 0
  %719 = vmatprep.subr.bf16.mxu0 0
  %720 = vmatpush1.bf16.xpose.msra.mxu0 0
  %721 = vmatprep.subr.bf16.mxu0 0
  %722 = vmatpush1.bf16.xpose.msra.mxu0 0
  %723 = vmatprep.subr.bf16.mxu0 0
  %724 = vmatpush1.bf16.xpose.msra.mxu0 0
  %725 = vmatprep.subr.bf16.mxu0 0
  %726 = vmatpush1.bf16.xpose.msra.mxu0 0
  %727 = vmatprep.mubr.bf16.mxu0 0
  %728 = vmatmul.mubr.bf16.gmra.mrb[0].mxu0 %v690
  %v729 = vpop.f32.mrb[0].mxu0
  %v730 = vadd.f32 0.0, %v729
  %v731 = vpop.f32.mrb[0].mxu0
  %v732 = vpop.f32.mrb[0].mxu0
  %v733 = vadd.f32 0.0, %v732
  %v734 = vpop.f32.mrb[0].mxu0
  %735 = vdwg.mxu0
  %737 = vrot.lane.b32.xlu0 %v360, 96
  %v738 = vpop.permute.xlu0 %737
  %v740 = vsel %vm388, %v360, 0
  %v743 = vsel %vm388, %v738, 0
  %745 = vmatprep.subr.bf16.mxu0 0
  %746 = vmatpush1.bf16.xpose.msra.mxu0 %v743
  %747 = vmatprep.subr.bf16.mxu0 0
  %748 = vmatpush1.bf16.xpose.msra.mxu0 0
  %749 = vmatprep.subr.bf16.mxu0 0
  %750 = vmatpush1.bf16.xpose.msra.mxu0 0
  %751 = vmatprep.subr.bf16.mxu0 0
  %752 = vmatpush1.bf16.xpose.msra.mxu0 0
  %753 = vmatprep.subr.bf16.mxu0 0
  %754 = vmatpush1.bf16.xpose.msra.mxu0 0
  %755 = vmatprep.subr.bf16.mxu0 0
  %756 = vmatpush1.bf16.xpose.msra.mxu0 0
  %757 = vmatprep.subr.bf16.mxu0 0
  %758 = vmatpush1.bf16.xpose.msra.mxu0 0
  %759 = vmatprep.subr.bf16.mxu0 0
  %760 = vmatpush1.bf16.xpose.msra.mxu0 0
  %761 = vmatprep.subr.bf16.mxu0 0
  %762 = vmatpush1.bf16.xpose.msra.mxu0 0
  %763 = vmatprep.subr.bf16.mxu0 0
  %764 = vmatpush1.bf16.xpose.msra.mxu0 0
  %765 = vmatprep.subr.bf16.mxu0 0
  %766 = vmatpush1.bf16.xpose.msra.mxu0 0
  %767 = vmatprep.subr.bf16.mxu0 0
  %768 = vmatpush1.bf16.xpose.msra.mxu0 0
  %769 = vmatprep.subr.bf16.mxu0 0
  %770 = vmatpush1.bf16.xpose.msra.mxu0 0
  %771 = vmatprep.subr.bf16.mxu0 0
  %772 = vmatpush1.bf16.xpose.msra.mxu0 0
  %773 = vmatprep.subr.bf16.mxu0 0
  %774 = vmatpush1.bf16.xpose.msra.mxu0 0
  %775 = vmatprep.subr.bf16.mxu0 0
  %776 = vmatpush1.bf16.xpose.msra.mxu0 0
  %777 = vmatprep.mubr.bf16.mxu0 0
  %778 = vmatmul.mubr.bf16.gmra.mrb[0].mxu0 %v740
  %v779 = vpop.f32.mrb[0].mxu0
  %v780 = vadd.f32 0.0, %v779
  %v781 = vpop.f32.mrb[0].mxu0
  %v782 = vpop.f32.mrb[0].mxu0
  %v783 = vadd.f32 0.0, %v782
  %v784 = vpop.f32.mrb[0].mxu0
  %785 = vdwg.mxu0
  %787 = vrot.lane.b32.xlu0 %v361, 96
  %v788 = vpop.permute.xlu0 %787
  %v790 = vsel %vm388, %v361, 0
  %v793 = vsel %vm388, %v788, 0
  %795 = vmatprep.subr.bf16.mxu0 0
  %796 = vmatpush1.bf16.xpose.msra.mxu0 %v793
  %797 = vmatprep.subr.bf16.mxu0 0
  %798 = vmatpush1.bf16.xpose.msra.mxu0 0
  %799 = vmatprep.subr.bf16.mxu0 0
  %800 = vmatpush1.bf16.xpose.msra.mxu0 0
  %801 = vmatprep.subr.bf16.mxu0 0
  %802 = vmatpush1.bf16.xpose.msra.mxu0 0
  %803 = vmatprep.subr.bf16.mxu0 0
  %804 = vmatpush1.bf16.xpose.msra.mxu0 0
  %805 = vmatprep.subr.bf16.mxu0 0
  %806 = vmatpush1.bf16.xpose.msra.mxu0 0
  %807 = vmatprep.subr.bf16.mxu0 0
  %808 = vmatpush1.bf16.xpose.msra.mxu0 0
  %809 = vmatprep.subr.bf16.mxu0 0
  %810 = vmatpush1.bf16.xpose.msra.mxu0 0
  %811 = vmatprep.subr.bf16.mxu0 0
  %812 = vmatpush1.bf16.xpose.msra.mxu0 0
  %813 = vmatprep.subr.bf16.mxu0 0
  %814 = vmatpush1.bf16.xpose.msra.mxu0 0
  %815 = vmatprep.subr.bf16.mxu0 0
  %816 = vmatpush1.bf16.xpose.msra.mxu0 0
  %817 = vmatprep.subr.bf16.mxu0 0
  %818 = vmatpush1.bf16.xpose.msra.mxu0 0
  %819 = vmatprep.subr.bf16.mxu0 0
  %820 = vmatpush1.bf16.xpose.msra.mxu0 0
  %821 = vmatprep.subr.bf16.mxu0 0
  %822 = vmatpush1.bf16.xpose.msra.mxu0 0
  %823 = vmatprep.subr.bf16.mxu0 0
  %824 = vmatpush1.bf16.xpose.msra.mxu0 0
  %825 = vmatprep.subr.bf16.mxu0 0
  %826 = vmatpush1.bf16.xpose.msra.mxu0 0
  %827 = vmatprep.mubr.bf16.mxu0 0
  %828 = vmatmul.mubr.bf16.gmra.mrb[0].mxu0 %v790
  %v829 = vpop.f32.mrb[0].mxu0
  %v830 = vadd.f32 0.0, %v829
  %v831 = vpop.f32.mrb[0].mxu0
  %v832 = vpop.f32.mrb[0].mxu0
  %v833 = vadd.f32 0.0, %v832
  %v834 = vpop.f32.mrb[0].mxu0
  %835 = vdwg.mxu0
  %837 = vrot.lane.b32.xlu0 %v362, 96
  %v838 = vpop.permute.xlu0 %837
  %v840 = vsel %vm388, %v362, 0
  %v843 = vsel %vm388, %v838, 0
  %845 = vmatprep.subr.bf16.mxu0 0
  %846 = vmatpush1.bf16.xpose.msra.mxu0 %v843
  %847 = vmatprep.subr.bf16.mxu0 0
  %848 = vmatpush1.bf16.xpose.msra.mxu0 0
  %849 = vmatprep.subr.bf16.mxu0 0
  %850 = vmatpush1.bf16.xpose.msra.mxu0 0
  %851 = vmatprep.subr.bf16.mxu0 0
  %852 = vmatpush1.bf16.xpose.msra.mxu0 0
  %853 = vmatprep.subr.bf16.mxu0 0
  %854 = vmatpush1.bf16.xpose.msra.mxu0 0
  %855 = vmatprep.subr.bf16.mxu0 0
  %856 = vmatpush1.bf16.xpose.msra.mxu0 0
  %857 = vmatprep.subr.bf16.mxu0 0
  %858 = vmatpush1.bf16.xpose.msra.mxu0 0
  %859 = vmatprep.subr.bf16.mxu0 0
  %860 = vmatpush1.bf16.xpose.msra.mxu0 0
  %861 = vmatprep.subr.bf16.mxu0 0
  %862 = vmatpush1.bf16.xpose.msra.mxu0 0
  %863 = vmatprep.subr.bf16.mxu0 0
  %864 = vmatpush1.bf16.xpose.msra.mxu0 0
  %865 = vmatprep.subr.bf16.mxu0 0
  %866 = vmatpush1.bf16.xpose.msra.mxu0 0
  %867 = vmatprep.subr.bf16.mxu0 0
  %868 = vmatpush1.bf16.xpose.msra.mxu0 0
  %869 = vmatprep.subr.bf16.mxu0 0
  %870 = vmatpush1.bf16.xpose.msra.mxu0 0
  %871 = vmatprep.subr.bf16.mxu0 0
  %872 = vmatpush1.bf16.xpose.msra.mxu0 0
  %873 = vmatprep.subr.bf16.mxu0 0
  %874 = vmatpush1.bf16.xpose.msra.mxu0 0
  %875 = vmatprep.subr.bf16.mxu0 0
  %876 = vmatpush1.bf16.xpose.msra.mxu0 0
  %877 = vmatprep.mubr.bf16.mxu0 0
  %878 = vmatmul.mubr.bf16.gmra.mrb[0].mxu0 %v840
  %v879 = vpop.f32.mrb[0].mxu0
  %v880 = vadd.f32 0.0, %v879
  %v881 = vpop.f32.mrb[0].mxu0
  %v882 = vpop.f32.mrb[0].mxu0
  %v883 = vadd.f32 0.0, %v882
  %v884 = vpop.f32.mrb[0].mxu0
  %885 = vdwg.mxu0
  %887 = vrot.lane.b32.xlu0 %v363, 96
  %v888 = vpop.permute.xlu0 %887
  %v890 = vsel %vm388, %v363, 0
  %v893 = vsel %vm388, %v888, 0
  %895 = vmatprep.subr.bf16.mxu0 0
  %896 = vmatpush1.bf16.xpose.msra.mxu0 %v893
  %897 = vmatprep.subr.bf16.mxu0 0
  %898 = vmatpush1.bf16.xpose.msra.mxu0 0
  %899 = vmatprep.subr.bf16.mxu0 0
  %900 = vmatpush1.bf16.xpose.msra.mxu0 0
  %901 = vmatprep.subr.bf16.mxu0 0
  %902 = vmatpush1.bf16.xpose.msra.mxu0 0
  %903 = vmatprep.subr.bf16.mxu0 0
  %904 = vmatpush1.bf16.xpose.msra.mxu0 0
  %905 = vmatprep.subr.bf16.mxu0 0
  %906 = vmatpush1.bf16.xpose.msra.mxu0 0
  %907 = vmatprep.subr.bf16.mxu0 0
  %908 = vmatpush1.bf16.xpose.msra.mxu0 0
  %909 = vmatprep.subr.bf16.mxu0 0
  %910 = vmatpush1.bf16.xpose.msra.mxu0 0
  %911 = vmatprep.subr.bf16.mxu0 0
  %912 = vmatpush1.bf16.xpose.msra.mxu0 0
  %913 = vmatprep.subr.bf16.mxu0 0
  %914 = vmatpush1.bf16.xpose.msra.mxu0 0
  %915 = vmatprep.subr.bf16.mxu0 0
  %916 = vmatpush1.bf16.xpose.msra.mxu0 0
  %917 = vmatprep.subr.bf16.mxu0 0
  %918 = vmatpush1.bf16.xpose.msra.mxu0 0
  %919 = vmatprep.subr.bf16.mxu0 0
  %920 = vmatpush1.bf16.xpose.msra.mxu0 0
  %921 = vmatprep.subr.bf16.mxu0 0
  %922 = vmatpush1.bf16.xpose.msra.mxu0 0
  %923 = vmatprep.subr.bf16.mxu0 0
  %924 = vmatpush1.bf16.xpose.msra.mxu0 0
  %925 = vmatprep.subr.bf16.mxu0 0
  %926 = vmatpush1.bf16.xpose.msra.mxu0 0
  %927 = vmatprep.mubr.bf16.mxu0 0
  %928 = vmatmul.mubr.bf16.gmra.mrb[0].mxu0 %v890
  %v929 = vpop.f32.mrb[0].mxu0
  %v930 = vadd.f32 0.0, %v929
  %v931 = vpop.f32.mrb[0].mxu0
  %v932 = vpop.f32.mrb[0].mxu0
  %v933 = vadd.f32 0.0, %v932
  %v934 = vpop.f32.mrb[0].mxu0
  %935 = vdwg.mxu0
  %937 = vrot.lane.b32.xlu0 %v364, 96
  %v938 = vpop.permute.xlu0 %937
  %v940 = vsel %vm388, %v364, 0
  %v943 = vsel %vm388, %v938, 0
  %945 = vmatprep.subr.bf16.mxu0 0
  %946 = vmatpush1.bf16.xpose.msra.mxu0 %v943
  %947 = vmatprep.subr.bf16.mxu0 0
  %948 = vmatpush1.bf16.xpose.msra.mxu0 0
  %949 = vmatprep.subr.bf16.mxu0 0
  %950 = vmatpush1.bf16.xpose.msra.mxu0 0
  %951 = vmatprep.subr.bf16.mxu0 0
  %952 = vmatpush1.bf16.xpose.msra.mxu0 0
  %953 = vmatprep.subr.bf16.mxu0 0
  %954 = vmatpush1.bf16.xpose.msra.mxu0 0
  %955 = vmatprep.subr.bf16.mxu0 0
  %956 = vmatpush1.bf16.xpose.msra.mxu0 0
  %957 = vmatprep.subr.bf16.mxu0 0
  %958 = vmatpush1.bf16.xpose.msra.mxu0 0
  %959 = vmatprep.subr.bf16.mxu0 0
  %960 = vmatpush1.bf16.xpose.msra.mxu0 0
  %961 = vmatprep.subr.bf16.mxu0 0
  %962 = vmatpush1.bf16.xpose.msra.mxu0 0
  %963 = vmatprep.subr.bf16.mxu0 0
  %964 = vmatpush1.bf16.xpose.msra.mxu0 0
  %965 = vmatprep.subr.bf16.mxu0 0
  %966 = vmatpush1.bf16.xpose.msra.mxu0 0
  %967 = vmatprep.subr.bf16.mxu0 0
  %968 = vmatpush1.bf16.xpose.msra.mxu0 0
  %969 = vmatprep.subr.bf16.mxu0 0
  %970 = vmatpush1.bf16.xpose.msra.mxu0 0
  %971 = vmatprep.subr.bf16.mxu0 0
  %972 = vmatpush1.bf16.xpose.msra.mxu0 0
  %973 = vmatprep.subr.bf16.mxu0 0
  %974 = vmatpush1.bf16.xpose.msra.mxu0 0
  %975 = vmatprep.subr.bf16.mxu0 0
  %976 = vmatpush1.bf16.xpose.msra.mxu0 0
  %977 = vmatprep.mubr.bf16.mxu0 0
  %978 = vmatmul.mubr.bf16.gmra.mrb[0].mxu0 %v940
  %v979 = vpop.f32.mrb[0].mxu0
  %v980 = vadd.f32 0.0, %v979
  %v981 = vpop.f32.mrb[0].mxu0
  %v982 = vpop.f32.mrb[0].mxu0
  %v983 = vadd.f32 0.0, %v982
  %v984 = vpop.f32.mrb[0].mxu0
  %985 = vdwg.mxu0
  %987 = vrot.lane.b32.xlu0 %v365, 96
  %v988 = vpop.permute.xlu0 %987
  %v990 = vsel %vm388, %v365, 0
  %v993 = vsel %vm388, %v988, 0
  %995 = vmatprep.subr.bf16.mxu0 0
  %996 = vmatpush1.bf16.xpose.msra.mxu0 %v993
  %997 = vmatprep.subr.bf16.mxu0 0
  %998 = vmatpush1.bf16.xpose.msra.mxu0 0
  %999 = vmatprep.subr.bf16.mxu0 0
  %1000 = vmatpush1.bf16.xpose.msra.mxu0 0
  %1001 = vmatprep.subr.bf16.mxu0 0
  %1002 = vmatpush1.bf16.xpose.msra.mxu0 0
  %1003 = vmatprep.subr.bf16.mxu0 0
  %1004 = vmatpush1.bf16.xpose.msra.mxu0 0
  %1005 = vmatprep.subr.bf16.mxu0 0
  %1006 = vmatpush1.bf16.xpose.msra.mxu0 0
  %1007 = vmatprep.subr.bf16.mxu0 0
  %1008 = vmatpush1.bf16.xpose.msra.mxu0 0
  %1009 = vmatprep.subr.bf16.mxu0 0
  %1010 = vmatpush1.bf16.xpose.msra.mxu0 0
  %1011 = vmatprep.subr.bf16.mxu0 0
  %1012 = vmatpush1.bf16.xpose.msra.mxu0 0
  %1013 = vmatprep.subr.bf16.mxu0 0
  %1014 = vmatpush1.bf16.xpose.msra.mxu0 0
  %1015 = vmatprep.subr.bf16.mxu0 0
  %1016 = vmatpush1.bf16.xpose.msra.mxu0 0
  %1017 = vmatprep.subr.bf16.mxu0 0
  %1018 = vmatpush1.bf16.xpose.msra.mxu0 0
  %1019 = vmatprep.subr.bf16.mxu0 0
  %1020 = vmatpush1.bf16.xpose.msra.mxu0 0
  %1021 = vmatprep.subr.bf16.mxu0 0
  %1022 = vmatpush1.bf16.xpose.msra.mxu0 0
  %1023 = vmatprep.subr.bf16.mxu0 0
  %1024 = vmatpush1.bf16.xpose.msra.mxu0 0
  %1025 = vmatprep.subr.bf16.mxu0 0
  %1026 = vmatpush1.bf16.xpose.msra.mxu0 0
  %1027 = vmatprep.mubr.bf16.mxu0 0
  %1028 = vmatmul.mubr.bf16.gmra.mrb[0].mxu0 %v990
  %v1029 = vpop.f32.mrb[0].mxu0
  %v1030 = vadd.f32 0.0, %v1029
  %v1031 = vpop.f32.mrb[0].mxu0
  %v1032 = vpop.f32.mrb[0].mxu0
  %v1033 = vadd.f32 0.0, %v1032
  %v1034 = vpop.f32.mrb[0].mxu0
  %1035 = vdwg.mxu0
  %1037 = vrot.lane.b32.xlu0 %v366, 96
  %v1038 = vpop.permute.xlu0 %1037
  %v1040 = vsel %vm388, %v366, 0
  %v1043 = vsel %vm388, %v1038, 0
  %1045 = vmatprep.subr.bf16.mxu0 0
  %1046 = vmatpush1.bf16.xpose.msra.mxu0 %v1043
  %1047 = vmatprep.subr.bf16.mxu0 0
  %1048 = vmatpush1.bf16.xpose.msra.mxu0 0
  %1049 = vmatprep.subr.bf16.mxu0 0
  %1050 = vmatpush1.bf16.xpose.msra.mxu0 0
  %1051 = vmatprep.subr.bf16.mxu0 0
  %1052 = vmatpush1.bf16.xpose.msra.mxu0 0
  %1053 = vmatprep.subr.bf16.mxu0 0
  %1054 = vmatpush1.bf16.xpose.msra.mxu0 0
  %1055 = vmatprep.subr.bf16.mxu0 0
  %1056 = vmatpush1.bf16.xpose.msra.mxu0 0
  %1057 = vmatprep.subr.bf16.mxu0 0
  %1058 = vmatpush1.bf16.xpose.msra.mxu0 0
  %1059 = vmatprep.subr.bf16.mxu0 0
  %1060 = vmatpush1.bf16.xpose.msra.mxu0 0
  %1061 = vmatprep.subr.bf16.mxu0 0
  %1062 = vmatpush1.bf16.xpose.msra.mxu0 0
  %1063 = vmatprep.subr.bf16.mxu0 0
  %1064 = vmatpush1.bf16.xpose.msra.mxu0 0
  %1065 = vmatprep.subr.bf16.mxu0 0
  %1066 = vmatpush1.bf16.xpose.msra.mxu0 0
  %1067 = vmatprep.subr.bf16.mxu0 0
  %1068 = vmatpush1.bf16.xpose.msra.mxu0 0
  %1069 = vmatprep.subr.bf16.mxu0 0
  %1070 = vmatpush1.bf16.xpose.msra.mxu0 0
  %1071 = vmatprep.subr.bf16.mxu0 0
  %1072 = vmatpush1.bf16.xpose.msra.mxu0 0
  %1073 = vmatprep.subr.bf16.mxu0 0
  %1074 = vmatpush1.bf16.xpose.msra.mxu0 0
  %1075 = vmatprep.subr.bf16.mxu0 0
  %1076 = vmatpush1.bf16.xpose.msra.mxu0 0
  %1077 = vmatprep.mubr.bf16.mxu0 0
  %1078 = vmatmul.mubr.bf16.gmra.mrb[0].mxu0 %v1040
  %v1079 = vpop.f32.mrb[0].mxu0
  %v1080 = vadd.f32 0.0, %v1079
  %v1081 = vpop.f32.mrb[0].mxu0
  %v1082 = vpop.f32.mrb[0].mxu0
  %v1083 = vadd.f32 0.0, %v1082
  %v1084 = vpop.f32.mrb[0].mxu0
  %1085 = vdwg.mxu0
  %1087 = vrot.lane.b32.xlu0 %v367, 96
  %v1088 = vpop.permute.xlu0 %1087
  %v1090 = vsel %vm388, %v367, 0
  %v1093 = vsel %vm388, %v1088, 0
  %1095 = vmatprep.subr.bf16.mxu0 0
  %1096 = vmatpush1.bf16.xpose.msra.mxu0 %v1093
  %1097 = vmatprep.subr.bf16.mxu0 0
  %1098 = vmatpush1.bf16.xpose.msra.mxu0 0
  %1099 = vmatprep.subr.bf16.mxu0 0
  %1100 = vmatpush1.bf16.xpose.msra.mxu0 0
  %1101 = vmatprep.subr.bf16.mxu0 0
  %1102 = vmatpush1.bf16.xpose.msra.mxu0 0
  %1103 = vmatprep.subr.bf16.mxu0 0
  %1104 = vmatpush1.bf16.xpose.msra.mxu0 0
  %1105 = vmatprep.subr.bf16.mxu0 0
  %1106 = vmatpush1.bf16.xpose.msra.mxu0 0
  %1107 = vmatprep.subr.bf16.mxu0 0
  %1108 = vmatpush1.bf16.xpose.msra.mxu0 0
  %1109 = vmatprep.subr.bf16.mxu0 0
  %1110 = vmatpush1.bf16.xpose.msra.mxu0 0
  %1111 = vmatprep.subr.bf16.mxu0 0
  %1112 = vmatpush1.bf16.xpose.msra.mxu0 0
  %1113 = vmatprep.subr.bf16.mxu0 0
  %1114 = vmatpush1.bf16.xpose.msra.mxu0 0
  %1115 = vmatprep.subr.bf16.mxu0 0
  %1116 = vmatpush1.bf16.xpose.msra.mxu0 0
  %1117 = vmatprep.subr.bf16.mxu0 0
  %1118 = vmatpush1.bf16.xpose.msra.mxu0 0
  %1119 = vmatprep.subr.bf16.mxu0 0
  %1120 = vmatpush1.bf16.xpose.msra.mxu0 0
  %1121 = vmatprep.subr.bf16.mxu0 0
  %1122 = vmatpush1.bf16.xpose.msra.mxu0 0
  %1123 = vmatprep.subr.bf16.mxu0 0
  %1124 = vmatpush1.bf16.xpose.msra.mxu0 0
  %1125 = vmatprep.subr.bf16.mxu0 0
  %1126 = vmatpush1.bf16.xpose.msra.mxu0 0
  %1127 = vmatprep.mubr.bf16.mxu0 0
  %1128 = vmatmul.mubr.bf16.gmra.mrb[0].mxu0 %v1090
  %v1129 = vpop.f32.mrb[0].mxu0
  %v1130 = vadd.f32 0.0, %v1129
  %v1131 = vpop.f32.mrb[0].mxu0
  %v1132 = vpop.f32.mrb[0].mxu0
  %v1133 = vadd.f32 0.0, %v1132
  %v1134 = vpop.f32.mrb[0].mxu0
  %1135 = vdwg.mxu0
  %1137 = vrot.lane.b32.xlu0 %v368, 96
  %v1138 = vpop.permute.xlu0 %1137
  %v1140 = vsel %vm388, %v368, 0
  %v1143 = vsel %vm388, %v1138, 0
  %1145 = vmatprep.subr.bf16.mxu0 0
  %1146 = vmatpush1.bf16.xpose.msra.mxu0 %v1143
  %1147 = vmatprep.subr.bf16.mxu0 0
  %1148 = vmatpush1.bf16.xpose.msra.mxu0 0
  %1149 = vmatprep.subr.bf16.mxu0 0
  %1150 = vmatpush1.bf16.xpose.msra.mxu0 0
  %1151 = vmatprep.subr.bf16.mxu0 0
  %1152 = vmatpush1.bf16.xpose.msra.mxu0 0
  %1153 = vmatprep.subr.bf16.mxu0 0
  %1154 = vmatpush1.bf16.xpose.msra.mxu0 0
  %1155 = vmatprep.subr.bf16.mxu0 0
  %1156 = vmatpush1.bf16.xpose.msra.mxu0 0
  %1157 = vmatprep.subr.bf16.mxu0 0
  %1158 = vmatpush1.bf16.xpose.msra.mxu0 0
  %1159 = vmatprep.subr.bf16.mxu0 0
  %1160 = vmatpush1.bf16.xpose.msra.mxu0 0
  %1161 = vmatprep.subr.bf16.mxu0 0
  %1162 = vmatpush1.bf16.xpose.msra.mxu0 0
  %1163 = vmatprep.subr.bf16.mxu0 0
  %1164 = vmatpush1.bf16.xpose.msra.mxu0 0
  %1165 = vmatprep.subr.bf16.mxu0 0
  %1166 = vmatpush1.bf16.xpose.msra.mxu0 0
  %1167 = vmatprep.subr.bf16.mxu0 0
  %1168 = vmatpush1.bf16.xpose.msra.mxu0 0
  %1169 = vmatprep.subr.bf16.mxu0 0
  %1170 = vmatpush1.bf16.xpose.msra.mxu0 0
  %1171 = vmatprep.subr.bf16.mxu0 0
  %1172 = vmatpush1.bf16.xpose.msra.mxu0 0
  %1173 = vmatprep.subr.bf16.mxu0 0
  %1174 = vmatpush1.bf16.xpose.msra.mxu0 0
  %1175 = vmatprep.subr.bf16.mxu0 0
  %1176 = vmatpush1.bf16.xpose.msra.mxu0 0
  %1177 = vmatprep.mubr.bf16.mxu0 0
  %1178 = vmatmul.mubr.bf16.gmra.mrb[0].mxu0 %v1140
  %v1179 = vpop.f32.mrb[0].mxu0
  %v1180 = vadd.f32 0.0, %v1179
  %v1181 = vpop.f32.mrb[0].mxu0
  %v1182 = vpop.f32.mrb[0].mxu0
  %v1183 = vadd.f32 0.0, %v1182
  %v1184 = vpop.f32.mrb[0].mxu0
  %1185 = vdwg.mxu0
  %1187 = vrot.lane.b32.xlu0 %v369, 96
  %v1188 = vpop.permute.xlu0 %1187
  %v1190 = vsel %vm388, %v369, 0
  %v1193 = vsel %vm388, %v1188, 0
  %1195 = vmatprep.subr.bf16.mxu0 0
  %1196 = vmatpush1.bf16.xpose.msra.mxu0 %v1193
  %1197 = vmatprep.subr.bf16.mxu0 0
  %1198 = vmatpush1.bf16.xpose.msra.mxu0 0
  %1199 = vmatprep.subr.bf16.mxu0 0
  %1200 = vmatpush1.bf16.xpose.msra.mxu0 0
  %1201 = vmatprep.subr.bf16.mxu0 0
  %1202 = vmatpush1.bf16.xpose.msra.mxu0 0
  %1203 = vmatprep.subr.bf16.mxu0 0
  %1204 = vmatpush1.bf16.xpose.msra.mxu0 0
  %1205 = vmatprep.subr.bf16.mxu0 0
  %1206 = vmatpush1.bf16.xpose.msra.mxu0 0
  %1207 = vmatprep.subr.bf16.mxu0 0
  %1208 = vmatpush1.bf16.xpose.msra.mxu0 0
  %1209 = vmatprep.subr.bf16.mxu0 0
  %1210 = vmatpush1.bf16.xpose.msra.mxu0 0
  %1211 = vmatprep.subr.bf16.mxu0 0
  %1212 = vmatpush1.bf16.xpose.msra.mxu0 0
  %1213 = vmatprep.subr.bf16.mxu0 0
  %1214 = vmatpush1.bf16.xpose.msra.mxu0 0
  %1215 = vmatprep.subr.bf16.mxu0 0
  %1216 = vmatpush1.bf16.xpose.msra.mxu0 0
  %1217 = vmatprep.subr.bf16.mxu0 0
  %1218 = vmatpush1.bf16.xpose.msra.mxu0 0
  %1219 = vmatprep.subr.bf16.mxu0 0
  %1220 = vmatpush1.bf16.xpose.msra.mxu0 0
  %1221 = vmatprep.subr.bf16.mxu0 0
  %1222 = vmatpush1.bf16.xpose.msra.mxu0 0
  %1223 = vmatprep.subr.bf16.mxu0 0
  %1224 = vmatpush1.bf16.xpose.msra.mxu0 0
  %1225 = vmatprep.subr.bf16.mxu0 0
  %1226 = vmatpush1.bf16.xpose.msra.mxu0 0
  %1227 = vmatprep.mubr.bf16.mxu0 0
  %1228 = vmatmul.mubr.bf16.gmra.mrb[0].mxu0 %v1190
  %v1229 = vpop.f32.mrb[0].mxu0
  %v1230 = vadd.f32 0.0, %v1229
  %v1231 = vpop.f32.mrb[0].mxu0
  %v1232 = vpop.f32.mrb[0].mxu0
  %v1233 = vadd.f32 0.0, %v1232
  %v1234 = vpop.f32.mrb[0].mxu0
  %1235 = vdwg.mxu0
  %1237 = vrot.lane.b32.xlu0 %v370, 96
  %v1238 = vpop.permute.xlu0 %1237
  %v1240 = vsel %vm388, %v370, 0
  %v1243 = vsel %vm388, %v1238, 0
  %1245 = vmatprep.subr.bf16.mxu0 0
  %1246 = vmatpush1.bf16.xpose.msra.mxu0 %v1243
  %1247 = vmatprep.subr.bf16.mxu0 0
  %1248 = vmatpush1.bf16.xpose.msra.mxu0 0
  %1249 = vmatprep.subr.bf16.mxu0 0
  %1250 = vmatpush1.bf16.xpose.msra.mxu0 0
  %1251 = vmatprep.subr.bf16.mxu0 0
  %1252 = vmatpush1.bf16.xpose.msra.mxu0 0
  %1253 = vmatprep.subr.bf16.mxu0 0
  %1254 = vmatpush1.bf16.xpose.msra.mxu0 0
  %1255 = vmatprep.subr.bf16.mxu0 0
  %1256 = vmatpush1.bf16.xpose.msra.mxu0 0
  %1257 = vmatprep.subr.bf16.mxu0 0
  %1258 = vmatpush1.bf16.xpose.msra.mxu0 0
  %1259 = vmatprep.subr.bf16.mxu0 0
  %1260 = vmatpush1.bf16.xpose.msra.mxu0 0
  %1261 = vmatprep.subr.bf16.mxu0 0
  %1262 = vmatpush1.bf16.xpose.msra.mxu0 0
  %1263 = vmatprep.subr.bf16.mxu0 0
  %1264 = vmatpush1.bf16.xpose.msra.mxu0 0
  %1265 = vmatprep.subr.bf16.mxu0 0
  %1266 = vmatpush1.bf16.xpose.msra.mxu0 0
  %1267 = vmatprep.subr.bf16.mxu0 0
  %1268 = vmatpush1.bf16.xpose.msra.mxu0 0
  %1269 = vmatprep.subr.bf16.mxu0 0
  %1270 = vmatpush1.bf16.xpose.msra.mxu0 0
  %1271 = vmatprep.subr.bf16.mxu0 0
  %1272 = vmatpush1.bf16.xpose.msra.mxu0 0
  %1273 = vmatprep.subr.bf16.mxu0 0
  %1274 = vmatpush1.bf16.xpose.msra.mxu0 0
  %1275 = vmatprep.subr.bf16.mxu0 0
  %1276 = vmatpush1.bf16.xpose.msra.mxu0 0
  %1277 = vmatprep.mubr.bf16.mxu0 0
  %1278 = vmatmul.mubr.bf16.gmra.mrb[0].mxu0 %v1240
  %v1279 = vpop.f32.mrb[0].mxu0
  %v1280 = vadd.f32 0.0, %v1279
  %v1281 = vpop.f32.mrb[0].mxu0
  %v1282 = vpop.f32.mrb[0].mxu0
  %v1283 = vadd.f32 0.0, %v1282
  %v1284 = vpop.f32.mrb[0].mxu0
  %1285 = vdwg.mxu0
  %1287 = vrot.lane.b32.xlu0 %v371, 96
  %v1288 = vpop.permute.xlu0 %1287
  %v1290 = vsel %vm388, %v371, 0
  %v1293 = vsel %vm388, %v1288, 0
  %1295 = vmatprep.subr.bf16.mxu0 0
  %1296 = vmatpush1.bf16.xpose.msra.mxu0 %v1293
  %1297 = vmatprep.subr.bf16.mxu0 0
  %1298 = vmatpush1.bf16.xpose.msra.mxu0 0
  %1299 = vmatprep.subr.bf16.mxu0 0
  %1300 = vmatpush1.bf16.xpose.msra.mxu0 0
  %1301 = vmatprep.subr.bf16.mxu0 0
  %1302 = vmatpush1.bf16.xpose.msra.mxu0 0
  %1303 = vmatprep.subr.bf16.mxu0 0
  %1304 = vmatpush1.bf16.xpose.msra.mxu0 0
  %1305 = vmatprep.subr.bf16.mxu0 0
  %1306 = vmatpush1.bf16.xpose.msra.mxu0 0
  %1307 = vmatprep.subr.bf16.mxu0 0
  %1308 = vmatpush1.bf16.xpose.msra.mxu0 0
  %1309 = vmatprep.subr.bf16.mxu0 0
  %1310 = vmatpush1.bf16.xpose.msra.mxu0 0
  %1311 = vmatprep.subr.bf16.mxu0 0
  %1312 = vmatpush1.bf16.xpose.msra.mxu0 0
  %1313 = vmatprep.subr.bf16.mxu0 0
  %1314 = vmatpush1.bf16.xpose.msra.mxu0 0
  %1315 = vmatprep.subr.bf16.mxu0 0
  %1316 = vmatpush1.bf16.xpose.msra.mxu0 0
  %1317 = vmatprep.subr.bf16.mxu0 0
  %1318 = vmatpush1.bf16.xpose.msra.mxu0 0
  %1319 = vmatprep.subr.bf16.mxu0 0
  %1320 = vmatpush1.bf16.xpose.msra.mxu0 0
  %1321 = vmatprep.subr.bf16.mxu0 0
  %1322 = vmatpush1.bf16.xpose.msra.mxu0 0
  %1323 = vmatprep.subr.bf16.mxu0 0
  %1324 = vmatpush1.bf16.xpose.msra.mxu0 0
  %1325 = vmatprep.subr.bf16.mxu0 0
  %1326 = vmatpush1.bf16.xpose.msra.mxu0 0
  %1327 = vmatprep.mubr.bf16.mxu0 0
  %1328 = vmatmul.mubr.bf16.gmra.mrb[0].mxu0 %v1290
  %v1329 = vpop.f32.mrb[0].mxu0
  %v1330 = vadd.f32 0.0, %v1329
  %v1331 = vpop.f32.mrb[0].mxu0
  %v1332 = vpop.f32.mrb[0].mxu0
  %v1333 = vadd.f32 0.0, %v1332
  %v1334 = vpop.f32.mrb[0].mxu0
  %1335 = vdwg.mxu0
  %1337 = vrot.lane.b32.xlu0 %v372, 96
  %v1338 = vpop.permute.xlu0 %1337
  %v1340 = vsel %vm388, %v372, 0
  %v1343 = vsel %vm388, %v1338, 0
  %1345 = vmatprep.subr.bf16.mxu0 0
  %1346 = vmatpush1.bf16.xpose.msra.mxu0 %v1343
  %1347 = vmatprep.subr.bf16.mxu0 0
  %1348 = vmatpush1.bf16.xpose.msra.mxu0 0
  %1349 = vmatprep.subr.bf16.mxu0 0
  %1350 = vmatpush1.bf16.xpose.msra.mxu0 0
  %1351 = vmatprep.subr.bf16.mxu0 0
  %1352 = vmatpush1.bf16.xpose.msra.mxu0 0
  %1353 = vmatprep.subr.bf16.mxu0 0
  %1354 = vmatpush1.bf16.xpose.msra.mxu0 0
  %1355 = vmatprep.subr.bf16.mxu0 0
  %1356 = vmatpush1.bf16.xpose.msra.mxu0 0
  %1357 = vmatprep.subr.bf16.mxu0 0
  %1358 = vmatpush1.bf16.xpose.msra.mxu0 0
  %1359 = vmatprep.subr.bf16.mxu0 0
  %1360 = vmatpush1.bf16.xpose.msra.mxu0 0
  %1361 = vmatprep.subr.bf16.mxu0 0
  %1362 = vmatpush1.bf16.xpose.msra.mxu0 0
  %1363 = vmatprep.subr.bf16.mxu0 0
  %1364 = vmatpush1.bf16.xpose.msra.mxu0 0
  %1365 = vmatprep.subr.bf16.mxu0 0
  %1366 = vmatpush1.bf16.xpose.msra.mxu0 0
  %1367 = vmatprep.subr.bf16.mxu0 0
  %1368 = vmatpush1.bf16.xpose.msra.mxu0 0
  %1369 = vmatprep.subr.bf16.mxu0 0
  %1370 = vmatpush1.bf16.xpose.msra.mxu0 0
  %1371 = vmatprep.subr.bf16.mxu0 0
  %1372 = vmatpush1.bf16.xpose.msra.mxu0 0
  %1373 = vmatprep.subr.bf16.mxu0 0
  %1374 = vmatpush1.bf16.xpose.msra.mxu0 0
  %1375 = vmatprep.subr.bf16.mxu0 0
  %1376 = vmatpush1.bf16.xpose.msra.mxu0 0
  %1377 = vmatprep.mubr.bf16.mxu0 0
  %1378 = vmatmul.mubr.bf16.gmra.mrb[0].mxu0 %v1340
  %v1379 = vpop.f32.mrb[0].mxu0
  %v1380 = vadd.f32 0.0, %v1379
  %v1381 = vpop.f32.mrb[0].mxu0
  %v1382 = vpop.f32.mrb[0].mxu0
  %v1383 = vadd.f32 0.0, %v1382
  %v1384 = vpop.f32.mrb[0].mxu0
  %1385 = vdwg.mxu0
  %1387 = vrot.lane.b32.xlu0 %v373, 96
  %v1388 = vpop.permute.xlu0 %1387
  %v1390 = vsel %vm388, %v373, 0
  %v1393 = vsel %vm388, %v1388, 0
  %1395 = vmatprep.subr.bf16.mxu0 0
  %1396 = vmatpush1.bf16.xpose.msra.mxu0 %v1393
  %1397 = vmatprep.subr.bf16.mxu0 0
  %1398 = vmatpush1.bf16.xpose.msra.mxu0 0
  %1399 = vmatprep.subr.bf16.mxu0 0
  %1400 = vmatpush1.bf16.xpose.msra.mxu0 0
  %1401 = vmatprep.subr.bf16.mxu0 0
  %1402 = vmatpush1.bf16.xpose.msra.mxu0 0
  %1403 = vmatprep.subr.bf16.mxu0 0
  %1404 = vmatpush1.bf16.xpose.msra.mxu0 0
  %1405 = vmatprep.subr.bf16.mxu0 0
  %1406 = vmatpush1.bf16.xpose.msra.mxu0 0
  %1407 = vmatprep.subr.bf16.mxu0 0
  %1408 = vmatpush1.bf16.xpose.msra.mxu0 0
  %1409 = vmatprep.subr.bf16.mxu0 0
  %1410 = vmatpush1.bf16.xpose.msra.mxu0 0
  %1411 = vmatprep.subr.bf16.mxu0 0
  %1412 = vmatpush1.bf16.xpose.msra.mxu0 0
  %1413 = vmatprep.subr.bf16.mxu0 0
  %1414 = vmatpush1.bf16.xpose.msra.mxu0 0
  %1415 = vmatprep.subr.bf16.mxu0 0
  %1416 = vmatpush1.bf16.xpose.msra.mxu0 0
  %1417 = vmatprep.subr.bf16.mxu0 0
  %1418 = vmatpush1.bf16.xpose.msra.mxu0 0
  %1419 = vmatprep.subr.bf16.mxu0 0
  %1420 = vmatpush1.bf16.xpose.msra.mxu0 0
  %1421 = vmatprep.subr.bf16.mxu0 0
  %1422 = vmatpush1.bf16.xpose.msra.mxu0 0
  %1423 = vmatprep.subr.bf16.mxu0 0
  %1424 = vmatpush1.bf16.xpose.msra.mxu0 0
  %1425 = vmatprep.subr.bf16.mxu0 0
  %1426 = vmatpush1.bf16.xpose.msra.mxu0 0
  %1427 = vmatprep.mubr.bf16.mxu0 0
  %1428 = vmatmul.mubr.bf16.gmra.mrb[0].mxu0 %v1390
  %v1429 = vpop.f32.mrb[0].mxu0
  %v1430 = vadd.f32 0.0, %v1429
  %v1431 = vpop.f32.mrb[0].mxu0
  %v1432 = vpop.f32.mrb[0].mxu0
  %v1433 = vadd.f32 0.0, %v1432
  %v1434 = vpop.f32.mrb[0].mxu0
  %1435 = vdwg.mxu0
  %1437 = vrot.lane.b32.xlu0 %v374, 96
  %v1438 = vpop.permute.xlu0 %1437
  %v1440 = vsel %vm388, %v374, 0
  %v1443 = vsel %vm388, %v1438, 0
  %1445 = vmatprep.subr.bf16.mxu0 0
  %1446 = vmatpush1.bf16.xpose.msra.mxu0 %v1443
  %1447 = vmatprep.subr.bf16.mxu0 0
  %1448 = vmatpush1.bf16.xpose.msra.mxu0 0
  %1449 = vmatprep.subr.bf16.mxu0 0
  %1450 = vmatpush1.bf16.xpose.msra.mxu0 0
  %1451 = vmatprep.subr.bf16.mxu0 0
  %1452 = vmatpush1.bf16.xpose.msra.mxu0 0
  %1453 = vmatprep.subr.bf16.mxu0 0
  %1454 = vmatpush1.bf16.xpose.msra.mxu0 0
  %1455 = vmatprep.subr.bf16.mxu0 0
  %1456 = vmatpush1.bf16.xpose.msra.mxu0 0
  %1457 = vmatprep.subr.bf16.mxu0 0
  %1458 = vmatpush1.bf16.xpose.msra.mxu0 0
  %1459 = vmatprep.subr.bf16.mxu0 0
  %1460 = vmatpush1.bf16.xpose.msra.mxu0 0
  %1461 = vmatprep.subr.bf16.mxu0 0
  %1462 = vmatpush1.bf16.xpose.msra.mxu0 0
  %1463 = vmatprep.subr.bf16.mxu0 0
  %1464 = vmatpush1.bf16.xpose.msra.mxu0 0
  %1465 = vmatprep.subr.bf16.mxu0 0
  %1466 = vmatpush1.bf16.xpose.msra.mxu0 0
  %1467 = vmatprep.subr.bf16.mxu0 0
  %1468 = vmatpush1.bf16.xpose.msra.mxu0 0
  %1469 = vmatprep.subr.bf16.mxu0 0
  %1470 = vmatpush1.bf16.xpose.msra.mxu0 0
  %1471 = vmatprep.subr.bf16.mxu0 0
  %1472 = vmatpush1.bf16.xpose.msra.mxu0 0
  %1473 = vmatprep.subr.bf16.mxu0 0
  %1474 = vmatpush1.bf16.xpose.msra.mxu0 0
  %1475 = vmatprep.subr.bf16.mxu0 0
  %1476 = vmatpush1.bf16.xpose.msra.mxu0 0
  %1477 = vmatprep.mubr.bf16.mxu0 0
  %1478 = vmatmul.mubr.bf16.gmra.mrb[0].mxu0 %v1440
  %v1479 = vpop.f32.mrb[0].mxu0
  %v1480 = vadd.f32 0.0, %v1479
  %v1481 = vpop.f32.mrb[0].mxu0
  %v1482 = vpop.f32.mrb[0].mxu0
  %v1483 = vadd.f32 0.0, %v1482
  %v1484 = vpop.f32.mrb[0].mxu0
  %1485 = vdwg.mxu0
  %1487 = vrot.lane.b32.xlu0 %v375, 96
  %v1488 = vpop.permute.xlu0 %1487
  %v1490 = vsel %vm388, %v375, 0
  %v1493 = vsel %vm388, %v1488, 0
  %1495 = vmatprep.subr.bf16.mxu0 0
  %1496 = vmatpush1.bf16.xpose.msra.mxu0 %v1493
  %1497 = vmatprep.subr.bf16.mxu0 0
  %1498 = vmatpush1.bf16.xpose.msra.mxu0 0
  %1499 = vmatprep.subr.bf16.mxu0 0
  %1500 = vmatpush1.bf16.xpose.msra.mxu0 0
  %1501 = vmatprep.subr.bf16.mxu0 0
  %1502 = vmatpush1.bf16.xpose.msra.mxu0 0
  %1503 = vmatprep.subr.bf16.mxu0 0
  %1504 = vmatpush1.bf16.xpose.msra.mxu0 0
  %1505 = vmatprep.subr.bf16.mxu0 0
  %1506 = vmatpush1.bf16.xpose.msra.mxu0 0
  %1507 = vmatprep.subr.bf16.mxu0 0
  %1508 = vmatpush1.bf16.xpose.msra.mxu0 0
  %1509 = vmatprep.subr.bf16.mxu0 0
  %1510 = vmatpush1.bf16.xpose.msra.mxu0 0
  %1511 = vmatprep.subr.bf16.mxu0 0
  %1512 = vmatpush1.bf16.xpose.msra.mxu0 0
  %1513 = vmatprep.subr.bf16.mxu0 0
  %1514 = vmatpush1.bf16.xpose.msra.mxu0 0
  %1515 = vmatprep.subr.bf16.mxu0 0
  %1516 = vmatpush1.bf16.xpose.msra.mxu0 0
  %1517 = vmatprep.subr.bf16.mxu0 0
  %1518 = vmatpush1.bf16.xpose.msra.mxu0 0
  %1519 = vmatprep.subr.bf16.mxu0 0
  %1520 = vmatpush1.bf16.xpose.msra.mxu0 0
  %1521 = vmatprep.subr.bf16.mxu0 0
  %1522 = vmatpush1.bf16.xpose.msra.mxu0 0
  %1523 = vmatprep.subr.bf16.mxu0 0
  %1524 = vmatpush1.bf16.xpose.msra.mxu0 0
  %1525 = vmatprep.subr.bf16.mxu0 0
  %1526 = vmatpush1.bf16.xpose.msra.mxu0 0
  %1527 = vmatprep.mubr.bf16.mxu0 0
  %1528 = vmatmul.mubr.bf16.gmra.mrb[0].mxu0 %v1490
  %v1529 = vpop.f32.mrb[0].mxu0
  %v1530 = vadd.f32 0.0, %v1529
  %v1531 = vpop.f32.mrb[0].mxu0
  %v1532 = vpop.f32.mrb[0].mxu0
  %v1533 = vadd.f32 0.0, %v1532
  %v1534 = vpop.f32.mrb[0].mxu0
  %1535 = vdwg.mxu0
  %1537 = vrot.lane.b32.xlu0 %v376, 96
  %v1538 = vpop.permute.xlu0 %1537
  %v1540 = vsel %vm388, %v376, 0
  %v1543 = vsel %vm388, %v1538, 0
  %1545 = vmatprep.subr.bf16.mxu0 0
  %1546 = vmatpush1.bf16.xpose.msra.mxu0 %v1543
  %1547 = vmatprep.subr.bf16.mxu0 0
  %1548 = vmatpush1.bf16.xpose.msra.mxu0 0
  %1549 = vmatprep.subr.bf16.mxu0 0
  %1550 = vmatpush1.bf16.xpose.msra.mxu0 0
  %1551 = vmatprep.subr.bf16.mxu0 0
  %1552 = vmatpush1.bf16.xpose.msra.mxu0 0
  %1553 = vmatprep.subr.bf16.mxu0 0
  %1554 = vmatpush1.bf16.xpose.msra.mxu0 0
  %1555 = vmatprep.subr.bf16.mxu0 0
  %1556 = vmatpush1.bf16.xpose.msra.mxu0 0
  %1557 = vmatprep.subr.bf16.mxu0 0
  %1558 = vmatpush1.bf16.xpose.msra.mxu0 0
  %1559 = vmatprep.subr.bf16.mxu0 0
  %1560 = vmatpush1.bf16.xpose.msra.mxu0 0
  %1561 = vmatprep.subr.bf16.mxu0 0
  %1562 = vmatpush1.bf16.xpose.msra.mxu0 0
  %1563 = vmatprep.subr.bf16.mxu0 0
  %1564 = vmatpush1.bf16.xpose.msra.mxu0 0
  %1565 = vmatprep.subr.bf16.mxu0 0
  %1566 = vmatpush1.bf16.xpose.msra.mxu0 0
  %1567 = vmatprep.subr.bf16.mxu0 0
  %1568 = vmatpush1.bf16.xpose.msra.mxu0 0
  %1569 = vmatprep.subr.bf16.mxu0 0
  %1570 = vmatpush1.bf16.xpose.msra.mxu0 0
  %1571 = vmatprep.subr.bf16.mxu0 0
  %1572 = vmatpush1.bf16.xpose.msra.mxu0 0
  %1573 = vmatprep.subr.bf16.mxu0 0
  %1574 = vmatpush1.bf16.xpose.msra.mxu0 0
  %1575 = vmatprep.subr.bf16.mxu0 0
  %1576 = vmatpush1.bf16.xpose.msra.mxu0 0
  %1577 = vmatprep.mubr.bf16.mxu0 0
  %1578 = vmatmul.mubr.bf16.gmra.mrb[0].mxu0 %v1540
  %v1579 = vpop.f32.mrb[0].mxu0
  %v1580 = vadd.f32 0.0, %v1579
  %v1581 = vpop.f32.mrb[0].mxu0
  %v1582 = vpop.f32.mrb[0].mxu0
  %v1583 = vadd.f32 0.0, %v1582
  %v1584 = vpop.f32.mrb[0].mxu0
  %1585 = vdwg.mxu0
  %1587 = vrot.lane.b32.xlu0 %v377, 96
  %v1588 = vpop.permute.xlu0 %1587
  %v1590 = vsel %vm388, %v377, 0
  %v1593 = vsel %vm388, %v1588, 0
  %1595 = vmatprep.subr.bf16.mxu0 0
  %1596 = vmatpush1.bf16.xpose.msra.mxu0 %v1593
  %1597 = vmatprep.subr.bf16.mxu0 0
  %1598 = vmatpush1.bf16.xpose.msra.mxu0 0
  %1599 = vmatprep.subr.bf16.mxu0 0
  %1600 = vmatpush1.bf16.xpose.msra.mxu0 0
  %1601 = vmatprep.subr.bf16.mxu0 0
  %1602 = vmatpush1.bf16.xpose.msra.mxu0 0
  %1603 = vmatprep.subr.bf16.mxu0 0
  %1604 = vmatpush1.bf16.xpose.msra.mxu0 0
  %1605 = vmatprep.subr.bf16.mxu0 0
  %1606 = vmatpush1.bf16.xpose.msra.mxu0 0
  %1607 = vmatprep.subr.bf16.mxu0 0
  %1608 = vmatpush1.bf16.xpose.msra.mxu0 0
  %1609 = vmatprep.subr.bf16.mxu0 0
  %1610 = vmatpush1.bf16.xpose.msra.mxu0 0
  %1611 = vmatprep.subr.bf16.mxu0 0
  %1612 = vmatpush1.bf16.xpose.msra.mxu0 0
  %1613 = vmatprep.subr.bf16.mxu0 0
  %1614 = vmatpush1.bf16.xpose.msra.mxu0 0
  %1615 = vmatprep.subr.bf16.mxu0 0
  %1616 = vmatpush1.bf16.xpose.msra.mxu0 0
  %1617 = vmatprep.subr.bf16.mxu0 0
  %1618 = vmatpush1.bf16.xpose.msra.mxu0 0
  %1619 = vmatprep.subr.bf16.mxu0 0
  %1620 = vmatpush1.bf16.xpose.msra.mxu0 0
  %1621 = vmatprep.subr.bf16.mxu0 0
  %1622 = vmatpush1.bf16.xpose.msra.mxu0 0
  %1623 = vmatprep.subr.bf16.mxu0 0
  %1624 = vmatpush1.bf16.xpose.msra.mxu0 0
  %1625 = vmatprep.subr.bf16.mxu0 0
  %1626 = vmatpush1.bf16.xpose.msra.mxu0 0
  %1627 = vmatprep.mubr.bf16.mxu0 0
  %1628 = vmatmul.mubr.bf16.gmra.mrb[0].mxu0 %v1590
  %v1629 = vpop.f32.mrb[0].mxu0
  %v1630 = vadd.f32 0.0, %v1629
  %v1631 = vpop.f32.mrb[0].mxu0
  %v1632 = vpop.f32.mrb[0].mxu0
  %v1633 = vadd.f32 0.0, %v1632
  %v1634 = vpop.f32.mrb[0].mxu0
  %1635 = vdwg.mxu0
  %1637 = vrot.lane.b32.xlu0 %v378, 96
  %v1638 = vpop.permute.xlu0 %1637
  %v1640 = vsel %vm388, %v378, 0
  %v1643 = vsel %vm388, %v1638, 0
  %1645 = vmatprep.subr.bf16.mxu0 0
  %1646 = vmatpush1.bf16.xpose.msra.mxu0 %v1643
  %1647 = vmatprep.subr.bf16.mxu0 0
  %1648 = vmatpush1.bf16.xpose.msra.mxu0 0
  %1649 = vmatprep.subr.bf16.mxu0 0
  %1650 = vmatpush1.bf16.xpose.msra.mxu0 0
  %1651 = vmatprep.subr.bf16.mxu0 0
  %1652 = vmatpush1.bf16.xpose.msra.mxu0 0
  %1653 = vmatprep.subr.bf16.mxu0 0
  %1654 = vmatpush1.bf16.xpose.msra.mxu0 0
  %1655 = vmatprep.subr.bf16.mxu0 0
  %1656 = vmatpush1.bf16.xpose.msra.mxu0 0
  %1657 = vmatprep.subr.bf16.mxu0 0
  %1658 = vmatpush1.bf16.xpose.msra.mxu0 0
  %1659 = vmatprep.subr.bf16.mxu0 0
  %1660 = vmatpush1.bf16.xpose.msra.mxu0 0
  %1661 = vmatprep.subr.bf16.mxu0 0
  %1662 = vmatpush1.bf16.xpose.msra.mxu0 0
  %1663 = vmatprep.subr.bf16.mxu0 0
  %1664 = vmatpush1.bf16.xpose.msra.mxu0 0
  %1665 = vmatprep.subr.bf16.mxu0 0
  %1666 = vmatpush1.bf16.xpose.msra.mxu0 0
  %1667 = vmatprep.subr.bf16.mxu0 0
  %1668 = vmatpush1.bf16.xpose.msra.mxu0 0
  %1669 = vmatprep.subr.bf16.mxu0 0
  %1670 = vmatpush1.bf16.xpose.msra.mxu0 0
  %1671 = vmatprep.subr.bf16.mxu0 0
  %1672 = vmatpush1.bf16.xpose.msra.mxu0 0
  %1673 = vmatprep.subr.bf16.mxu0 0
  %1674 = vmatpush1.bf16.xpose.msra.mxu0 0
  %1675 = vmatprep.subr.bf16.mxu0 0
  %1676 = vmatpush1.bf16.xpose.msra.mxu0 0
  %1677 = vmatprep.mubr.bf16.mxu0 0
  %1678 = vmatmul.mubr.bf16.gmra.mrb[0].mxu0 %v1640
  %v1679 = vpop.f32.mrb[0].mxu0
  %v1680 = vadd.f32 0.0, %v1679
  %v1681 = vpop.f32.mrb[0].mxu0
  %v1682 = vpop.f32.mrb[0].mxu0
  %v1683 = vadd.f32 0.0, %v1682
  %v1684 = vpop.f32.mrb[0].mxu0
  %1685 = vdwg.mxu0
  %1687 = vrot.lane.b32.xlu0 %v379, 96
  %v1688 = vpop.permute.xlu0 %1687
  %v1690 = vsel %vm388, %v379, 0
  %v1693 = vsel %vm388, %v1688, 0
  %1695 = vmatprep.subr.bf16.mxu0 0
  %1696 = vmatpush1.bf16.xpose.msra.mxu0 %v1693
  %1697 = vmatprep.subr.bf16.mxu0 0
  %1698 = vmatpush1.bf16.xpose.msra.mxu0 0
  %1699 = vmatprep.subr.bf16.mxu0 0
  %1700 = vmatpush1.bf16.xpose.msra.mxu0 0
  %1701 = vmatprep.subr.bf16.mxu0 0
  %1702 = vmatpush1.bf16.xpose.msra.mxu0 0
  %1703 = vmatprep.subr.bf16.mxu0 0
  %1704 = vmatpush1.bf16.xpose.msra.mxu0 0
  %1705 = vmatprep.subr.bf16.mxu0 0
  %1706 = vmatpush1.bf16.xpose.msra.mxu0 0
  %1707 = vmatprep.subr.bf16.mxu0 0
  %1708 = vmatpush1.bf16.xpose.msra.mxu0 0
  %1709 = vmatprep.subr.bf16.mxu0 0
  %1710 = vmatpush1.bf16.xpose.msra.mxu0 0
  %1711 = vmatprep.subr.bf16.mxu0 0
  %1712 = vmatpush1.bf16.xpose.msra.mxu0 0
  %1713 = vmatprep.subr.bf16.mxu0 0
  %1714 = vmatpush1.bf16.xpose.msra.mxu0 0
  %1715 = vmatprep.subr.bf16.mxu0 0
  %1716 = vmatpush1.bf16.xpose.msra.mxu0 0
  %1717 = vmatprep.subr.bf16.mxu0 0
  %1718 = vmatpush1.bf16.xpose.msra.mxu0 0
  %1719 = vmatprep.subr.bf16.mxu0 0
  %1720 = vmatpush1.bf16.xpose.msra.mxu0 0
  %1721 = vmatprep.subr.bf16.mxu0 0
  %1722 = vmatpush1.bf16.xpose.msra.mxu0 0
  %1723 = vmatprep.subr.bf16.mxu0 0
  %1724 = vmatpush1.bf16.xpose.msra.mxu0 0
  %1725 = vmatprep.subr.bf16.mxu0 0
  %1726 = vmatpush1.bf16.xpose.msra.mxu0 0
  %1727 = vmatprep.mubr.bf16.mxu0 0
  %1728 = vmatmul.mubr.bf16.gmra.mrb[0].mxu0 %v1690
  %v1729 = vpop.f32.mrb[0].mxu0
  %v1730 = vadd.f32 0.0, %v1729
  %v1731 = vpop.f32.mrb[0].mxu0
  %v1732 = vpop.f32.mrb[0].mxu0
  %v1733 = vadd.f32 0.0, %v1732
  %v1734 = vpop.f32.mrb[0].mxu0
  %1735 = vdwg.mxu0
  %1737 = vrot.lane.b32.xlu0 %v380, 96
  %v1738 = vpop.permute.xlu0 %1737
  %v1740 = vsel %vm388, %v380, 0
  %v1743 = vsel %vm388, %v1738, 0
  %1745 = vmatprep.subr.bf16.mxu0 0
  %1746 = vmatpush1.bf16.xpose.msra.mxu0 %v1743
  %1747 = vmatprep.subr.bf16.mxu0 0
  %1748 = vmatpush1.bf16.xpose.msra.mxu0 0
  %1749 = vmatprep.subr.bf16.mxu0 0
  %1750 = vmatpush1.bf16.xpose.msra.mxu0 0
  %1751 = vmatprep.subr.bf16.mxu0 0
  %1752 = vmatpush1.bf16.xpose.msra.mxu0 0
  %1753 = vmatprep.subr.bf16.mxu0 0
  %1754 = vmatpush1.bf16.xpose.msra.mxu0 0
  %1755 = vmatprep.subr.bf16.mxu0 0
  %1756 = vmatpush1.bf16.xpose.msra.mxu0 0
  %1757 = vmatprep.subr.bf16.mxu0 0
  %1758 = vmatpush1.bf16.xpose.msra.mxu0 0
  %1759 = vmatprep.subr.bf16.mxu0 0
  %1760 = vmatpush1.bf16.xpose.msra.mxu0 0
  %1761 = vmatprep.subr.bf16.mxu0 0
  %1762 = vmatpush1.bf16.xpose.msra.mxu0 0
  %1763 = vmatprep.subr.bf16.mxu0 0
  %1764 = vmatpush1.bf16.xpose.msra.mxu0 0
  %1765 = vmatprep.subr.bf16.mxu0 0
  %1766 = vmatpush1.bf16.xpose.msra.mxu0 0
  %1767 = vmatprep.subr.bf16.mxu0 0
  %1768 = vmatpush1.bf16.xpose.msra.mxu0 0
  %1769 = vmatprep.subr.bf16.mxu0 0
  %1770 = vmatpush1.bf16.xpose.msra.mxu0 0
  %1771 = vmatprep.subr.bf16.mxu0 0
  %1772 = vmatpush1.bf16.xpose.msra.mxu0 0
  %1773 = vmatprep.subr.bf16.mxu0 0
  %1774 = vmatpush1.bf16.xpose.msra.mxu0 0
  %1775 = vmatprep.subr.bf16.mxu0 0
  %1776 = vmatpush1.bf16.xpose.msra.mxu0 0
  %1777 = vmatprep.mubr.bf16.mxu0 0
  %1778 = vmatmul.mubr.bf16.gmra.mrb[0].mxu0 %v1740
  %v1779 = vpop.f32.mrb[0].mxu0
  %v1780 = vadd.f32 0.0, %v1779
  %v1781 = vpop.f32.mrb[0].mxu0
  %v1782 = vpop.f32.mrb[0].mxu0
  %v1783 = vadd.f32 0.0, %v1782
  %v1784 = vpop.f32.mrb[0].mxu0
  %1785 = vdwg.mxu0
  %1787 = vrot.lane.b32.xlu0 %v381, 96
  %v1788 = vpop.permute.xlu0 %1787
  %v1790 = vsel %vm388, %v381, 0
  %v1793 = vsel %vm388, %v1788, 0
  %1795 = vmatprep.subr.bf16.mxu0 0
  %1796 = vmatpush1.bf16.xpose.msra.mxu0 %v1793
  %1797 = vmatprep.subr.bf16.mxu0 0
  %1798 = vmatpush1.bf16.xpose.msra.mxu0 0
  %1799 = vmatprep.subr.bf16.mxu0 0
  %1800 = vmatpush1.bf16.xpose.msra.mxu0 0
  %1801 = vmatprep.subr.bf16.mxu0 0
  %1802 = vmatpush1.bf16.xpose.msra.mxu0 0
  %1803 = vmatprep.subr.bf16.mxu0 0
  %1804 = vmatpush1.bf16.xpose.msra.mxu0 0
  %1805 = vmatprep.subr.bf16.mxu0 0
  %1806 = vmatpush1.bf16.xpose.msra.mxu0 0
  %1807 = vmatprep.subr.bf16.mxu0 0
  %1808 = vmatpush1.bf16.xpose.msra.mxu0 0
  %1809 = vmatprep.subr.bf16.mxu0 0
  %1810 = vmatpush1.bf16.xpose.msra.mxu0 0
  %1811 = vmatprep.subr.bf16.mxu0 0
  %1812 = vmatpush1.bf16.xpose.msra.mxu0 0
  %1813 = vmatprep.subr.bf16.mxu0 0
  %1814 = vmatpush1.bf16.xpose.msra.mxu0 0
  %1815 = vmatprep.subr.bf16.mxu0 0
  %1816 = vmatpush1.bf16.xpose.msra.mxu0 0
  %1817 = vmatprep.subr.bf16.mxu0 0
  %1818 = vmatpush1.bf16.xpose.msra.mxu0 0
  %1819 = vmatprep.subr.bf16.mxu0 0
  %1820 = vmatpush1.bf16.xpose.msra.mxu0 0
  %1821 = vmatprep.subr.bf16.mxu0 0
  %1822 = vmatpush1.bf16.xpose.msra.mxu0 0
  %1823 = vmatprep.subr.bf16.mxu0 0
  %1824 = vmatpush1.bf16.xpose.msra.mxu0 0
  %1825 = vmatprep.subr.bf16.mxu0 0
  %1826 = vmatpush1.bf16.xpose.msra.mxu0 0
  %1827 = vmatprep.mubr.bf16.mxu0 0
  %1828 = vmatmul.mubr.bf16.gmra.mrb[0].mxu0 %v1790
  %v1829 = vpop.f32.mrb[0].mxu0
  %v1830 = vadd.f32 0.0, %v1829
  %v1831 = vpop.f32.mrb[0].mxu0
  %v1832 = vpop.f32.mrb[0].mxu0
  %v1833 = vadd.f32 0.0, %v1832
  %v1834 = vpop.f32.mrb[0].mxu0
  %1835 = vdwg.mxu0
  %1837 = vrot.lane.b32.xlu0 %v382, 96
  %v1838 = vpop.permute.xlu0 %1837
  %v1840 = vsel %vm388, %v382, 0
  %v1843 = vsel %vm388, %v1838, 0
  %1845 = vmatprep.subr.bf16.mxu0 0
  %1846 = vmatpush1.bf16.xpose.msra.mxu0 %v1843
  %1847 = vmatprep.subr.bf16.mxu0 0
  %1848 = vmatpush1.bf16.xpose.msra.mxu0 0
  %1849 = vmatprep.subr.bf16.mxu0 0
  %1850 = vmatpush1.bf16.xpose.msra.mxu0 0
  %1851 = vmatprep.subr.bf16.mxu0 0
  %1852 = vmatpush1.bf16.xpose.msra.mxu0 0
  %1853 = vmatprep.subr.bf16.mxu0 0
  %1854 = vmatpush1.bf16.xpose.msra.mxu0 0
  %1855 = vmatprep.subr.bf16.mxu0 0
  %1856 = vmatpush1.bf16.xpose.msra.mxu0 0
  %1857 = vmatprep.subr.bf16.mxu0 0
  %1858 = vmatpush1.bf16.xpose.msra.mxu0 0
  %1859 = vmatprep.subr.bf16.mxu0 0
  %1860 = vmatpush1.bf16.xpose.msra.mxu0 0
  %1861 = vmatprep.subr.bf16.mxu0 0
  %1862 = vmatpush1.bf16.xpose.msra.mxu0 0
  %1863 = vmatprep.subr.bf16.mxu0 0
  %1864 = vmatpush1.bf16.xpose.msra.mxu0 0
  %1865 = vmatprep.subr.bf16.mxu0 0
  %1866 = vmatpush1.bf16.xpose.msra.mxu0 0
  %1867 = vmatprep.subr.bf16.mxu0 0
  %1868 = vmatpush1.bf16.xpose.msra.mxu0 0
  %1869 = vmatprep.subr.bf16.mxu0 0
  %1870 = vmatpush1.bf16.xpose.msra.mxu0 0
  %1871 = vmatprep.subr.bf16.mxu0 0
  %1872 = vmatpush1.bf16.xpose.msra.mxu0 0
  %1873 = vmatprep.subr.bf16.mxu0 0
  %1874 = vmatpush1.bf16.xpose.msra.mxu0 0
  %1875 = vmatprep.subr.bf16.mxu0 0
  %1876 = vmatpush1.bf16.xpose.msra.mxu0 0
  %1877 = vmatprep.mubr.bf16.mxu0 0
  %1878 = vmatmul.mubr.bf16.gmra.mrb[0].mxu0 %v1840
  %v1879 = vpop.f32.mrb[0].mxu0
  %v1880 = vadd.f32 0.0, %v1879
  %v1881 = vpop.f32.mrb[0].mxu0
  %v1882 = vpop.f32.mrb[0].mxu0
  %v1883 = vadd.f32 0.0, %v1882
  %v1884 = vpop.f32.mrb[0].mxu0
  %1885 = vdwg.mxu0
  %1887 = vrot.lane.b32.xlu0 %v383, 96
  %v1888 = vpop.permute.xlu0 %1887
  %v1890 = vsel %vm388, %v383, 0
  %v1893 = vsel %vm388, %v1888, 0
  %1895 = vmatprep.subr.bf16.mxu0 0
  %1896 = vmatpush1.bf16.xpose.msra.mxu0 %v1893
  %1897 = vmatprep.subr.bf16.mxu0 0
  %1898 = vmatpush1.bf16.xpose.msra.mxu0 0
  %1899 = vmatprep.subr.bf16.mxu0 0
  %1900 = vmatpush1.bf16.xpose.msra.mxu0 0
  %1901 = vmatprep.subr.bf16.mxu0 0
  %1902 = vmatpush1.bf16.xpose.msra.mxu0 0
  %1903 = vmatprep.subr.bf16.mxu0 0
  %1904 = vmatpush1.bf16.xpose.msra.mxu0 0
  %1905 = vmatprep.subr.bf16.mxu0 0
  %1906 = vmatpush1.bf16.xpose.msra.mxu0 0
  %1907 = vmatprep.subr.bf16.mxu0 0
  %1908 = vmatpush1.bf16.xpose.msra.mxu0 0
  %1909 = vmatprep.subr.bf16.mxu0 0
  %1910 = vmatpush1.bf16.xpose.msra.mxu0 0
  %1911 = vmatprep.subr.bf16.mxu0 0
  %1912 = vmatpush1.bf16.xpose.msra.mxu0 0
  %1913 = vmatprep.subr.bf16.mxu0 0
  %1914 = vmatpush1.bf16.xpose.msra.mxu0 0
  %1915 = vmatprep.subr.bf16.mxu0 0
  %1916 = vmatpush1.bf16.xpose.msra.mxu0 0
  %1917 = vmatprep.subr.bf16.mxu0 0
  %1918 = vmatpush1.bf16.xpose.msra.mxu0 0
  %1919 = vmatprep.subr.bf16.mxu0 0
  %1920 = vmatpush1.bf16.xpose.msra.mxu0 0
  %1921 = vmatprep.subr.bf16.mxu0 0
  %1922 = vmatpush1.bf16.xpose.msra.mxu0 0
  %1923 = vmatprep.subr.bf16.mxu0 0
  %1924 = vmatpush1.bf16.xpose.msra.mxu0 0
  %1925 = vmatprep.subr.bf16.mxu0 0
  %1926 = vmatpush1.bf16.xpose.msra.mxu0 0
  %1927 = vmatprep.mubr.bf16.mxu0 0
  %1928 = vmatmul.mubr.bf16.gmra.mrb[0].mxu0 %v1890
  %v1929 = vpop.f32.mrb[0].mxu0
  %v1930 = vadd.f32 0.0, %v1929
  %v1931 = vpop.f32.mrb[0].mxu0
  %v1932 = vpop.f32.mrb[0].mxu0
  %v1933 = vadd.f32 0.0, %v1932
  %v1934 = vpop.f32.mrb[0].mxu0
  %1935 = vdwg.mxu0
  %1937 = vrot.lane.b32.xlu0 %v384, 96
  %v1938 = vpop.permute.xlu0 %1937
  %v1940 = vsel %vm388, %v384, 0
  %v1943 = vsel %vm388, %v1938, 0
  %1945 = vmatprep.subr.bf16.mxu0 0
  %1946 = vmatpush1.bf16.xpose.msra.mxu0 %v1943
  %1947 = vmatprep.subr.bf16.mxu0 0
  %1948 = vmatpush1.bf16.xpose.msra.mxu0 0
  %1949 = vmatprep.subr.bf16.mxu0 0
  %1950 = vmatpush1.bf16.xpose.msra.mxu0 0
  %1951 = vmatprep.subr.bf16.mxu0 0
  %1952 = vmatpush1.bf16.xpose.msra.mxu0 0
  %1953 = vmatprep.subr.bf16.mxu0 0
  %1954 = vmatpush1.bf16.xpose.msra.mxu0 0
  %1955 = vmatprep.subr.bf16.mxu0 0
  %1956 = vmatpush1.bf16.xpose.msra.mxu0 0
  %1957 = vmatprep.subr.bf16.mxu0 0
  %1958 = vmatpush1.bf16.xpose.msra.mxu0 0
  %1959 = vmatprep.subr.bf16.mxu0 0
  %1960 = vmatpush1.bf16.xpose.msra.mxu0 0
  %1961 = vmatprep.subr.bf16.mxu0 0
  %1962 = vmatpush1.bf16.xpose.msra.mxu0 0
  %1963 = vmatprep.subr.bf16.mxu0 0
  %1964 = vmatpush1.bf16.xpose.msra.mxu0 0
  %1965 = vmatprep.subr.bf16.mxu0 0
  %1966 = vmatpush1.bf16.xpose.msra.mxu0 0
  %1967 = vmatprep.subr.bf16.mxu0 0
  %1968 = vmatpush1.bf16.xpose.msra.mxu0 0
  %1969 = vmatprep.subr.bf16.mxu0 0
  %1970 = vmatpush1.bf16.xpose.msra.mxu0 0
  %1971 = vmatprep.subr.bf16.mxu0 0
  %1972 = vmatpush1.bf16.xpose.msra.mxu0 0
  %1973 = vmatprep.subr.bf16.mxu0 0
  %1974 = vmatpush1.bf16.xpose.msra.mxu0 0
  %1975 = vmatprep.subr.bf16.mxu0 0
  %1976 = vmatpush1.bf16.xpose.msra.mxu0 0
  %1977 = vmatprep.mubr.bf16.mxu0 0
  %1978 = vmatmul.mubr.bf16.gmra.mrb[0].mxu0 %v1940
  %v1979 = vpop.f32.mrb[0].mxu0
  %v1980 = vadd.f32 0.0, %v1979
  %v1981 = vpop.f32.mrb[0].mxu0
  %v1982 = vpop.f32.mrb[0].mxu0
  %v1983 = vadd.f32 0.0, %v1982
  %v1984 = vpop.f32.mrb[0].mxu0
  %1985 = vdwg.mxu0
  %v1986 = vld [vmem:[%s5] sm:$0xff]
  %v1987 = vld [vmem:[%s5 + $0x8] sm:$0xff]
  %v1988 = vld [vmem:[%s5 + $0x10] sm:$0xff]
  %v1989 = vld [vmem:[%s5 + $0x18] sm:$0xff]
  %v1990 = vld [vmem:[%s5 + $0x20] sm:$0xff]
  %v1991 = vld [vmem:[%s5 + $0x28] sm:$0xff]
  %v1992 = vld [vmem:[%s5 + $0x30] sm:$0xff]
  %v1993 = vld [vmem:[%s5 + $0x38] sm:$0xff]
  %v1994 = vadd.f32 %v430, %v1986
  %v1995 = vadd.f32 %v433, %v1987
  %v1996 = vadd.f32 %v480, %v1986
  %v1997 = vadd.f32 %v483, %v1987
  %v1998 = vadd.f32 %v530, %v1986
  %v1999 = vadd.f32 %v533, %v1987
  %v2000 = vadd.f32 %v580, %v1986
  %v2001 = vadd.f32 %v583, %v1987
  %v2002 = vadd.f32 %v630, %v1986
  %v2003 = vadd.f32 %v633, %v1987
  %v2004 = vadd.f32 %v680, %v1986
  %v2005 = vadd.f32 %v683, %v1987
  %v2006 = vadd.f32 %v730, %v1986
  %v2007 = vadd.f32 %v733, %v1987
  %v2008 = vadd.f32 %v780, %v1986
  %v2009 = vadd.f32 %v783, %v1987
  %v2010 = vadd.f32 %v830, %v1988
  %v2011 = vadd.f32 %v833, %v1989
  %v2012 = vadd.f32 %v880, %v1988
  %v2013 = vadd.f32 %v883, %v1989
  %v2014 = vadd.f32 %v930, %v1988
  %v2015 = vadd.f32 %v933, %v1989
  %v2016 = vadd.f32 %v980, %v1988
  %v2017 = vadd.f32 %v983, %v1989
  %v2018 = vadd.f32 %v1030, %v1988
  %v2019 = vadd.f32 %v1033, %v1989
  %v2020 = vadd.f32 %v1080, %v1988
  %v2021 = vadd.f32 %v1083, %v1989
  %v2022 = vadd.f32 %v1130, %v1988
  %v2023 = vadd.f32 %v1133, %v1989
  %v2024 = vadd.f32 %v1180, %v1988
  %v2025 = vadd.f32 %v1183, %v1989
  %v2026 = vadd.f32 %v1230, %v1990
  %v2027 = vadd.f32 %v1233, %v1991
  %v2028 = vadd.f32 %v1280, %v1990
  %v2029 = vadd.f32 %v1283, %v1991
  %v2030 = vadd.f32 %v1330, %v1990
  %v2031 = vadd.f32 %v1333, %v1991
  %v2032 = vadd.f32 %v1380, %v1990
  %v2033 = vadd.f32 %v1383, %v1991
  %v2034 = vadd.f32 %v1430, %v1990
  %v2035 = vadd.f32 %v1433, %v1991
  %v2036 = vadd.f32 %v1480, %v1990
  %v2037 = vadd.f32 %v1483, %v1991
  %v2038 = vadd.f32 %v1530, %v1990
  %v2039 = vadd.f32 %v1533, %v1991
  %v2040 = vadd.f32 %v1580, %v1990
  %v2041 = vadd.f32 %v1583, %v1991
  %v2042 = vadd.f32 %v1630, %v1992
  %v2043 = vadd.f32 %v1633, %v1993
  %v2044 = vadd.f32 %v1680, %v1992
  %v2045 = vadd.f32 %v1683, %v1993
  %v2046 = vadd.f32 %v1730, %v1992
  %v2047 = vadd.f32 %v1733, %v1993
  %v2048 = vadd.f32 %v1780, %v1992
  %v2049 = vadd.f32 %v1783, %v1993
  %v2050 = vadd.f32 %v1830, %v1992
  %v2051 = vadd.f32 %v1833, %v1993
  %v2052 = vadd.f32 %v1880, %v1992
  %v2053 = vadd.f32 %v1883, %v1993
  %v2054 = vadd.f32 %v1930, %v1992
  %v2055 = vadd.f32 %v1933, %v1993
  %v2056 = vadd.f32 %v1980, %v1992
  %v2057 = vadd.f32 %v1983, %v1993
  %vm2058 = vcmask 130048
  %v2059 = vsel %vm2058, %v1994, -inf
  %2060 = vmax.xlane.f32.xlu0 %v2059
  %v2061 = vpop.xlane.xlu0 %2060
  %v2062 = vsel %vm2058, %v1995, -inf
  %2063 = vmax.xlane.f32.xlu0 %v2062
  %v2064 = vpop.xlane.xlu0 %2063
  %v2065 = vsel %vm2058, %v1996, -inf
  %2066 = vmax.xlane.f32.xlu0 %v2065
  %v2067 = vpop.xlane.xlu0 %2066
  %v2068 = vsel %vm2058, %v1997, -inf
  %2069 = vmax.xlane.f32.xlu0 %v2068
  %v2070 = vpop.xlane.xlu0 %2069
  %v2071 = vsel %vm2058, %v1998, -inf
  %2072 = vmax.xlane.f32.xlu0 %v2071
  %v2073 = vpop.xlane.xlu0 %2072
  %v2074 = vsel %vm2058, %v1999, -inf
  %2075 = vmax.xlane.f32.xlu0 %v2074
  %v2076 = vpop.xlane.xlu0 %2075
  %v2077 = vsel %vm2058, %v2000, -inf
  %2078 = vmax.xlane.f32.xlu0 %v2077
  %v2079 = vpop.xlane.xlu0 %2078
  %v2080 = vsel %vm2058, %v2001, -inf
  %2081 = vmax.xlane.f32.xlu0 %v2080
  %v2082 = vpop.xlane.xlu0 %2081
  %v2083 = vsel %vm2058, %v2002, -inf
  %2084 = vmax.xlane.f32.xlu0 %v2083
  %v2085 = vpop.xlane.xlu0 %2084
  %v2086 = vsel %vm2058, %v2003, -inf
  %2087 = vmax.xlane.f32.xlu0 %v2086
  %v2088 = vpop.xlane.xlu0 %2087
  %v2089 = vsel %vm2058, %v2004, -inf
  %2090 = vmax.xlane.f32.xlu0 %v2089
  %v2091 = vpop.xlane.xlu0 %2090
  %v2092 = vsel %vm2058, %v2005, -inf
  %2093 = vmax.xlane.f32.xlu0 %v2092
  %v2094 = vpop.xlane.xlu0 %2093
  %v2095 = vsel %vm2058, %v2006, -inf
  %2096 = vmax.xlane.f32.xlu0 %v2095
  %v2097 = vpop.xlane.xlu0 %2096
  %v2098 = vsel %vm2058, %v2007, -inf
  %2099 = vmax.xlane.f32.xlu0 %v2098
  %v2100 = vpop.xlane.xlu0 %2099
  %v2101 = vsel %vm2058, %v2008, -inf
  %2102 = vmax.xlane.f32.xlu0 %v2101
  %v2103 = vpop.xlane.xlu0 %2102
  %v2104 = vsel %vm2058, %v2009, -inf
  %2105 = vmax.xlane.f32.xlu0 %v2104
  %v2106 = vpop.xlane.xlu0 %2105
  %v2107 = vsel %vm2058, %v2010, -inf
  %2108 = vmax.xlane.f32.xlu0 %v2107
  %v2109 = vpop.xlane.xlu0 %2108
  %v2110 = vsel %vm2058, %v2011, -inf
  %2111 = vmax.xlane.f32.xlu0 %v2110
  %v2112 = vpop.xlane.xlu0 %2111
  %v2113 = vsel %vm2058, %v2012, -inf
  %2114 = vmax.xlane.f32.xlu0 %v2113
  %v2115 = vpop.xlane.xlu0 %2114
  %v2116 = vsel %vm2058, %v2013, -inf
  %2117 = vmax.xlane.f32.xlu0 %v2116
  %v2118 = vpop.xlane.xlu0 %2117
  %v2119 = vsel %vm2058, %v2014, -inf
  %2120 = vmax.xlane.f32.xlu0 %v2119
  %v2121 = vpop.xlane.xlu0 %2120
  %v2122 = vsel %vm2058, %v2015, -inf
  %2123 = vmax.xlane.f32.xlu0 %v2122
  %v2124 = vpop.xlane.xlu0 %2123
  %v2125 = vsel %vm2058, %v2016, -inf
  %2126 = vmax.xlane.f32.xlu0 %v2125
  %v2127 = vpop.xlane.xlu0 %2126
  %v2128 = vsel %vm2058, %v2017, -inf
  %2129 = vmax.xlane.f32.xlu0 %v2128
  %v2130 = vpop.xlane.xlu0 %2129
  %v2131 = vsel %vm2058, %v2018, -inf
  %2132 = vmax.xlane.f32.xlu0 %v2131
  %v2133 = vpop.xlane.xlu0 %2132
  %v2134 = vsel %vm2058, %v2019, -inf
  %2135 = vmax.xlane.f32.xlu0 %v2134
  %v2136 = vpop.xlane.xlu0 %2135
  %v2137 = vsel %vm2058, %v2020, -inf
  %2138 = vmax.xlane.f32.xlu0 %v2137
  %v2139 = vpop.xlane.xlu0 %2138
  %v2140 = vsel %vm2058, %v2021, -inf
  %2141 = vmax.xlane.f32.xlu0 %v2140
  %v2142 = vpop.xlane.xlu0 %2141
  %v2143 = vsel %vm2058, %v2022, -inf
  %2144 = vmax.xlane.f32.xlu0 %v2143
  %v2145 = vpop.xlane.xlu0 %2144
  %v2146 = vsel %vm2058, %v2023, -inf
  %2147 = vmax.xlane.f32.xlu0 %v2146
  %v2148 = vpop.xlane.xlu0 %2147
  %v2149 = vsel %vm2058, %v2024, -inf
  %2150 = vmax.xlane.f32.xlu0 %v2149
  %v2151 = vpop.xlane.xlu0 %2150
  %v2152 = vsel %vm2058, %v2025, -inf
  %2153 = vmax.xlane.f32.xlu0 %v2152
  %v2154 = vpop.xlane.xlu0 %2153
  %v2155 = vsel %vm2058, %v2026, -inf
  %2156 = vmax.xlane.f32.xlu0 %v2155
  %v2157 = vpop.xlane.xlu0 %2156
  %v2158 = vsel %vm2058, %v2027, -inf
  %2159 = vmax.xlane.f32.xlu0 %v2158
  %v2160 = vpop.xlane.xlu0 %2159
  %v2161 = vsel %vm2058, %v2028, -inf
  %2162 = vmax.xlane.f32.xlu0 %v2161
  %v2163 = vpop.xlane.xlu0 %2162
  %v2164 = vsel %vm2058, %v2029, -inf
  %2165 = vmax.xlane.f32.xlu0 %v2164
  %v2166 = vpop.xlane.xlu0 %2165
  %v2167 = vsel %vm2058, %v2030, -inf
  %2168 = vmax.xlane.f32.xlu0 %v2167
  %v2169 = vpop.xlane.xlu0 %2168
  %v2170 = vsel %vm2058, %v2031, -inf
  %2171 = vmax.xlane.f32.xlu0 %v2170
  %v2172 = vpop.xlane.xlu0 %2171
  %v2173 = vsel %vm2058, %v2032, -inf
  %2174 = vmax.xlane.f32.xlu0 %v2173
  %v2175 = vpop.xlane.xlu0 %2174
  %v2176 = vsel %vm2058, %v2033, -inf
  %2177 = vmax.xlane.f32.xlu0 %v2176
  %v2178 = vpop.xlane.xlu0 %2177
  %v2179 = vsel %vm2058, %v2034, -inf
  %2180 = vmax.xlane.f32.xlu0 %v2179
  %v2181 = vpop.xlane.xlu0 %2180
  %v2182 = vsel %vm2058, %v2035, -inf
  %2183 = vmax.xlane.f32.xlu0 %v2182
  %v2184 = vpop.xlane.xlu0 %2183
  %v2185 = vsel %vm2058, %v2036, -inf
  %2186 = vmax.xlane.f32.xlu0 %v2185
  %v2187 = vpop.xlane.xlu0 %2186
  %v2188 = vsel %vm2058, %v2037, -inf
  %2189 = vmax.xlane.f32.xlu0 %v2188
  %v2190 = vpop.xlane.xlu0 %2189
  %v2191 = vsel %vm2058, %v2038, -inf
  %2192 = vmax.xlane.f32.xlu0 %v2191
  %v2193 = vpop.xlane.xlu0 %2192
  %v2194 = vsel %vm2058, %v2039, -inf
  %2195 = vmax.xlane.f32.xlu0 %v2194
  %v2196 = vpop.xlane.xlu0 %2195
  %v2197 = vsel %vm2058, %v2040, -inf
  %2198 = vmax.xlane.f32.xlu0 %v2197
  %v2199 = vpop.xlane.xlu0 %2198
  %v2200 = vsel %vm2058, %v2041, -inf
  %2201 = vmax.xlane.f32.xlu0 %v2200
  %v2202 = vpop.xlane.xlu0 %2201
  %v2203 = vsel %vm2058, %v2042, -inf
  %2204 = vmax.xlane.f32.xlu0 %v2203
  %v2205 = vpop.xlane.xlu0 %2204
  %v2206 = vsel %vm2058, %v2043, -inf
  %2207 = vmax.xlane.f32.xlu0 %v2206
  %v2208 = vpop.xlane.xlu0 %2207
  %v2209 = vsel %vm2058, %v2044, -inf
  %2210 = vmax.xlane.f32.xlu0 %v2209
  %v2211 = vpop.xlane.xlu0 %2210
  %v2212 = vsel %vm2058, %v2045, -inf
  %2213 = vmax.xlane.f32.xlu0 %v2212
  %v2214 = vpop.xlane.xlu0 %2213
  %v2215 = vsel %vm2058, %v2046, -inf
  %2216 = vmax.xlane.f32.xlu0 %v2215
  %v2217 = vpop.xlane.xlu0 %2216
  %v2218 = vsel %vm2058, %v2047, -inf
  %2219 = vmax.xlane.f32.xlu0 %v2218
  %v2220 = vpop.xlane.xlu0 %2219
  %v2221 = vsel %vm2058, %v2048, -inf
  %2222 = vmax.xlane.f32.xlu0 %v2221
  %v2223 = vpop.xlane.xlu0 %2222
  %v2224 = vsel %vm2058, %v2049, -inf
  %2225 = vmax.xlane.f32.xlu0 %v2224
  %v2226 = vpop.xlane.xlu0 %2225
  %v2227 = vsel %vm2058, %v2050, -inf
  %2228 = vmax.xlane.f32.xlu0 %v2227
  %v2229 = vpop.xlane.xlu0 %2228
  %v2230 = vsel %vm2058, %v2051, -inf
  %2231 = vmax.xlane.f32.xlu0 %v2230
  %v2232 = vpop.xlane.xlu0 %2231
  %v2233 = vsel %vm2058, %v2052, -inf
  %2234 = vmax.xlane.f32.xlu0 %v2233
  %v2235 = vpop.xlane.xlu0 %2234
  %v2236 = vsel %vm2058, %v2053, -inf
  %2237 = vmax.xlane.f32.xlu0 %v2236
  %v2238 = vpop.xlane.xlu0 %2237
  %v2239 = vsel %vm2058, %v2054, -inf
  %2240 = vmax.xlane.f32.xlu0 %v2239
  %v2241 = vpop.xlane.xlu0 %2240
  %v2242 = vsel %vm2058, %v2055, -inf
  %2243 = vmax.xlane.f32.xlu0 %v2242
  %v2244 = vpop.xlane.xlu0 %2243
  %v2245 = vsel %vm2058, %v2056, -inf
  %2246 = vmax.xlane.f32.xlu0 %v2245
  %v2247 = vpop.xlane.xlu0 %2246
  %v2248 = vsel %vm2058, %v2057, -inf
  %2249 = vmax.xlane.f32.xlu0 %v2248
  %v2250 = vpop.xlane.xlu0 %2249
  %v2251 = vsub.f32 %v1994, %v2061
  %v2252 = vsub.f32 %v1995, %v2064
  %v2253 = vsub.f32 %v1996, %v2067
  %v2254 = vsub.f32 %v1997, %v2070
  %v2255 = vsub.f32 %v1998, %v2073
  %v2256 = vsub.f32 %v1999, %v2076
  %v2257 = vsub.f32 %v2000, %v2079
  %v2258 = vsub.f32 %v2001, %v2082
  %v2259 = vsub.f32 %v2002, %v2085
  %v2260 = vsub.f32 %v2003, %v2088
  %v2261 = vsub.f32 %v2004, %v2091
  %v2262 = vsub.f32 %v2005, %v2094
  %v2263 = vsub.f32 %v2006, %v2097
  %v2264 = vsub.f32 %v2007, %v2100
  %v2265 = vsub.f32 %v2008, %v2103
  %v2266 = vsub.f32 %v2009, %v2106
  %v2267 = vsub.f32 %v2010, %v2109
  %v2268 = vsub.f32 %v2011, %v2112
  %v2269 = vsub.f32 %v2012, %v2115
  %v2270 = vsub.f32 %v2013, %v2118
  %v2271 = vsub.f32 %v2014, %v2121
  %v2272 = vsub.f32 %v2015, %v2124
  %v2273 = vsub.f32 %v2016, %v2127
  %v2274 = vsub.f32 %v2017, %v2130
  %v2275 = vsub.f32 %v2018, %v2133
  %v2276 = vsub.f32 %v2019, %v2136
  %v2277 = vsub.f32 %v2020, %v2139
  %v2278 = vsub.f32 %v2021, %v2142
  %v2279 = vsub.f32 %v2022, %v2145
  %v2280 = vsub.f32 %v2023, %v2148
  %v2281 = vsub.f32 %v2024, %v2151
  %v2282 = vsub.f32 %v2025, %v2154
  %v2283 = vsub.f32 %v2026, %v2157
  %v2284 = vsub.f32 %v2027, %v2160
  %v2285 = vsub.f32 %v2028, %v2163
  %v2286 = vsub.f32 %v2029, %v2166
  %v2287 = vsub.f32 %v2030, %v2169
  %v2288 = vsub.f32 %v2031, %v2172
  %v2289 = vsub.f32 %v2032, %v2175
  %v2290 = vsub.f32 %v2033, %v2178
  %v2291 = vsub.f32 %v2034, %v2181
  %v2292 = vsub.f32 %v2035, %v2184
  %v2293 = vsub.f32 %v2036, %v2187
  %v2294 = vsub.f32 %v2037, %v2190
  %v2295 = vsub.f32 %v2038, %v2193
  %v2296 = vsub.f32 %v2039, %v2196
  %v2297 = vsub.f32 %v2040, %v2199
  %v2298 = vsub.f32 %v2041, %v2202
  %v2299 = vsub.f32 %v2042, %v2205
  %v2300 = vsub.f32 %v2043, %v2208
  %v2301 = vsub.f32 %v2044, %v2211
  %v2302 = vsub.f32 %v2045, %v2214
  %v2303 = vsub.f32 %v2046, %v2217
  %v2304 = vsub.f32 %v2047, %v2220
  %v2305 = vsub.f32 %v2048, %v2223
  %v2306 = vsub.f32 %v2049, %v2226
  %v2307 = vsub.f32 %v2050, %v2229
  %v2308 = vsub.f32 %v2051, %v2232
  %v2309 = vsub.f32 %v2052, %v2235
  %v2310 = vsub.f32 %v2053, %v2238
  %v2311 = vsub.f32 %v2054, %v2241
  %v2312 = vsub.f32 %v2055, %v2244
  %v2313 = vsub.f32 %v2056, %v2247
  %v2314 = vsub.f32 %v2057, %v2250
  %v2315 = vmul.f32 %v2251, 1.442695
  %v2316 = vpow.pop %v2315
  %v2317 = vmul.f32 %v2252, 1.442695
  %v2318 = vpow.pop %v2317
  %v2319 = vmul.f32 %v2253, 1.442695
  %v2320 = vpow.pop %v2319
  %v2321 = vmul.f32 %v2254, 1.442695
  %v2322 = vpow.pop %v2321
  %v2323 = vmul.f32 %v2255, 1.442695
  %v2324 = vpow.pop %v2323
  %v2325 = vmul.f32 %v2256, 1.442695
  %v2326 = vpow.pop %v2325
  %v2327 = vmul.f32 %v2257, 1.442695
  %v2328 = vpow.pop %v2327
  %v2329 = vmul.f32 %v2258, 1.442695
  %v2330 = vpow.pop %v2329
  %v2331 = vmul.f32 %v2259, 1.442695
  %v2332 = vpow.pop %v2331
  %v2333 = vmul.f32 %v2260, 1.442695
  %v2334 = vpow.pop %v2333
  %v2335 = vmul.f32 %v2261, 1.442695
  %v2336 = vpow.pop %v2335
  %v2337 = vmul.f32 %v2262, 1.442695
  %v2338 = vpow.pop %v2337
  %v2339 = vmul.f32 %v2263, 1.442695
  %v2340 = vpow.pop %v2339
  %v2341 = vmul.f32 %v2264, 1.442695
  %v2342 = vpow.pop %v2341
  %v2343 = vmul.f32 %v2265, 1.442695
  %v2344 = vpow.pop %v2343
  %v2345 = vmul.f32 %v2266, 1.442695
  %v2346 = vpow.pop %v2345
  %v2347 = vmul.f32 %v2267, 1.442695
  %v2348 = vpow.pop %v2347
  %v2349 = vmul.f32 %v2268, 1.442695
  %v2350 = vpow.pop %v2349
  %v2351 = vmul.f32 %v2269, 1.442695
  %v2352 = vpow.pop %v2351
  %v2353 = vmul.f32 %v2270, 1.442695
  %v2354 = vpow.pop %v2353
  %v2355 = vmul.f32 %v2271, 1.442695
  %v2356 = vpow.pop %v2355
  %v2357 = vmul.f32 %v2272, 1.442695
  %v2358 = vpow.pop %v2357
  %v2359 = vmul.f32 %v2273, 1.442695
  %v2360 = vpow.pop %v2359
  %v2361 = vmul.f32 %v2274, 1.442695
  %v2362 = vpow.pop %v2361
  %v2363 = vmul.f32 %v2275, 1.442695
  %v2364 = vpow.pop %v2363
  %v2365 = vmul.f32 %v2276, 1.442695
  %v2366 = vpow.pop %v2365
  %v2367 = vmul.f32 %v2277, 1.442695
  %v2368 = vpow.pop %v2367
  %v2369 = vmul.f32 %v2278, 1.442695
  %v2370 = vpow.pop %v2369
  %v2371 = vmul.f32 %v2279, 1.442695
  %v2372 = vpow.pop %v2371
  %v2373 = vmul.f32 %v2280, 1.442695
  %v2374 = vpow.pop %v2373
  %v2375 = vmul.f32 %v2281, 1.442695
  %v2376 = vpow.pop %v2375
  %v2377 = vmul.f32 %v2282, 1.442695
  %v2378 = vpow.pop %v2377
  %v2379 = vmul.f32 %v2283, 1.442695
  %v2380 = vpow.pop %v2379
  %v2381 = vmul.f32 %v2284, 1.442695
  %v2382 = vpow.pop %v2381
  %v2383 = vmul.f32 %v2285, 1.442695
  %v2384 = vpow.pop %v2383
  %v2385 = vmul.f32 %v2286, 1.442695
  %v2386 = vpow.pop %v2385
  %v2387 = vmul.f32 %v2287, 1.442695
  %v2388 = vpow.pop %v2387
  %v2389 = vmul.f32 %v2288, 1.442695
  %v2390 = vpow.pop %v2389
  %v2391 = vmul.f32 %v2289, 1.442695
  %v2392 = vpow.pop %v2391
  %v2393 = vmul.f32 %v2290, 1.442695
  %v2394 = vpow.pop %v2393
  %v2395 = vmul.f32 %v2291, 1.442695
  %v2396 = vpow.pop %v2395
  %v2397 = vmul.f32 %v2292, 1.442695
  %v2398 = vpow.pop %v2397
  %v2399 = vmul.f32 %v2293, 1.442695
  %v2400 = vpow.pop %v2399
  %v2401 = vmul.f32 %v2294, 1.442695
  %v2402 = vpow.pop %v2401
  %v2403 = vmul.f32 %v2295, 1.442695
  %v2404 = vpow.pop %v2403
  %v2405 = vmul.f32 %v2296, 1.442695
  %v2406 = vpow.pop %v2405
  %v2407 = vmul.f32 %v2297, 1.442695
  %v2408 = vpow.pop %v2407
  %v2409 = vmul.f32 %v2298, 1.442695
  %v2410 = vpow.pop %v2409
  %v2411 = vmul.f32 %v2299, 1.442695
  %v2412 = vpow.pop %v2411
  %v2413 = vmul.f32 %v2300, 1.442695
  %v2414 = vpow.pop %v2413
  %v2415 = vmul.f32 %v2301, 1.442695
  %v2416 = vpow.pop %v2415
  %v2417 = vmul.f32 %v2302, 1.442695
  %v2418 = vpow.pop %v2417
  %v2419 = vmul.f32 %v2303, 1.442695
  %v2420 = vpow.pop %v2419
  %v2421 = vmul.f32 %v2304, 1.442695
  %v2422 = vpow.pop %v2421
  %v2423 = vmul.f32 %v2305, 1.442695
  %v2424 = vpow.pop %v2423
  %v2425 = vmul.f32 %v2306, 1.442695
  %v2426 = vpow.pop %v2425
  %v2427 = vmul.f32 %v2307, 1.442695
  %v2428 = vpow.pop %v2427
  %v2429 = vmul.f32 %v2308, 1.442695
  %v2430 = vpow.pop %v2429
  %v2431 = vmul.f32 %v2309, 1.442695
  %v2432 = vpow.pop %v2431
  %v2433 = vmul.f32 %v2310, 1.442695
  %v2434 = vpow.pop %v2433
  %v2435 = vmul.f32 %v2311, 1.442695
  %v2436 = vpow.pop %v2435
  %v2437 = vmul.f32 %v2312, 1.442695
  %v2438 = vpow.pop %v2437
  %v2439 = vmul.f32 %v2313, 1.442695
  %v2440 = vpow.pop %v2439
  %v2441 = vmul.f32 %v2314, 1.442695
  %v2442 = vpow.pop %v2441
  %v2443 = vsel %vm2058, %v2316, 0.0
  %2444 = vadd.xlane.f32.xlu0 %v2443
  %v2445 = vpop.xlane.xlu0 %2444
  %v2446 = vsel %vm2058, %v2318, 0.0
  %2447 = vadd.xlane.f32.xlu0 %v2446
  %v2448 = vpop.xlane.xlu0 %2447
  %v2449 = vsel %vm2058, %v2320, 0.0
  %2450 = vadd.xlane.f32.xlu0 %v2449
  %v2451 = vpop.xlane.xlu0 %2450
  %v2452 = vsel %vm2058, %v2322, 0.0
  %2453 = vadd.xlane.f32.xlu0 %v2452
  %v2454 = vpop.xlane.xlu0 %2453
  %v2455 = vsel %vm2058, %v2324, 0.0
  %2456 = vadd.xlane.f32.xlu0 %v2455
  %v2457 = vpop.xlane.xlu0 %2456
  %v2458 = vsel %vm2058, %v2326, 0.0
  %2459 = vadd.xlane.f32.xlu0 %v2458
  %v2460 = vpop.xlane.xlu0 %2459
  %v2461 = vsel %vm2058, %v2328, 0.0
  %2462 = vadd.xlane.f32.xlu0 %v2461
  %v2463 = vpop.xlane.xlu0 %2462
  %v2464 = vsel %vm2058, %v2330, 0.0
  %2465 = vadd.xlane.f32.xlu0 %v2464
  %v2466 = vpop.xlane.xlu0 %2465
  %v2467 = vsel %vm2058, %v2332, 0.0
  %2468 = vadd.xlane.f32.xlu0 %v2467
  %v2469 = vpop.xlane.xlu0 %2468
  %v2470 = vsel %vm2058, %v2334, 0.0
  %2471 = vadd.xlane.f32.xlu0 %v2470
  %v2472 = vpop.xlane.xlu0 %2471
  %v2473 = vsel %vm2058, %v2336, 0.0
  %2474 = vadd.xlane.f32.xlu0 %v2473
  %v2475 = vpop.xlane.xlu0 %2474
  %v2476 = vsel %vm2058, %v2338, 0.0
  %2477 = vadd.xlane.f32.xlu0 %v2476
  %v2478 = vpop.xlane.xlu0 %2477
  %v2479 = vsel %vm2058, %v2340, 0.0
  %2480 = vadd.xlane.f32.xlu0 %v2479
  %v2481 = vpop.xlane.xlu0 %2480
  %v2482 = vsel %vm2058, %v2342, 0.0
  %2483 = vadd.xlane.f32.xlu0 %v2482
  %v2484 = vpop.xlane.xlu0 %2483
  %v2485 = vsel %vm2058, %v2344, 0.0
  %2486 = vadd.xlane.f32.xlu0 %v2485
  %v2487 = vpop.xlane.xlu0 %2486
  %v2488 = vsel %vm2058, %v2346, 0.0
  %2489 = vadd.xlane.f32.xlu0 %v2488
  %v2490 = vpop.xlane.xlu0 %2489
  %v2491 = vsel %vm2058, %v2348, 0.0
  %2492 = vadd.xlane.f32.xlu0 %v2491
  %v2493 = vpop.xlane.xlu0 %2492
  %v2494 = vsel %vm2058, %v2350, 0.0
  %2495 = vadd.xlane.f32.xlu0 %v2494
  %v2496 = vpop.xlane.xlu0 %2495
  %v2497 = vsel %vm2058, %v2352, 0.0
  %2498 = vadd.xlane.f32.xlu0 %v2497
  %v2499 = vpop.xlane.xlu0 %2498
  %v2500 = vsel %vm2058, %v2354, 0.0
  %2501 = vadd.xlane.f32.xlu0 %v2500
  %v2502 = vpop.xlane.xlu0 %2501
  %v2503 = vsel %vm2058, %v2356, 0.0
  %2504 = vadd.xlane.f32.xlu0 %v2503
  %v2505 = vpop.xlane.xlu0 %2504
  %v2506 = vsel %vm2058, %v2358, 0.0
  %2507 = vadd.xlane.f32.xlu0 %v2506
  %v2508 = vpop.xlane.xlu0 %2507
  %v2509 = vsel %vm2058, %v2360, 0.0
  %2510 = vadd.xlane.f32.xlu0 %v2509
  %v2511 = vpop.xlane.xlu0 %2510
  %v2512 = vsel %vm2058, %v2362, 0.0
  %2513 = vadd.xlane.f32.xlu0 %v2512
  %v2514 = vpop.xlane.xlu0 %2513
  %v2515 = vsel %vm2058, %v2364, 0.0
  %2516 = vadd.xlane.f32.xlu0 %v2515
  %v2517 = vpop.xlane.xlu0 %2516
  %v2518 = vsel %vm2058, %v2366, 0.0
  %2519 = vadd.xlane.f32.xlu0 %v2518
  %v2520 = vpop.xlane.xlu0 %2519
  %v2521 = vsel %vm2058, %v2368, 0.0
  %2522 = vadd.xlane.f32.xlu0 %v2521
  %v2523 = vpop.xlane.xlu0 %2522
  %v2524 = vsel %vm2058, %v2370, 0.0
  %2525 = vadd.xlane.f32.xlu0 %v2524
  %v2526 = vpop.xlane.xlu0 %2525
  %v2527 = vsel %vm2058, %v2372, 0.0
  %2528 = vadd.xlane.f32.xlu0 %v2527
  %v2529 = vpop.xlane.xlu0 %2528
  %v2530 = vsel %vm2058, %v2374, 0.0
  %2531 = vadd.xlane.f32.xlu0 %v2530
  %v2532 = vpop.xlane.xlu0 %2531
  %v2533 = vsel %vm2058, %v2376, 0.0
  %2534 = vadd.xlane.f32.xlu0 %v2533
  %v2535 = vpop.xlane.xlu0 %2534
  %v2536 = vsel %vm2058, %v2378, 0.0
  %2537 = vadd.xlane.f32.xlu0 %v2536
  %v2538 = vpop.xlane.xlu0 %2537
  %v2539 = vsel %vm2058, %v2380, 0.0
  %2540 = vadd.xlane.f32.xlu0 %v2539
  %v2541 = vpop.xlane.xlu0 %2540
  %v2542 = vsel %vm2058, %v2382, 0.0
  %2543 = vadd.xlane.f32.xlu0 %v2542
  %v2544 = vpop.xlane.xlu0 %2543
  %v2545 = vsel %vm2058, %v2384, 0.0
  %2546 = vadd.xlane.f32.xlu0 %v2545
  %v2547 = vpop.xlane.xlu0 %2546
  %v2548 = vsel %vm2058, %v2386, 0.0
  %2549 = vadd.xlane.f32.xlu0 %v2548
  %v2550 = vpop.xlane.xlu0 %2549
  %v2551 = vsel %vm2058, %v2388, 0.0
  %2552 = vadd.xlane.f32.xlu0 %v2551
  %v2553 = vpop.xlane.xlu0 %2552
  %v2554 = vsel %vm2058, %v2390, 0.0
  %2555 = vadd.xlane.f32.xlu0 %v2554
  %v2556 = vpop.xlane.xlu0 %2555
  %v2557 = vsel %vm2058, %v2392, 0.0
  %2558 = vadd.xlane.f32.xlu0 %v2557
  %v2559 = vpop.xlane.xlu0 %2558
  %v2560 = vsel %vm2058, %v2394, 0.0
  %2561 = vadd.xlane.f32.xlu0 %v2560
  %v2562 = vpop.xlane.xlu0 %2561
  %v2563 = vsel %vm2058, %v2396, 0.0
  %2564 = vadd.xlane.f32.xlu0 %v2563
  %v2565 = vpop.xlane.xlu0 %2564
  %v2566 = vsel %vm2058, %v2398, 0.0
  %2567 = vadd.xlane.f32.xlu0 %v2566
  %v2568 = vpop.xlane.xlu0 %2567
  %v2569 = vsel %vm2058, %v2400, 0.0
  %2570 = vadd.xlane.f32.xlu0 %v2569
  %v2571 = vpop.xlane.xlu0 %2570
  %v2572 = vsel %vm2058, %v2402, 0.0
  %2573 = vadd.xlane.f32.xlu0 %v2572
  %v2574 = vpop.xlane.xlu0 %2573
  %v2575 = vsel %vm2058, %v2404, 0.0
  %2576 = vadd.xlane.f32.xlu0 %v2575
  %v2577 = vpop.xlane.xlu0 %2576
  %v2578 = vsel %vm2058, %v2406, 0.0
  %2579 = vadd.xlane.f32.xlu0 %v2578
  %v2580 = vpop.xlane.xlu0 %2579
  %v2581 = vsel %vm2058, %v2408, 0.0
  %2582 = vadd.xlane.f32.xlu0 %v2581
  %v2583 = vpop.xlane.xlu0 %2582
  %v2584 = vsel %vm2058, %v2410, 0.0
  %2585 = vadd.xlane.f32.xlu0 %v2584
  %v2586 = vpop.xlane.xlu0 %2585
  %v2587 = vsel %vm2058, %v2412, 0.0
  %2588 = vadd.xlane.f32.xlu0 %v2587
  %v2589 = vpop.xlane.xlu0 %2588
  %v2590 = vsel %vm2058, %v2414, 0.0
  %2591 = vadd.xlane.f32.xlu0 %v2590
  %v2592 = vpop.xlane.xlu0 %2591
  %v2593 = vsel %vm2058, %v2416, 0.0
  %2594 = vadd.xlane.f32.xlu0 %v2593
  %v2595 = vpop.xlane.xlu0 %2594
  %v2596 = vsel %vm2058, %v2418, 0.0
  %2597 = vadd.xlane.f32.xlu0 %v2596
  %v2598 = vpop.xlane.xlu0 %2597
  %v2599 = vsel %vm2058, %v2420, 0.0
  %2600 = vadd.xlane.f32.xlu0 %v2599
  %v2601 = vpop.xlane.xlu0 %2600
  %v2602 = vsel %vm2058, %v2422, 0.0
  %2603 = vadd.xlane.f32.xlu0 %v2602
  %v2604 = vpop.xlane.xlu0 %2603
  %v2605 = vsel %vm2058, %v2424, 0.0
  %2606 = vadd.xlane.f32.xlu0 %v2605
  %v2607 = vpop.xlane.xlu0 %2606
  %v2608 = vsel %vm2058, %v2426, 0.0
  %2609 = vadd.xlane.f32.xlu0 %v2608
  %v2610 = vpop.xlane.xlu0 %2609
  %v2611 = vsel %vm2058, %v2428, 0.0
  %2612 = vadd.xlane.f32.xlu0 %v2611
  %v2613 = vpop.xlane.xlu0 %2612
  %v2614 = vsel %vm2058, %v2430, 0.0
  %2615 = vadd.xlane.f32.xlu0 %v2614
  %v2616 = vpop.xlane.xlu0 %2615
  %v2617 = vsel %vm2058, %v2432, 0.0
  %2618 = vadd.xlane.f32.xlu0 %v2617
  %v2619 = vpop.xlane.xlu0 %2618
  %v2620 = vsel %vm2058, %v2434, 0.0
  %2621 = vadd.xlane.f32.xlu0 %v2620
  %v2622 = vpop.xlane.xlu0 %2621
  %v2623 = vsel %vm2058, %v2436, 0.0
  %2624 = vadd.xlane.f32.xlu0 %v2623
  %v2625 = vpop.xlane.xlu0 %2624
  %v2626 = vsel %vm2058, %v2438, 0.0
  %2627 = vadd.xlane.f32.xlu0 %v2626
  %v2628 = vpop.xlane.xlu0 %2627
  %v2629 = vsel %vm2058, %v2440, 0.0
  %2630 = vadd.xlane.f32.xlu0 %v2629
  %v2631 = vpop.xlane.xlu0 %2630
  %v2632 = vsel %vm2058, %v2442, 0.0
  %2633 = vadd.xlane.f32.xlu0 %v2632
  %v2634 = vpop.xlane.xlu0 %2633
  %v2635 = vpack.c.bf16 %v2318, %v2316
  %v2636 = vpack.c.bf16 %v2322, %v2320
  %v2637 = vpack.c.bf16 %v2326, %v2324
  %v2638 = vpack.c.bf16 %v2330, %v2328
  %v2639 = vpack.c.bf16 %v2334, %v2332
  %v2640 = vpack.c.bf16 %v2338, %v2336
  %v2641 = vpack.c.bf16 %v2342, %v2340
  %v2642 = vpack.c.bf16 %v2346, %v2344
  %v2643 = vpack.c.bf16 %v2350, %v2348
  %v2644 = vpack.c.bf16 %v2354, %v2352
  %v2645 = vpack.c.bf16 %v2358, %v2356
  %v2646 = vpack.c.bf16 %v2362, %v2360
  %v2647 = vpack.c.bf16 %v2366, %v2364
  %v2648 = vpack.c.bf16 %v2370, %v2368
  %v2649 = vpack.c.bf16 %v2374, %v2372
  %v2650 = vpack.c.bf16 %v2378, %v2376
  %v2651 = vpack.c.bf16 %v2382, %v2380
  %v2652 = vpack.c.bf16 %v2386, %v2384
  %v2653 = vpack.c.bf16 %v2390, %v2388
  %v2654 = vpack.c.bf16 %v2394, %v2392
  %v2655 = vpack.c.bf16 %v2398, %v2396
  %v2656 = vpack.c.bf16 %v2402, %v2400
  %v2657 = vpack.c.bf16 %v2406, %v2404
  %v2658 = vpack.c.bf16 %v2410, %v2408
  %v2659 = vpack.c.bf16 %v2414, %v2412
  %v2660 = vpack.c.bf16 %v2418, %v2416
  %v2661 = vpack.c.bf16 %v2422, %v2420
  %v2662 = vpack.c.bf16 %v2426, %v2424
  %v2663 = vpack.c.bf16 %v2430, %v2428
  %v2664 = vpack.c.bf16 %v2434, %v2432
  %v2665 = vpack.c.bf16 %v2438, %v2436
  %v2666 = vpack.c.bf16 %v2442, %v2440
  %2667 = vrot.lane.b32.xlu0 %v353, 64
  %v2668 = vpop.permute.xlu0 %2667
  %v2671 = vsel %vm2058, %v2635, 0
  %2673 = vmatprep.subr.bf16.mxu0 0
  %2674 = vmatpush1.bf16.msra.mxu0 %v2668
  %2675 = vmatprep.subr.bf16.mxu0 0
  %2676 = vmatpush1.bf16.msra.mxu0 0
  %2677 = vmatprep.subr.bf16.mxu0 0
  %2678 = vmatpush1.bf16.msra.mxu0 0
  %2679 = vmatprep.subr.bf16.mxu0 0
  %2680 = vmatpush1.bf16.msra.mxu0 0
  %2681 = vmatprep.subr.bf16.mxu0 0
  %2682 = vmatpush1.bf16.msra.mxu0 0
  %2683 = vmatprep.subr.bf16.mxu0 0
  %2684 = vmatpush1.bf16.msra.mxu0 0
  %2685 = vmatprep.subr.bf16.mxu0 0
  %2686 = vmatpush1.bf16.msra.mxu0 0
  %2687 = vmatprep.subr.bf16.mxu0 0
  %2688 = vmatpush1.bf16.msra.mxu0 0
  %2689 = vmatprep.subr.bf16.mxu0 0
  %2690 = vmatpush1.bf16.msra.mxu0 0
  %2691 = vmatprep.subr.bf16.mxu0 0
  %2692 = vmatpush1.bf16.msra.mxu0 0
  %2693 = vmatprep.subr.bf16.mxu0 0
  %2694 = vmatpush1.bf16.msra.mxu0 0
  %2695 = vmatprep.subr.bf16.mxu0 0
  %2696 = vmatpush1.bf16.msra.mxu0 0
  %2697 = vmatprep.subr.bf16.mxu0 0
  %2698 = vmatpush1.bf16.msra.mxu0 0
  %2699 = vmatprep.subr.bf16.mxu0 0
  %2700 = vmatpush1.bf16.msra.mxu0 0
  %2701 = vmatprep.subr.bf16.mxu0 0
  %2702 = vmatpush1.bf16.msra.mxu0 0
  %2703 = vmatprep.subr.bf16.mxu0 0
  %2704 = vmatpush1.bf16.msra.mxu0 0
  %2705 = vmatprep.mubr.bf16.mxu0 0
  %2706 = vmatmul.mubr.bf16.gmra.mrb[0].mxu0 %v2671
  %v2707 = vpop.f32.mrb[0].mxu0
  %v2708 = vadd.f32 0.0, %v2707
  %v2709 = vpop.f32.mrb[0].mxu0
  %v2710 = vpop.f32.mrb[0].mxu0
  %v2711 = vadd.f32 0.0, %v2710
  %v2712 = vpop.f32.mrb[0].mxu0
  %2713 = vdwg.mxu0
  %2714 = vrot.lane.b32.xlu0 %v354, 64
  %v2715 = vpop.permute.xlu0 %2714
  %v2718 = vsel %vm2058, %v2636, 0
  %2720 = vmatprep.subr.bf16.mxu0 0
  %2721 = vmatpush1.bf16.msra.mxu0 %v2715
  %2722 = vmatprep.subr.bf16.mxu0 0
  %2723 = vmatpush1.bf16.msra.mxu0 0
  %2724 = vmatprep.subr.bf16.mxu0 0
  %2725 = vmatpush1.bf16.msra.mxu0 0
  %2726 = vmatprep.subr.bf16.mxu0 0
  %2727 = vmatpush1.bf16.msra.mxu0 0
  %2728 = vmatprep.subr.bf16.mxu0 0
  %2729 = vmatpush1.bf16.msra.mxu0 0
  %2730 = vmatprep.subr.bf16.mxu0 0
  %2731 = vmatpush1.bf16.msra.mxu0 0
  %2732 = vmatprep.subr.bf16.mxu0 0
  %2733 = vmatpush1.bf16.msra.mxu0 0
  %2734 = vmatprep.subr.bf16.mxu0 0
  %2735 = vmatpush1.bf16.msra.mxu0 0
  %2736 = vmatprep.subr.bf16.mxu0 0
  %2737 = vmatpush1.bf16.msra.mxu0 0
  %2738 = vmatprep.subr.bf16.mxu0 0
  %2739 = vmatpush1.bf16.msra.mxu0 0
  %2740 = vmatprep.subr.bf16.mxu0 0
  %2741 = vmatpush1.bf16.msra.mxu0 0
  %2742 = vmatprep.subr.bf16.mxu0 0
  %2743 = vmatpush1.bf16.msra.mxu0 0
  %2744 = vmatprep.subr.bf16.mxu0 0
  %2745 = vmatpush1.bf16.msra.mxu0 0
  %2746 = vmatprep.subr.bf16.mxu0 0
  %2747 = vmatpush1.bf16.msra.mxu0 0
  %2748 = vmatprep.subr.bf16.mxu0 0
  %2749 = vmatpush1.bf16.msra.mxu0 0
  %2750 = vmatprep.subr.bf16.mxu0 0
  %2751 = vmatpush1.bf16.msra.mxu0 0
  %2752 = vmatprep.mubr.bf16.mxu0 0
  %2753 = vmatmul.mubr.bf16.gmra.mrb[0].mxu0 %v2718
  %v2754 = vpop.f32.mrb[0].mxu0
  %v2755 = vadd.f32 0.0, %v2754
  %v2756 = vpop.f32.mrb[0].mxu0
  %v2757 = vpop.f32.mrb[0].mxu0
  %v2758 = vadd.f32 0.0, %v2757
  %v2759 = vpop.f32.mrb[0].mxu0
  %2760 = vdwg.mxu0
  %2761 = vrot.lane.b32.xlu0 %v355, 64
  %v2762 = vpop.permute.xlu0 %2761
  %v2765 = vsel %vm2058, %v2637, 0
  %2767 = vmatprep.subr.bf16.mxu0 0
  %2768 = vmatpush1.bf16.msra.mxu0 %v2762
  %2769 = vmatprep.subr.bf16.mxu0 0
  %2770 = vmatpush1.bf16.msra.mxu0 0
  %2771 = vmatprep.subr.bf16.mxu0 0
  %2772 = vmatpush1.bf16.msra.mxu0 0
  %2773 = vmatprep.subr.bf16.mxu0 0
  %2774 = vmatpush1.bf16.msra.mxu0 0
  %2775 = vmatprep.subr.bf16.mxu0 0
  %2776 = vmatpush1.bf16.msra.mxu0 0
  %2777 = vmatprep.subr.bf16.mxu0 0
  %2778 = vmatpush1.bf16.msra.mxu0 0
  %2779 = vmatprep.subr.bf16.mxu0 0
  %2780 = vmatpush1.bf16.msra.mxu0 0
  %2781 = vmatprep.subr.bf16.mxu0 0
  %2782 = vmatpush1.bf16.msra.mxu0 0
  %2783 = vmatprep.subr.bf16.mxu0 0
  %2784 = vmatpush1.bf16.msra.mxu0 0
  %2785 = vmatprep.subr.bf16.mxu0 0
  %2786 = vmatpush1.bf16.msra.mxu0 0
  %2787 = vmatprep.subr.bf16.mxu0 0
  %2788 = vmatpush1.bf16.msra.mxu0 0
  %2789 = vmatprep.subr.bf16.mxu0 0
  %2790 = vmatpush1.bf16.msra.mxu0 0
  %2791 = vmatprep.subr.bf16.mxu0 0
  %2792 = vmatpush1.bf16.msra.mxu0 0
  %2793 = vmatprep.subr.bf16.mxu0 0
  %2794 = vmatpush1.bf16.msra.mxu0 0
  %2795 = vmatprep.subr.bf16.mxu0 0
  %2796 = vmatpush1.bf16.msra.mxu0 0
  %2797 = vmatprep.subr.bf16.mxu0 0
  %2798 = vmatpush1.bf16.msra.mxu0 0
  %2799 = vmatprep.mubr.bf16.mxu0 0
  %2800 = vmatmul.mubr.bf16.gmra.mrb[0].mxu0 %v2765
  %v2801 = vpop.f32.mrb[0].mxu0
  %v2802 = vadd.f32 0.0, %v2801
  %v2803 = vpop.f32.mrb[0].mxu0
  %v2804 = vpop.f32.mrb[0].mxu0
  %v2805 = vadd.f32 0.0, %v2804
  %v2806 = vpop.f32.mrb[0].mxu0
  %2807 = vdwg.mxu0
  %2808 = vrot.lane.b32.xlu0 %v356, 64
  %v2809 = vpop.permute.xlu0 %2808
  %v2812 = vsel %vm2058, %v2638, 0
  %2814 = vmatprep.subr.bf16.mxu0 0
  %2815 = vmatpush1.bf16.msra.mxu0 %v2809
  %2816 = vmatprep.subr.bf16.mxu0 0
  %2817 = vmatpush1.bf16.msra.mxu0 0
  %2818 = vmatprep.subr.bf16.mxu0 0
  %2819 = vmatpush1.bf16.msra.mxu0 0
  %2820 = vmatprep.subr.bf16.mxu0 0
  %2821 = vmatpush1.bf16.msra.mxu0 0
  %2822 = vmatprep.subr.bf16.mxu0 0
  %2823 = vmatpush1.bf16.msra.mxu0 0
  %2824 = vmatprep.subr.bf16.mxu0 0
  %2825 = vmatpush1.bf16.msra.mxu0 0
  %2826 = vmatprep.subr.bf16.mxu0 0
  %2827 = vmatpush1.bf16.msra.mxu0 0
  %2828 = vmatprep.subr.bf16.mxu0 0
  %2829 = vmatpush1.bf16.msra.mxu0 0
  %2830 = vmatprep.subr.bf16.mxu0 0
  %2831 = vmatpush1.bf16.msra.mxu0 0
  %2832 = vmatprep.subr.bf16.mxu0 0
  %2833 = vmatpush1.bf16.msra.mxu0 0
  %2834 = vmatprep.subr.bf16.mxu0 0
  %2835 = vmatpush1.bf16.msra.mxu0 0
  %2836 = vmatprep.subr.bf16.mxu0 0
  %2837 = vmatpush1.bf16.msra.mxu0 0
  %2838 = vmatprep.subr.bf16.mxu0 0
  %2839 = vmatpush1.bf16.msra.mxu0 0
  %2840 = vmatprep.subr.bf16.mxu0 0
  %2841 = vmatpush1.bf16.msra.mxu0 0
  %2842 = vmatprep.subr.bf16.mxu0 0
  %2843 = vmatpush1.bf16.msra.mxu0 0
  %2844 = vmatprep.subr.bf16.mxu0 0
  %2845 = vmatpush1.bf16.msra.mxu0 0
  %2846 = vmatprep.mubr.bf16.mxu0 0
  %2847 = vmatmul.mubr.bf16.gmra.mrb[0].mxu0 %v2812
  %v2848 = vpop.f32.mrb[0].mxu0
  %v2849 = vadd.f32 0.0, %v2848
  %v2850 = vpop.f32.mrb[0].mxu0
  %v2851 = vpop.f32.mrb[0].mxu0
  %v2852 = vadd.f32 0.0, %v2851
  %v2853 = vpop.f32.mrb[0].mxu0
  %2854 = vdwg.mxu0
  %2855 = vrot.lane.b32.xlu0 %v357, 64
  %v2856 = vpop.permute.xlu0 %2855
  %v2859 = vsel %vm2058, %v2639, 0
  %2861 = vmatprep.subr.bf16.mxu0 0
  %2862 = vmatpush1.bf16.msra.mxu0 %v2856
  %2863 = vmatprep.subr.bf16.mxu0 0
  %2864 = vmatpush1.bf16.msra.mxu0 0
  %2865 = vmatprep.subr.bf16.mxu0 0
  %2866 = vmatpush1.bf16.msra.mxu0 0
  %2867 = vmatprep.subr.bf16.mxu0 0
  %2868 = vmatpush1.bf16.msra.mxu0 0
  %2869 = vmatprep.subr.bf16.mxu0 0
  %2870 = vmatpush1.bf16.msra.mxu0 0
  %2871 = vmatprep.subr.bf16.mxu0 0
  %2872 = vmatpush1.bf16.msra.mxu0 0
  %2873 = vmatprep.subr.bf16.mxu0 0
  %2874 = vmatpush1.bf16.msra.mxu0 0
  %2875 = vmatprep.subr.bf16.mxu0 0
  %2876 = vmatpush1.bf16.msra.mxu0 0
  %2877 = vmatprep.subr.bf16.mxu0 0
  %2878 = vmatpush1.bf16.msra.mxu0 0
  %2879 = vmatprep.subr.bf16.mxu0 0
  %2880 = vmatpush1.bf16.msra.mxu0 0
  %2881 = vmatprep.subr.bf16.mxu0 0
  %2882 = vmatpush1.bf16.msra.mxu0 0
  %2883 = vmatprep.subr.bf16.mxu0 0
  %2884 = vmatpush1.bf16.msra.mxu0 0
  %2885 = vmatprep.subr.bf16.mxu0 0
  %2886 = vmatpush1.bf16.msra.mxu0 0
  %2887 = vmatprep.subr.bf16.mxu0 0
  %2888 = vmatpush1.bf16.msra.mxu0 0
  %2889 = vmatprep.subr.bf16.mxu0 0
  %2890 = vmatpush1.bf16.msra.mxu0 0
  %2891 = vmatprep.subr.bf16.mxu0 0
  %2892 = vmatpush1.bf16.msra.mxu0 0
  %2893 = vmatprep.mubr.bf16.mxu0 0
  %2894 = vmatmul.mubr.bf16.gmra.mrb[0].mxu0 %v2859
  %v2895 = vpop.f32.mrb[0].mxu0
  %v2896 = vadd.f32 0.0, %v2895
  %v2897 = vpop.f32.mrb[0].mxu0
  %v2898 = vpop.f32.mrb[0].mxu0
  %v2899 = vadd.f32 0.0, %v2898
  %v2900 = vpop.f32.mrb[0].mxu0
  %2901 = vdwg.mxu0
  %2902 = vrot.lane.b32.xlu0 %v358, 64
  %v2903 = vpop.permute.xlu0 %2902
  %v2906 = vsel %vm2058, %v2640, 0
  %2908 = vmatprep.subr.bf16.mxu0 0
  %2909 = vmatpush1.bf16.msra.mxu0 %v2903
  %2910 = vmatprep.subr.bf16.mxu0 0
  %2911 = vmatpush1.bf16.msra.mxu0 0
  %2912 = vmatprep.subr.bf16.mxu0 0
  %2913 = vmatpush1.bf16.msra.mxu0 0
  %2914 = vmatprep.subr.bf16.mxu0 0
  %2915 = vmatpush1.bf16.msra.mxu0 0
  %2916 = vmatprep.subr.bf16.mxu0 0
  %2917 = vmatpush1.bf16.msra.mxu0 0
  %2918 = vmatprep.subr.bf16.mxu0 0
  %2919 = vmatpush1.bf16.msra.mxu0 0
  %2920 = vmatprep.subr.bf16.mxu0 0
  %2921 = vmatpush1.bf16.msra.mxu0 0
  %2922 = vmatprep.subr.bf16.mxu0 0
  %2923 = vmatpush1.bf16.msra.mxu0 0
  %2924 = vmatprep.subr.bf16.mxu0 0
  %2925 = vmatpush1.bf16.msra.mxu0 0
  %2926 = vmatprep.subr.bf16.mxu0 0
  %2927 = vmatpush1.bf16.msra.mxu0 0
  %2928 = vmatprep.subr.bf16.mxu0 0
  %2929 = vmatpush1.bf16.msra.mxu0 0
  %2930 = vmatprep.subr.bf16.mxu0 0
  %2931 = vmatpush1.bf16.msra.mxu0 0
  %2932 = vmatprep.subr.bf16.mxu0 0
  %2933 = vmatpush1.bf16.msra.mxu0 0
  %2934 = vmatprep.subr.bf16.mxu0 0
  %2935 = vmatpush1.bf16.msra.mxu0 0
  %2936 = vmatprep.subr.bf16.mxu0 0
  %2937 = vmatpush1.bf16.msra.mxu0 0
  %2938 = vmatprep.subr.bf16.mxu0 0
  %2939 = vmatpush1.bf16.msra.mxu0 0
  %2940 = vmatprep.mubr.bf16.mxu0 0
  %2941 = vmatmul.mubr.bf16.gmra.mrb[0].mxu0 %v2906
  %v2942 = vpop.f32.mrb[0].mxu0
  %v2943 = vadd.f32 0.0, %v2942
  %v2944 = vpop.f32.mrb[0].mxu0
  %v2945 = vpop.f32.mrb[0].mxu0
  %v2946 = vadd.f32 0.0, %v2945
  %v2947 = vpop.f32.mrb[0].mxu0
  %2948 = vdwg.mxu0
  %2949 = vrot.lane.b32.xlu0 %v359, 64
  %v2950 = vpop.permute.xlu0 %2949
  %v2953 = vsel %vm2058, %v2641, 0
  %2955 = vmatprep.subr.bf16.mxu0 0
  %2956 = vmatpush1.bf16.msra.mxu0 %v2950
  %2957 = vmatprep.subr.bf16.mxu0 0
  %2958 = vmatpush1.bf16.msra.mxu0 0
  %2959 = vmatprep.subr.bf16.mxu0 0
  %2960 = vmatpush1.bf16.msra.mxu0 0
  %2961 = vmatprep.subr.bf16.mxu0 0
  %2962 = vmatpush1.bf16.msra.mxu0 0
  %2963 = vmatprep.subr.bf16.mxu0 0
  %2964 = vmatpush1.bf16.msra.mxu0 0
  %2965 = vmatprep.subr.bf16.mxu0 0
  %2966 = vmatpush1.bf16.msra.mxu0 0
  %2967 = vmatprep.subr.bf16.mxu0 0
  %2968 = vmatpush1.bf16.msra.mxu0 0
  %2969 = vmatprep.subr.bf16.mxu0 0
  %2970 = vmatpush1.bf16.msra.mxu0 0
  %2971 = vmatprep.subr.bf16.mxu0 0
  %2972 = vmatpush1.bf16.msra.mxu0 0
  %2973 = vmatprep.subr.bf16.mxu0 0
  %2974 = vmatpush1.bf16.msra.mxu0 0
  %2975 = vmatprep.subr.bf16.mxu0 0
  %2976 = vmatpush1.bf16.msra.mxu0 0
  %2977 = vmatprep.subr.bf16.mxu0 0
  %2978 = vmatpush1.bf16.msra.mxu0 0
  %2979 = vmatprep.subr.bf16.mxu0 0
  %2980 = vmatpush1.bf16.msra.mxu0 0
  %2981 = vmatprep.subr.bf16.mxu0 0
  %2982 = vmatpush1.bf16.msra.mxu0 0
  %2983 = vmatprep.subr.bf16.mxu0 0
  %2984 = vmatpush1.bf16.msra.mxu0 0
  %2985 = vmatprep.subr.bf16.mxu0 0
  %2986 = vmatpush1.bf16.msra.mxu0 0
  %2987 = vmatprep.mubr.bf16.mxu0 0
  %2988 = vmatmul.mubr.bf16.gmra.mrb[0].mxu0 %v2953
  %v2989 = vpop.f32.mrb[0].mxu0
  %v2990 = vadd.f32 0.0, %v2989
  %v2991 = vpop.f32.mrb[0].mxu0
  %v2992 = vpop.f32.mrb[0].mxu0
  %v2993 = vadd.f32 0.0, %v2992
  %v2994 = vpop.f32.mrb[0].mxu0
  %2995 = vdwg.mxu0
  %2996 = vrot.lane.b32.xlu0 %v360, 64
  %v2997 = vpop.permute.xlu0 %2996
  %v3000 = vsel %vm2058, %v2642, 0
  %3002 = vmatprep.subr.bf16.mxu0 0
  %3003 = vmatpush1.bf16.msra.mxu0 %v2997
  %3004 = vmatprep.subr.bf16.mxu0 0
  %3005 = vmatpush1.bf16.msra.mxu0 0
  %3006 = vmatprep.subr.bf16.mxu0 0
  %3007 = vmatpush1.bf16.msra.mxu0 0
  %3008 = vmatprep.subr.bf16.mxu0 0
  %3009 = vmatpush1.bf16.msra.mxu0 0
  %3010 = vmatprep.subr.bf16.mxu0 0
  %3011 = vmatpush1.bf16.msra.mxu0 0
  %3012 = vmatprep.subr.bf16.mxu0 0
  %3013 = vmatpush1.bf16.msra.mxu0 0
  %3014 = vmatprep.subr.bf16.mxu0 0
  %3015 = vmatpush1.bf16.msra.mxu0 0
  %3016 = vmatprep.subr.bf16.mxu0 0
  %3017 = vmatpush1.bf16.msra.mxu0 0
  %3018 = vmatprep.subr.bf16.mxu0 0
  %3019 = vmatpush1.bf16.msra.mxu0 0
  %3020 = vmatprep.subr.bf16.mxu0 0
  %3021 = vmatpush1.bf16.msra.mxu0 0
  %3022 = vmatprep.subr.bf16.mxu0 0
  %3023 = vmatpush1.bf16.msra.mxu0 0
  %3024 = vmatprep.subr.bf16.mxu0 0
  %3025 = vmatpush1.bf16.msra.mxu0 0
  %3026 = vmatprep.subr.bf16.mxu0 0
  %3027 = vmatpush1.bf16.msra.mxu0 0
  %3028 = vmatprep.subr.bf16.mxu0 0
  %3029 = vmatpush1.bf16.msra.mxu0 0
  %3030 = vmatprep.subr.bf16.mxu0 0
  %3031 = vmatpush1.bf16.msra.mxu0 0
  %3032 = vmatprep.subr.bf16.mxu0 0
  %3033 = vmatpush1.bf16.msra.mxu0 0
  %3034 = vmatprep.mubr.bf16.mxu0 0
  %3035 = vmatmul.mubr.bf16.gmra.mrb[0].mxu0 %v3000
  %v3036 = vpop.f32.mrb[0].mxu0
  %v3037 = vadd.f32 0.0, %v3036
  %v3038 = vpop.f32.mrb[0].mxu0
  %v3039 = vpop.f32.mrb[0].mxu0
  %v3040 = vadd.f32 0.0, %v3039
  %v3041 = vpop.f32.mrb[0].mxu0
  %3042 = vdwg.mxu0
  %3043 = vrot.lane.b32.xlu0 %v361, 64
  %v3044 = vpop.permute.xlu0 %3043
  %v3047 = vsel %vm2058, %v2643, 0
  %3049 = vmatprep.subr.bf16.mxu0 0
  %3050 = vmatpush1.bf16.msra.mxu0 %v3044
  %3051 = vmatprep.subr.bf16.mxu0 0
  %3052 = vmatpush1.bf16.msra.mxu0 0
  %3053 = vmatprep.subr.bf16.mxu0 0
  %3054 = vmatpush1.bf16.msra.mxu0 0
  %3055 = vmatprep.subr.bf16.mxu0 0
  %3056 = vmatpush1.bf16.msra.mxu0 0
  %3057 = vmatprep.subr.bf16.mxu0 0
  %3058 = vmatpush1.bf16.msra.mxu0 0
  %3059 = vmatprep.subr.bf16.mxu0 0
  %3060 = vmatpush1.bf16.msra.mxu0 0
  %3061 = vmatprep.subr.bf16.mxu0 0
  %3062 = vmatpush1.bf16.msra.mxu0 0
  %3063 = vmatprep.subr.bf16.mxu0 0
  %3064 = vmatpush1.bf16.msra.mxu0 0
  %3065 = vmatprep.subr.bf16.mxu0 0
  %3066 = vmatpush1.bf16.msra.mxu0 0
  %3067 = vmatprep.subr.bf16.mxu0 0
  %3068 = vmatpush1.bf16.msra.mxu0 0
  %3069 = vmatprep.subr.bf16.mxu0 0
  %3070 = vmatpush1.bf16.msra.mxu0 0
  %3071 = vmatprep.subr.bf16.mxu0 0
  %3072 = vmatpush1.bf16.msra.mxu0 0
  %3073 = vmatprep.subr.bf16.mxu0 0
  %3074 = vmatpush1.bf16.msra.mxu0 0
  %3075 = vmatprep.subr.bf16.mxu0 0
  %3076 = vmatpush1.bf16.msra.mxu0 0
  %3077 = vmatprep.subr.bf16.mxu0 0
  %3078 = vmatpush1.bf16.msra.mxu0 0
  %3079 = vmatprep.subr.bf16.mxu0 0
  %3080 = vmatpush1.bf16.msra.mxu0 0
  %3081 = vmatprep.mubr.bf16.mxu0 0
  %3082 = vmatmul.mubr.bf16.gmra.mrb[0].mxu0 %v3047
  %v3083 = vpop.f32.mrb[0].mxu0
  %v3084 = vadd.f32 0.0, %v3083
  %v3085 = vpop.f32.mrb[0].mxu0
  %v3086 = vpop.f32.mrb[0].mxu0
  %v3087 = vadd.f32 0.0, %v3086
  %v3088 = vpop.f32.mrb[0].mxu0
  %3089 = vdwg.mxu0
  %3090 = vrot.lane.b32.xlu0 %v362, 64
  %v3091 = vpop.permute.xlu0 %3090
  %v3094 = vsel %vm2058, %v2644, 0
  %3096 = vmatprep.subr.bf16.mxu0 0
  %3097 = vmatpush1.bf16.msra.mxu0 %v3091
  %3098 = vmatprep.subr.bf16.mxu0 0
  %3099 = vmatpush1.bf16.msra.mxu0 0
  %3100 = vmatprep.subr.bf16.mxu0 0
  %3101 = vmatpush1.bf16.msra.mxu0 0
  %3102 = vmatprep.subr.bf16.mxu0 0
  %3103 = vmatpush1.bf16.msra.mxu0 0
  %3104 = vmatprep.subr.bf16.mxu0 0
  %3105 = vmatpush1.bf16.msra.mxu0 0
  %3106 = vmatprep.subr.bf16.mxu0 0
  %3107 = vmatpush1.bf16.msra.mxu0 0
  %3108 = vmatprep.subr.bf16.mxu0 0
  %3109 = vmatpush1.bf16.msra.mxu0 0
  %3110 = vmatprep.subr.bf16.mxu0 0
  %3111 = vmatpush1.bf16.msra.mxu0 0
  %3112 = vmatprep.subr.bf16.mxu0 0
  %3113 = vmatpush1.bf16.msra.mxu0 0
  %3114 = vmatprep.subr.bf16.mxu0 0
  %3115 = vmatpush1.bf16.msra.mxu0 0
  %3116 = vmatprep.subr.bf16.mxu0 0
  %3117 = vmatpush1.bf16.msra.mxu0 0
  %3118 = vmatprep.subr.bf16.mxu0 0
  %3119 = vmatpush1.bf16.msra.mxu0 0
  %3120 = vmatprep.subr.bf16.mxu0 0
  %3121 = vmatpush1.bf16.msra.mxu0 0
  %3122 = vmatprep.subr.bf16.mxu0 0
  %3123 = vmatpush1.bf16.msra.mxu0 0
  %3124 = vmatprep.subr.bf16.mxu0 0
  %3125 = vmatpush1.bf16.msra.mxu0 0
  %3126 = vmatprep.subr.bf16.mxu0 0
  %3127 = vmatpush1.bf16.msra.mxu0 0
  %3128 = vmatprep.mubr.bf16.mxu0 0
  %3129 = vmatmul.mubr.bf16.gmra.mrb[0].mxu0 %v3094
  %v3130 = vpop.f32.mrb[0].mxu0
  %v3131 = vadd.f32 0.0, %v3130
  %v3132 = vpop.f32.mrb[0].mxu0
  %v3133 = vpop.f32.mrb[0].mxu0
  %v3134 = vadd.f32 0.0, %v3133
  %v3135 = vpop.f32.mrb[0].mxu0
  %3136 = vdwg.mxu0
  %3137 = vrot.lane.b32.xlu0 %v363, 64
  %v3138 = vpop.permute.xlu0 %3137
  %v3141 = vsel %vm2058, %v2645, 0
  %3143 = vmatprep.subr.bf16.mxu0 0
  %3144 = vmatpush1.bf16.msra.mxu0 %v3138
  %3145 = vmatprep.subr.bf16.mxu0 0
  %3146 = vmatpush1.bf16.msra.mxu0 0
  %3147 = vmatprep.subr.bf16.mxu0 0
  %3148 = vmatpush1.bf16.msra.mxu0 0
  %3149 = vmatprep.subr.bf16.mxu0 0
  %3150 = vmatpush1.bf16.msra.mxu0 0
  %3151 = vmatprep.subr.bf16.mxu0 0
  %3152 = vmatpush1.bf16.msra.mxu0 0
  %3153 = vmatprep.subr.bf16.mxu0 0
  %3154 = vmatpush1.bf16.msra.mxu0 0
  %3155 = vmatprep.subr.bf16.mxu0 0
  %3156 = vmatpush1.bf16.msra.mxu0 0
  %3157 = vmatprep.subr.bf16.mxu0 0
  %3158 = vmatpush1.bf16.msra.mxu0 0
  %3159 = vmatprep.subr.bf16.mxu0 0
  %3160 = vmatpush1.bf16.msra.mxu0 0
  %3161 = vmatprep.subr.bf16.mxu0 0
  %3162 = vmatpush1.bf16.msra.mxu0 0
  %3163 = vmatprep.subr.bf16.mxu0 0
  %3164 = vmatpush1.bf16.msra.mxu0 0
  %3165 = vmatprep.subr.bf16.mxu0 0
  %3166 = vmatpush1.bf16.msra.mxu0 0
  %3167 = vmatprep.subr.bf16.mxu0 0
  %3168 = vmatpush1.bf16.msra.mxu0 0
  %3169 = vmatprep.subr.bf16.mxu0 0
  %3170 = vmatpush1.bf16.msra.mxu0 0
  %3171 = vmatprep.subr.bf16.mxu0 0
  %3172 = vmatpush1.bf16.msra.mxu0 0
  %3173 = vmatprep.subr.bf16.mxu0 0
  %3174 = vmatpush1.bf16.msra.mxu0 0
  %3175 = vmatprep.mubr.bf16.mxu0 0
  %3176 = vmatmul.mubr.bf16.gmra.mrb[0].mxu0 %v3141
  %v3177 = vpop.f32.mrb[0].mxu0
  %v3178 = vadd.f32 0.0, %v3177
  %v3179 = vpop.f32.mrb[0].mxu0
  %v3180 = vpop.f32.mrb[0].mxu0
  %v3181 = vadd.f32 0.0, %v3180
  %v3182 = vpop.f32.mrb[0].mxu0
  %3183 = vdwg.mxu0
  %3184 = vrot.lane.b32.xlu0 %v364, 64
  %v3185 = vpop.permute.xlu0 %3184
  %v3188 = vsel %vm2058, %v2646, 0
  %3190 = vmatprep.subr.bf16.mxu0 0
  %3191 = vmatpush1.bf16.msra.mxu0 %v3185
  %3192 = vmatprep.subr.bf16.mxu0 0
  %3193 = vmatpush1.bf16.msra.mxu0 0
  %3194 = vmatprep.subr.bf16.mxu0 0
  %3195 = vmatpush1.bf16.msra.mxu0 0
  %3196 = vmatprep.subr.bf16.mxu0 0
  %3197 = vmatpush1.bf16.msra.mxu0 0
  %3198 = vmatprep.subr.bf16.mxu0 0
  %3199 = vmatpush1.bf16.msra.mxu0 0
  %3200 = vmatprep.subr.bf16.mxu0 0
  %3201 = vmatpush1.bf16.msra.mxu0 0
  %3202 = vmatprep.subr.bf16.mxu0 0
  %3203 = vmatpush1.bf16.msra.mxu0 0
  %3204 = vmatprep.subr.bf16.mxu0 0
  %3205 = vmatpush1.bf16.msra.mxu0 0
  %3206 = vmatprep.subr.bf16.mxu0 0
  %3207 = vmatpush1.bf16.msra.mxu0 0
  %3208 = vmatprep.subr.bf16.mxu0 0
  %3209 = vmatpush1.bf16.msra.mxu0 0
  %3210 = vmatprep.subr.bf16.mxu0 0
  %3211 = vmatpush1.bf16.msra.mxu0 0
  %3212 = vmatprep.subr.bf16.mxu0 0
  %3213 = vmatpush1.bf16.msra.mxu0 0
  %3214 = vmatprep.subr.bf16.mxu0 0
  %3215 = vmatpush1.bf16.msra.mxu0 0
  %3216 = vmatprep.subr.bf16.mxu0 0
  %3217 = vmatpush1.bf16.msra.mxu0 0
  %3218 = vmatprep.subr.bf16.mxu0 0
  %3219 = vmatpush1.bf16.msra.mxu0 0
  %3220 = vmatprep.subr.bf16.mxu0 0
  %3221 = vmatpush1.bf16.msra.mxu0 0
  %3222 = vmatprep.mubr.bf16.mxu0 0
  %3223 = vmatmul.mubr.bf16.gmra.mrb[0].mxu0 %v3188
  %v3224 = vpop.f32.mrb[0].mxu0
  %v3225 = vadd.f32 0.0, %v3224
  %v3226 = vpop.f32.mrb[0].mxu0
  %v3227 = vpop.f32.mrb[0].mxu0
  %v3228 = vadd.f32 0.0, %v3227
  %v3229 = vpop.f32.mrb[0].mxu0
  %3230 = vdwg.mxu0
  %3231 = vrot.lane.b32.xlu0 %v365, 64
  %v3232 = vpop.permute.xlu0 %3231
  %v3235 = vsel %vm2058, %v2647, 0
  %3237 = vmatprep.subr.bf16.mxu0 0
  %3238 = vmatpush1.bf16.msra.mxu0 %v3232
  %3239 = vmatprep.subr.bf16.mxu0 0
  %3240 = vmatpush1.bf16.msra.mxu0 0
  %3241 = vmatprep.subr.bf16.mxu0 0
  %3242 = vmatpush1.bf16.msra.mxu0 0
  %3243 = vmatprep.subr.bf16.mxu0 0
  %3244 = vmatpush1.bf16.msra.mxu0 0
  %3245 = vmatprep.subr.bf16.mxu0 0
  %3246 = vmatpush1.bf16.msra.mxu0 0
  %3247 = vmatprep.subr.bf16.mxu0 0
  %3248 = vmatpush1.bf16.msra.mxu0 0
  %3249 = vmatprep.subr.bf16.mxu0 0
  %3250 = vmatpush1.bf16.msra.mxu0 0
  %3251 = vmatprep.subr.bf16.mxu0 0
  %3252 = vmatpush1.bf16.msra.mxu0 0
  %3253 = vmatprep.subr.bf16.mxu0 0
  %3254 = vmatpush1.bf16.msra.mxu0 0
  %3255 = vmatprep.subr.bf16.mxu0 0
  %3256 = vmatpush1.bf16.msra.mxu0 0
  %3257 = vmatprep.subr.bf16.mxu0 0
  %3258 = vmatpush1.bf16.msra.mxu0 0
  %3259 = vmatprep.subr.bf16.mxu0 0
  %3260 = vmatpush1.bf16.msra.mxu0 0
  %3261 = vmatprep.subr.bf16.mxu0 0
  %3262 = vmatpush1.bf16.msra.mxu0 0
  %3263 = vmatprep.subr.bf16.mxu0 0
  %3264 = vmatpush1.bf16.msra.mxu0 0
  %3265 = vmatprep.subr.bf16.mxu0 0
  %3266 = vmatpush1.bf16.msra.mxu0 0
  %3267 = vmatprep.subr.bf16.mxu0 0
  %3268 = vmatpush1.bf16.msra.mxu0 0
  %3269 = vmatprep.mubr.bf16.mxu0 0
  %3270 = vmatmul.mubr.bf16.gmra.mrb[0].mxu0 %v3235
  %v3271 = vpop.f32.mrb[0].mxu0
  %v3272 = vadd.f32 0.0, %v3271
  %v3273 = vpop.f32.mrb[0].mxu0
  %v3274 = vpop.f32.mrb[0].mxu0
  %v3275 = vadd.f32 0.0, %v3274
  %v3276 = vpop.f32.mrb[0].mxu0
  %3277 = vdwg.mxu0
  %3278 = vrot.lane.b32.xlu0 %v366, 64
  %v3279 = vpop.permute.xlu0 %3278
  %v3282 = vsel %vm2058, %v2648, 0
  %3284 = vmatprep.subr.bf16.mxu0 0
  %3285 = vmatpush1.bf16.msra.mxu0 %v3279
  %3286 = vmatprep.subr.bf16.mxu0 0
  %3287 = vmatpush1.bf16.msra.mxu0 0
  %3288 = vmatprep.subr.bf16.mxu0 0
  %3289 = vmatpush1.bf16.msra.mxu0 0
  %3290 = vmatprep.subr.bf16.mxu0 0
  %3291 = vmatpush1.bf16.msra.mxu0 0
  %3292 = vmatprep.subr.bf16.mxu0 0
  %3293 = vmatpush1.bf16.msra.mxu0 0
  %3294 = vmatprep.subr.bf16.mxu0 0
  %3295 = vmatpush1.bf16.msra.mxu0 0
  %3296 = vmatprep.subr.bf16.mxu0 0
  %3297 = vmatpush1.bf16.msra.mxu0 0
  %3298 = vmatprep.subr.bf16.mxu0 0
  %3299 = vmatpush1.bf16.msra.mxu0 0
  %3300 = vmatprep.subr.bf16.mxu0 0
  %3301 = vmatpush1.bf16.msra.mxu0 0
  %3302 = vmatprep.subr.bf16.mxu0 0
  %3303 = vmatpush1.bf16.msra.mxu0 0
  %3304 = vmatprep.subr.bf16.mxu0 0
  %3305 = vmatpush1.bf16.msra.mxu0 0
  %3306 = vmatprep.subr.bf16.mxu0 0
  %3307 = vmatpush1.bf16.msra.mxu0 0
  %3308 = vmatprep.subr.bf16.mxu0 0
  %3309 = vmatpush1.bf16.msra.mxu0 0
  %3310 = vmatprep.subr.bf16.mxu0 0
  %3311 = vmatpush1.bf16.msra.mxu0 0
  %3312 = vmatprep.subr.bf16.mxu0 0
  %3313 = vmatpush1.bf16.msra.mxu0 0
  %3314 = vmatprep.subr.bf16.mxu0 0
  %3315 = vmatpush1.bf16.msra.mxu0 0
  %3316 = vmatprep.mubr.bf16.mxu0 0
  %3317 = vmatmul.mubr.bf16.gmra.mrb[0].mxu0 %v3282
  %v3318 = vpop.f32.mrb[0].mxu0
  %v3319 = vadd.f32 0.0, %v3318
  %v3320 = vpop.f32.mrb[0].mxu0
  %v3321 = vpop.f32.mrb[0].mxu0
  %v3322 = vadd.f32 0.0, %v3321
  %v3323 = vpop.f32.mrb[0].mxu0
  %3324 = vdwg.mxu0
  %3325 = vrot.lane.b32.xlu0 %v367, 64
  %v3326 = vpop.permute.xlu0 %3325
  %v3329 = vsel %vm2058, %v2649, 0
  %3331 = vmatprep.subr.bf16.mxu0 0
  %3332 = vmatpush1.bf16.msra.mxu0 %v3326
  %3333 = vmatprep.subr.bf16.mxu0 0
  %3334 = vmatpush1.bf16.msra.mxu0 0
  %3335 = vmatprep.subr.bf16.mxu0 0
  %3336 = vmatpush1.bf16.msra.mxu0 0
  %3337 = vmatprep.subr.bf16.mxu0 0
  %3338 = vmatpush1.bf16.msra.mxu0 0
  %3339 = vmatprep.subr.bf16.mxu0 0
  %3340 = vmatpush1.bf16.msra.mxu0 0
  %3341 = vmatprep.subr.bf16.mxu0 0
  %3342 = vmatpush1.bf16.msra.mxu0 0
  %3343 = vmatprep.subr.bf16.mxu0 0
  %3344 = vmatpush1.bf16.msra.mxu0 0
  %3345 = vmatprep.subr.bf16.mxu0 0
  %3346 = vmatpush1.bf16.msra.mxu0 0
  %3347 = vmatprep.subr.bf16.mxu0 0
  %3348 = vmatpush1.bf16.msra.mxu0 0
  %3349 = vmatprep.subr.bf16.mxu0 0
  %3350 = vmatpush1.bf16.msra.mxu0 0
  %3351 = vmatprep.subr.bf16.mxu0 0
  %3352 = vmatpush1.bf16.msra.mxu0 0
  %3353 = vmatprep.subr.bf16.mxu0 0
  %3354 = vmatpush1.bf16.msra.mxu0 0
  %3355 = vmatprep.subr.bf16.mxu0 0
  %3356 = vmatpush1.bf16.msra.mxu0 0
  %3357 = vmatprep.subr.bf16.mxu0 0
  %3358 = vmatpush1.bf16.msra.mxu0 0
  %3359 = vmatprep.subr.bf16.mxu0 0
  %3360 = vmatpush1.bf16.msra.mxu0 0
  %3361 = vmatprep.subr.bf16.mxu0 0
  %3362 = vmatpush1.bf16.msra.mxu0 0
  %3363 = vmatprep.mubr.bf16.mxu0 0
  %3364 = vmatmul.mubr.bf16.gmra.mrb[0].mxu0 %v3329
  %v3365 = vpop.f32.mrb[0].mxu0
  %v3366 = vadd.f32 0.0, %v3365
  %v3367 = vpop.f32.mrb[0].mxu0
  %v3368 = vpop.f32.mrb[0].mxu0
  %v3369 = vadd.f32 0.0, %v3368
  %v3370 = vpop.f32.mrb[0].mxu0
  %3371 = vdwg.mxu0
  %3372 = vrot.lane.b32.xlu0 %v368, 64
  %v3373 = vpop.permute.xlu0 %3372
  %v3376 = vsel %vm2058, %v2650, 0
  %3378 = vmatprep.subr.bf16.mxu0 0
  %3379 = vmatpush1.bf16.msra.mxu0 %v3373
  %3380 = vmatprep.subr.bf16.mxu0 0
  %3381 = vmatpush1.bf16.msra.mxu0 0
  %3382 = vmatprep.subr.bf16.mxu0 0
  %3383 = vmatpush1.bf16.msra.mxu0 0
  %3384 = vmatprep.subr.bf16.mxu0 0
  %3385 = vmatpush1.bf16.msra.mxu0 0
  %3386 = vmatprep.subr.bf16.mxu0 0
  %3387 = vmatpush1.bf16.msra.mxu0 0
  %3388 = vmatprep.subr.bf16.mxu0 0
  %3389 = vmatpush1.bf16.msra.mxu0 0
  %3390 = vmatprep.subr.bf16.mxu0 0
  %3391 = vmatpush1.bf16.msra.mxu0 0
  %3392 = vmatprep.subr.bf16.mxu0 0
  %3393 = vmatpush1.bf16.msra.mxu0 0
  %3394 = vmatprep.subr.bf16.mxu0 0
  %3395 = vmatpush1.bf16.msra.mxu0 0
  %3396 = vmatprep.subr.bf16.mxu0 0
  %3397 = vmatpush1.bf16.msra.mxu0 0
  %3398 = vmatprep.subr.bf16.mxu0 0
  %3399 = vmatpush1.bf16.msra.mxu0 0
  %3400 = vmatprep.subr.bf16.mxu0 0
  %3401 = vmatpush1.bf16.msra.mxu0 0
  %3402 = vmatprep.subr.bf16.mxu0 0
  %3403 = vmatpush1.bf16.msra.mxu0 0
  %3404 = vmatprep.subr.bf16.mxu0 0
  %3405 = vmatpush1.bf16.msra.mxu0 0
  %3406 = vmatprep.subr.bf16.mxu0 0
  %3407 = vmatpush1.bf16.msra.mxu0 0
  %3408 = vmatprep.subr.bf16.mxu0 0
  %3409 = vmatpush1.bf16.msra.mxu0 0
  %3410 = vmatprep.mubr.bf16.mxu0 0
  %3411 = vmatmul.mubr.bf16.gmra.mrb[0].mxu0 %v3376
  %v3412 = vpop.f32.mrb[0].mxu0
  %v3413 = vadd.f32 0.0, %v3412
  %v3414 = vpop.f32.mrb[0].mxu0
  %v3415 = vpop.f32.mrb[0].mxu0
  %v3416 = vadd.f32 0.0, %v3415
  %v3417 = vpop.f32.mrb[0].mxu0
  %3418 = vdwg.mxu0
  %3419 = vrot.lane.b32.xlu0 %v369, 64
  %v3420 = vpop.permute.xlu0 %3419
  %v3423 = vsel %vm2058, %v2651, 0
  %3425 = vmatprep.subr.bf16.mxu0 0
  %3426 = vmatpush1.bf16.msra.mxu0 %v3420
  %3427 = vmatprep.subr.bf16.mxu0 0
  %3428 = vmatpush1.bf16.msra.mxu0 0
  %3429 = vmatprep.subr.bf16.mxu0 0
  %3430 = vmatpush1.bf16.msra.mxu0 0
  %3431 = vmatprep.subr.bf16.mxu0 0
  %3432 = vmatpush1.bf16.msra.mxu0 0
  %3433 = vmatprep.subr.bf16.mxu0 0
  %3434 = vmatpush1.bf16.msra.mxu0 0
  %3435 = vmatprep.subr.bf16.mxu0 0
  %3436 = vmatpush1.bf16.msra.mxu0 0
  %3437 = vmatprep.subr.bf16.mxu0 0
  %3438 = vmatpush1.bf16.msra.mxu0 0
  %3439 = vmatprep.subr.bf16.mxu0 0
  %3440 = vmatpush1.bf16.msra.mxu0 0
  %3441 = vmatprep.subr.bf16.mxu0 0
  %3442 = vmatpush1.bf16.msra.mxu0 0
  %3443 = vmatprep.subr.bf16.mxu0 0
  %3444 = vmatpush1.bf16.msra.mxu0 0
  %3445 = vmatprep.subr.bf16.mxu0 0
  %3446 = vmatpush1.bf16.msra.mxu0 0
  %3447 = vmatprep.subr.bf16.mxu0 0
  %3448 = vmatpush1.bf16.msra.mxu0 0
  %3449 = vmatprep.subr.bf16.mxu0 0
  %3450 = vmatpush1.bf16.msra.mxu0 0
  %3451 = vmatprep.subr.bf16.mxu0 0
  %3452 = vmatpush1.bf16.msra.mxu0 0
  %3453 = vmatprep.subr.bf16.mxu0 0
  %3454 = vmatpush1.bf16.msra.mxu0 0
  %3455 = vmatprep.subr.bf16.mxu0 0
  %3456 = vmatpush1.bf16.msra.mxu0 0
  %3457 = vmatprep.mubr.bf16.mxu0 0
  %3458 = vmatmul.mubr.bf16.gmra.mrb[0].mxu0 %v3423
  %v3459 = vpop.f32.mrb[0].mxu0
  %v3460 = vadd.f32 0.0, %v3459
  %v3461 = vpop.f32.mrb[0].mxu0
  %v3462 = vpop.f32.mrb[0].mxu0
  %v3463 = vadd.f32 0.0, %v3462
  %v3464 = vpop.f32.mrb[0].mxu0
  %3465 = vdwg.mxu0
  %3466 = vrot.lane.b32.xlu0 %v370, 64
  %v3467 = vpop.permute.xlu0 %3466
  %v3470 = vsel %vm2058, %v2652, 0
  %3472 = vmatprep.subr.bf16.mxu0 0
  %3473 = vmatpush1.bf16.msra.mxu0 %v3467
  %3474 = vmatprep.subr.bf16.mxu0 0
  %3475 = vmatpush1.bf16.msra.mxu0 0
  %3476 = vmatprep.subr.bf16.mxu0 0
  %3477 = vmatpush1.bf16.msra.mxu0 0
  %3478 = vmatprep.subr.bf16.mxu0 0
  %3479 = vmatpush1.bf16.msra.mxu0 0
  %3480 = vmatprep.subr.bf16.mxu0 0
  %3481 = vmatpush1.bf16.msra.mxu0 0
  %3482 = vmatprep.subr.bf16.mxu0 0
  %3483 = vmatpush1.bf16.msra.mxu0 0
  %3484 = vmatprep.subr.bf16.mxu0 0
  %3485 = vmatpush1.bf16.msra.mxu0 0
  %3486 = vmatprep.subr.bf16.mxu0 0
  %3487 = vmatpush1.bf16.msra.mxu0 0
  %3488 = vmatprep.subr.bf16.mxu0 0
  %3489 = vmatpush1.bf16.msra.mxu0 0
  %3490 = vmatprep.subr.bf16.mxu0 0
  %3491 = vmatpush1.bf16.msra.mxu0 0
  %3492 = vmatprep.subr.bf16.mxu0 0
  %3493 = vmatpush1.bf16.msra.mxu0 0
  %3494 = vmatprep.subr.bf16.mxu0 0
  %3495 = vmatpush1.bf16.msra.mxu0 0
  %3496 = vmatprep.subr.bf16.mxu0 0
  %3497 = vmatpush1.bf16.msra.mxu0 0
  %3498 = vmatprep.subr.bf16.mxu0 0
  %3499 = vmatpush1.bf16.msra.mxu0 0
  %3500 = vmatprep.subr.bf16.mxu0 0
  %3501 = vmatpush1.bf16.msra.mxu0 0
  %3502 = vmatprep.subr.bf16.mxu0 0
  %3503 = vmatpush1.bf16.msra.mxu0 0
  %3504 = vmatprep.mubr.bf16.mxu0 0
  %3505 = vmatmul.mubr.bf16.gmra.mrb[0].mxu0 %v3470
  %v3506 = vpop.f32.mrb[0].mxu0
  %v3507 = vadd.f32 0.0, %v3506
  %v3508 = vpop.f32.mrb[0].mxu0
  %v3509 = vpop.f32.mrb[0].mxu0
  %v3510 = vadd.f32 0.0, %v3509
  %v3511 = vpop.f32.mrb[0].mxu0
  %3512 = vdwg.mxu0
  %3513 = vrot.lane.b32.xlu0 %v371, 64
  %v3514 = vpop.permute.xlu0 %3513
  %v3517 = vsel %vm2058, %v2653, 0
  %3519 = vmatprep.subr.bf16.mxu0 0
  %3520 = vmatpush1.bf16.msra.mxu0 %v3514
  %3521 = vmatprep.subr.bf16.mxu0 0
  %3522 = vmatpush1.bf16.msra.mxu0 0
  %3523 = vmatprep.subr.bf16.mxu0 0
  %3524 = vmatpush1.bf16.msra.mxu0 0
  %3525 = vmatprep.subr.bf16.mxu0 0
  %3526 = vmatpush1.bf16.msra.mxu0 0
  %3527 = vmatprep.subr.bf16.mxu0 0
  %3528 = vmatpush1.bf16.msra.mxu0 0
  %3529 = vmatprep.subr.bf16.mxu0 0
  %3530 = vmatpush1.bf16.msra.mxu0 0
  %3531 = vmatprep.subr.bf16.mxu0 0
  %3532 = vmatpush1.bf16.msra.mxu0 0
  %3533 = vmatprep.subr.bf16.mxu0 0
  %3534 = vmatpush1.bf16.msra.mxu0 0
  %3535 = vmatprep.subr.bf16.mxu0 0
  %3536 = vmatpush1.bf16.msra.mxu0 0
  %3537 = vmatprep.subr.bf16.mxu0 0
  %3538 = vmatpush1.bf16.msra.mxu0 0
  %3539 = vmatprep.subr.bf16.mxu0 0
  %3540 = vmatpush1.bf16.msra.mxu0 0
  %3541 = vmatprep.subr.bf16.mxu0 0
  %3542 = vmatpush1.bf16.msra.mxu0 0
  %3543 = vmatprep.subr.bf16.mxu0 0
  %3544 = vmatpush1.bf16.msra.mxu0 0
  %3545 = vmatprep.subr.bf16.mxu0 0
  %3546 = vmatpush1.bf16.msra.mxu0 0
  %3547 = vmatprep.subr.bf16.mxu0 0
  %3548 = vmatpush1.bf16.msra.mxu0 0
  %3549 = vmatprep.subr.bf16.mxu0 0
  %3550 = vmatpush1.bf16.msra.mxu0 0
  %3551 = vmatprep.mubr.bf16.mxu0 0
  %3552 = vmatmul.mubr.bf16.gmra.mrb[0].mxu0 %v3517
  %v3553 = vpop.f32.mrb[0].mxu0
  %v3554 = vadd.f32 0.0, %v3553
  %v3555 = vpop.f32.mrb[0].mxu0
  %v3556 = vpop.f32.mrb[0].mxu0
  %v3557 = vadd.f32 0.0, %v3556
  %v3558 = vpop.f32.mrb[0].mxu0
  %3559 = vdwg.mxu0
  %3560 = vrot.lane.b32.xlu0 %v372, 64
  %v3561 = vpop.permute.xlu0 %3560
  %v3564 = vsel %vm2058, %v2654, 0
  %3566 = vmatprep.subr.bf16.mxu0 0
  %3567 = vmatpush1.bf16.msra.mxu0 %v3561
  %3568 = vmatprep.subr.bf16.mxu0 0
  %3569 = vmatpush1.bf16.msra.mxu0 0
  %3570 = vmatprep.subr.bf16.mxu0 0
  %3571 = vmatpush1.bf16.msra.mxu0 0
  %3572 = vmatprep.subr.bf16.mxu0 0
  %3573 = vmatpush1.bf16.msra.mxu0 0
  %3574 = vmatprep.subr.bf16.mxu0 0
  %3575 = vmatpush1.bf16.msra.mxu0 0
  %3576 = vmatprep.subr.bf16.mxu0 0
  %3577 = vmatpush1.bf16.msra.mxu0 0
  %3578 = vmatprep.subr.bf16.mxu0 0
  %3579 = vmatpush1.bf16.msra.mxu0 0
  %3580 = vmatprep.subr.bf16.mxu0 0
  %3581 = vmatpush1.bf16.msra.mxu0 0
  %3582 = vmatprep.subr.bf16.mxu0 0
  %3583 = vmatpush1.bf16.msra.mxu0 0
  %3584 = vmatprep.subr.bf16.mxu0 0
  %3585 = vmatpush1.bf16.msra.mxu0 0
  %3586 = vmatprep.subr.bf16.mxu0 0
  %3587 = vmatpush1.bf16.msra.mxu0 0
  %3588 = vmatprep.subr.bf16.mxu0 0
  %3589 = vmatpush1.bf16.msra.mxu0 0
  %3590 = vmatprep.subr.bf16.mxu0 0
  %3591 = vmatpush1.bf16.msra.mxu0 0
  %3592 = vmatprep.subr.bf16.mxu0 0
  %3593 = vmatpush1.bf16.msra.mxu0 0
  %3594 = vmatprep.subr.bf16.mxu0 0
  %3595 = vmatpush1.bf16.msra.mxu0 0
  %3596 = vmatprep.subr.bf16.mxu0 0
  %3597 = vmatpush1.bf16.msra.mxu0 0
  %3598 = vmatprep.mubr.bf16.mxu0 0
  %3599 = vmatmul.mubr.bf16.gmra.mrb[0].mxu0 %v3564
  %v3600 = vpop.f32.mrb[0].mxu0
  %v3601 = vadd.f32 0.0, %v3600
  %v3602 = vpop.f32.mrb[0].mxu0
  %v3603 = vpop.f32.mrb[0].mxu0
  %v3604 = vadd.f32 0.0, %v3603
  %v3605 = vpop.f32.mrb[0].mxu0
  %3606 = vdwg.mxu0
  %3607 = vrot.lane.b32.xlu0 %v373, 64
  %v3608 = vpop.permute.xlu0 %3607
  %v3611 = vsel %vm2058, %v2655, 0
  %3613 = vmatprep.subr.bf16.mxu0 0
  %3614 = vmatpush1.bf16.msra.mxu0 %v3608
  %3615 = vmatprep.subr.bf16.mxu0 0
  %3616 = vmatpush1.bf16.msra.mxu0 0
  %3617 = vmatprep.subr.bf16.mxu0 0
  %3618 = vmatpush1.bf16.msra.mxu0 0
  %3619 = vmatprep.subr.bf16.mxu0 0
  %3620 = vmatpush1.bf16.msra.mxu0 0
  %3621 = vmatprep.subr.bf16.mxu0 0
  %3622 = vmatpush1.bf16.msra.mxu0 0
  %3623 = vmatprep.subr.bf16.mxu0 0
  %3624 = vmatpush1.bf16.msra.mxu0 0
  %3625 = vmatprep.subr.bf16.mxu0 0
  %3626 = vmatpush1.bf16.msra.mxu0 0
  %3627 = vmatprep.subr.bf16.mxu0 0
  %3628 = vmatpush1.bf16.msra.mxu0 0
  %3629 = vmatprep.subr.bf16.mxu0 0
  %3630 = vmatpush1.bf16.msra.mxu0 0
  %3631 = vmatprep.subr.bf16.mxu0 0
  %3632 = vmatpush1.bf16.msra.mxu0 0
  %3633 = vmatprep.subr.bf16.mxu0 0
  %3634 = vmatpush1.bf16.msra.mxu0 0
  %3635 = vmatprep.subr.bf16.mxu0 0
  %3636 = vmatpush1.bf16.msra.mxu0 0
  %3637 = vmatprep.subr.bf16.mxu0 0
  %3638 = vmatpush1.bf16.msra.mxu0 0
  %3639 = vmatprep.subr.bf16.mxu0 0
  %3640 = vmatpush1.bf16.msra.mxu0 0
  %3641 = vmatprep.subr.bf16.mxu0 0
  %3642 = vmatpush1.bf16.msra.mxu0 0
  %3643 = vmatprep.subr.bf16.mxu0 0
  %3644 = vmatpush1.bf16.msra.mxu0 0
  %3645 = vmatprep.mubr.bf16.mxu0 0
  %3646 = vmatmul.mubr.bf16.gmra.mrb[0].mxu0 %v3611
  %v3647 = vpop.f32.mrb[0].mxu0
  %v3648 = vadd.f32 0.0, %v3647
  %v3649 = vpop.f32.mrb[0].mxu0
  %v3650 = vpop.f32.mrb[0].mxu0
  %v3651 = vadd.f32 0.0, %v3650
  %v3652 = vpop.f32.mrb[0].mxu0
  %3653 = vdwg.mxu0
  %3654 = vrot.lane.b32.xlu0 %v374, 64
  %v3655 = vpop.permute.xlu0 %3654
  %v3658 = vsel %vm2058, %v2656, 0
  %3660 = vmatprep.subr.bf16.mxu0 0
  %3661 = vmatpush1.bf16.msra.mxu0 %v3655
  %3662 = vmatprep.subr.bf16.mxu0 0
  %3663 = vmatpush1.bf16.msra.mxu0 0
  %3664 = vmatprep.subr.bf16.mxu0 0
  %3665 = vmatpush1.bf16.msra.mxu0 0
  %3666 = vmatprep.subr.bf16.mxu0 0
  %3667 = vmatpush1.bf16.msra.mxu0 0
  %3668 = vmatprep.subr.bf16.mxu0 0
  %3669 = vmatpush1.bf16.msra.mxu0 0
  %3670 = vmatprep.subr.bf16.mxu0 0
  %3671 = vmatpush1.bf16.msra.mxu0 0
  %3672 = vmatprep.subr.bf16.mxu0 0
  %3673 = vmatpush1.bf16.msra.mxu0 0
  %3674 = vmatprep.subr.bf16.mxu0 0
  %3675 = vmatpush1.bf16.msra.mxu0 0
  %3676 = vmatprep.subr.bf16.mxu0 0
  %3677 = vmatpush1.bf16.msra.mxu0 0
  %3678 = vmatprep.subr.bf16.mxu0 0
  %3679 = vmatpush1.bf16.msra.mxu0 0
  %3680 = vmatprep.subr.bf16.mxu0 0
  %3681 = vmatpush1.bf16.msra.mxu0 0
  %3682 = vmatprep.subr.bf16.mxu0 0
  %3683 = vmatpush1.bf16.msra.mxu0 0
  %3684 = vmatprep.subr.bf16.mxu0 0
  %3685 = vmatpush1.bf16.msra.mxu0 0
  %3686 = vmatprep.subr.bf16.mxu0 0
  %3687 = vmatpush1.bf16.msra.mxu0 0
  %3688 = vmatprep.subr.bf16.mxu0 0
  %3689 = vmatpush1.bf16.msra.mxu0 0
  %3690 = vmatprep.subr.bf16.mxu0 0
  %3691 = vmatpush1.bf16.msra.mxu0 0
  %3692 = vmatprep.mubr.bf16.mxu0 0
  %3693 = vmatmul.mubr.bf16.gmra.mrb[0].mxu0 %v3658
  %v3694 = vpop.f32.mrb[0].mxu0
  %v3695 = vadd.f32 0.0, %v3694
  %v3696 = vpop.f32.mrb[0].mxu0
  %v3697 = vpop.f32.mrb[0].mxu0
  %v3698 = vadd.f32 0.0, %v3697
  %v3699 = vpop.f32.mrb[0].mxu0
  %3700 = vdwg.mxu0
  %3701 = vrot.lane.b32.xlu0 %v375, 64
  %v3702 = vpop.permute.xlu0 %3701
  %v3705 = vsel %vm2058, %v2657, 0
  %3707 = vmatprep.subr.bf16.mxu0 0
  %3708 = vmatpush1.bf16.msra.mxu0 %v3702
  %3709 = vmatprep.subr.bf16.mxu0 0
  %3710 = vmatpush1.bf16.msra.mxu0 0
  %3711 = vmatprep.subr.bf16.mxu0 0
  %3712 = vmatpush1.bf16.msra.mxu0 0
  %3713 = vmatprep.subr.bf16.mxu0 0
  %3714 = vmatpush1.bf16.msra.mxu0 0
  %3715 = vmatprep.subr.bf16.mxu0 0
  %3716 = vmatpush1.bf16.msra.mxu0 0
  %3717 = vmatprep.subr.bf16.mxu0 0
  %3718 = vmatpush1.bf16.msra.mxu0 0
  %3719 = vmatprep.subr.bf16.mxu0 0
  %3720 = vmatpush1.bf16.msra.mxu0 0
  %3721 = vmatprep.subr.bf16.mxu0 0
  %3722 = vmatpush1.bf16.msra.mxu0 0
  %3723 = vmatprep.subr.bf16.mxu0 0
  %3724 = vmatpush1.bf16.msra.mxu0 0
  %3725 = vmatprep.subr.bf16.mxu0 0
  %3726 = vmatpush1.bf16.msra.mxu0 0
  %3727 = vmatprep.subr.bf16.mxu0 0
  %3728 = vmatpush1.bf16.msra.mxu0 0
  %3729 = vmatprep.subr.bf16.mxu0 0
  %3730 = vmatpush1.bf16.msra.mxu0 0
  %3731 = vmatprep.subr.bf16.mxu0 0
  %3732 = vmatpush1.bf16.msra.mxu0 0
  %3733 = vmatprep.subr.bf16.mxu0 0
  %3734 = vmatpush1.bf16.msra.mxu0 0
  %3735 = vmatprep.subr.bf16.mxu0 0
  %3736 = vmatpush1.bf16.msra.mxu0 0
  %3737 = vmatprep.subr.bf16.mxu0 0
  %3738 = vmatpush1.bf16.msra.mxu0 0
  %3739 = vmatprep.mubr.bf16.mxu0 0
  %3740 = vmatmul.mubr.bf16.gmra.mrb[0].mxu0 %v3705
  %v3741 = vpop.f32.mrb[0].mxu0
  %v3742 = vadd.f32 0.0, %v3741
  %v3743 = vpop.f32.mrb[0].mxu0
  %v3744 = vpop.f32.mrb[0].mxu0
  %v3745 = vadd.f32 0.0, %v3744
  %v3746 = vpop.f32.mrb[0].mxu0
  %3747 = vdwg.mxu0
  %3748 = vrot.lane.b32.xlu0 %v376, 64
  %v3749 = vpop.permute.xlu0 %3748
  %v3752 = vsel %vm2058, %v2658, 0
  %3754 = vmatprep.subr.bf16.mxu0 0
  %3755 = vmatpush1.bf16.msra.mxu0 %v3749
  %3756 = vmatprep.subr.bf16.mxu0 0
  %3757 = vmatpush1.bf16.msra.mxu0 0
  %3758 = vmatprep.subr.bf16.mxu0 0
  %3759 = vmatpush1.bf16.msra.mxu0 0
  %3760 = vmatprep.subr.bf16.mxu0 0
  %3761 = vmatpush1.bf16.msra.mxu0 0
  %3762 = vmatprep.subr.bf16.mxu0 0
  %3763 = vmatpush1.bf16.msra.mxu0 0
  %3764 = vmatprep.subr.bf16.mxu0 0
  %3765 = vmatpush1.bf16.msra.mxu0 0
  %3766 = vmatprep.subr.bf16.mxu0 0
  %3767 = vmatpush1.bf16.msra.mxu0 0
  %3768 = vmatprep.subr.bf16.mxu0 0
  %3769 = vmatpush1.bf16.msra.mxu0 0
  %3770 = vmatprep.subr.bf16.mxu0 0
  %3771 = vmatpush1.bf16.msra.mxu0 0
  %3772 = vmatprep.subr.bf16.mxu0 0
  %3773 = vmatpush1.bf16.msra.mxu0 0
  %3774 = vmatprep.subr.bf16.mxu0 0
  %3775 = vmatpush1.bf16.msra.mxu0 0
  %3776 = vmatprep.subr.bf16.mxu0 0
  %3777 = vmatpush1.bf16.msra.mxu0 0
  %3778 = vmatprep.subr.bf16.mxu0 0
  %3779 = vmatpush1.bf16.msra.mxu0 0
  %3780 = vmatprep.subr.bf16.mxu0 0
  %3781 = vmatpush1.bf16.msra.mxu0 0
  %3782 = vmatprep.subr.bf16.mxu0 0
  %3783 = vmatpush1.bf16.msra.mxu0 0
  %3784 = vmatprep.subr.bf16.mxu0 0
  %3785 = vmatpush1.bf16.msra.mxu0 0
  %3786 = vmatprep.mubr.bf16.mxu0 0
  %3787 = vmatmul.mubr.bf16.gmra.mrb[0].mxu0 %v3752
  %v3788 = vpop.f32.mrb[0].mxu0
  %v3789 = vadd.f32 0.0, %v3788
  %v3790 = vpop.f32.mrb[0].mxu0
  %v3791 = vpop.f32.mrb[0].mxu0
  %v3792 = vadd.f32 0.0, %v3791
  %v3793 = vpop.f32.mrb[0].mxu0
  %3794 = vdwg.mxu0
  %3795 = vrot.lane.b32.xlu0 %v377, 64
  %v3796 = vpop.permute.xlu0 %3795
  %v3799 = vsel %vm2058, %v2659, 0
  %3801 = vmatprep.subr.bf16.mxu0 0
  %3802 = vmatpush1.bf16.msra.mxu0 %v3796
  %3803 = vmatprep.subr.bf16.mxu0 0
  %3804 = vmatpush1.bf16.msra.mxu0 0
  %3805 = vmatprep.subr.bf16.mxu0 0
  %3806 = vmatpush1.bf16.msra.mxu0 0
  %3807 = vmatprep.subr.bf16.mxu0 0
  %3808 = vmatpush1.bf16.msra.mxu0 0
  %3809 = vmatprep.subr.bf16.mxu0 0
  %3810 = vmatpush1.bf16.msra.mxu0 0
  %3811 = vmatprep.subr.bf16.mxu0 0
  %3812 = vmatpush1.bf16.msra.mxu0 0
  %3813 = vmatprep.subr.bf16.mxu0 0
  %3814 = vmatpush1.bf16.msra.mxu0 0
  %3815 = vmatprep.subr.bf16.mxu0 0
  %3816 = vmatpush1.bf16.msra.mxu0 0
  %3817 = vmatprep.subr.bf16.mxu0 0
  %3818 = vmatpush1.bf16.msra.mxu0 0
  %3819 = vmatprep.subr.bf16.mxu0 0
  %3820 = vmatpush1.bf16.msra.mxu0 0
  %3821 = vmatprep.subr.bf16.mxu0 0
  %3822 = vmatpush1.bf16.msra.mxu0 0
  %3823 = vmatprep.subr.bf16.mxu0 0
  %3824 = vmatpush1.bf16.msra.mxu0 0
  %3825 = vmatprep.subr.bf16.mxu0 0
  %3826 = vmatpush1.bf16.msra.mxu0 0
  %3827 = vmatprep.subr.bf16.mxu0 0
  %3828 = vmatpush1.bf16.msra.mxu0 0
  %3829 = vmatprep.subr.bf16.mxu0 0
  %3830 = vmatpush1.bf16.msra.mxu0 0
  %3831 = vmatprep.subr.bf16.mxu0 0
  %3832 = vmatpush1.bf16.msra.mxu0 0
  %3833 = vmatprep.mubr.bf16.mxu0 0
  %3834 = vmatmul.mubr.bf16.gmra.mrb[0].mxu0 %v3799
  %v3835 = vpop.f32.mrb[0].mxu0
  %v3836 = vadd.f32 0.0, %v3835
  %v3837 = vpop.f32.mrb[0].mxu0
  %v3838 = vpop.f32.mrb[0].mxu0
  %v3839 = vadd.f32 0.0, %v3838
  %v3840 = vpop.f32.mrb[0].mxu0
  %3841 = vdwg.mxu0
  %3842 = vrot.lane.b32.xlu0 %v378, 64
  %v3843 = vpop.permute.xlu0 %3842
  %v3846 = vsel %vm2058, %v2660, 0
  %3848 = vmatprep.subr.bf16.mxu0 0
  %3849 = vmatpush1.bf16.msra.mxu0 %v3843
  %3850 = vmatprep.subr.bf16.mxu0 0
  %3851 = vmatpush1.bf16.msra.mxu0 0
  %3852 = vmatprep.subr.bf16.mxu0 0
  %3853 = vmatpush1.bf16.msra.mxu0 0
  %3854 = vmatprep.subr.bf16.mxu0 0
  %3855 = vmatpush1.bf16.msra.mxu0 0
  %3856 = vmatprep.subr.bf16.mxu0 0
  %3857 = vmatpush1.bf16.msra.mxu0 0
  %3858 = vmatprep.subr.bf16.mxu0 0
  %3859 = vmatpush1.bf16.msra.mxu0 0
  %3860 = vmatprep.subr.bf16.mxu0 0
  %3861 = vmatpush1.bf16.msra.mxu0 0
  %3862 = vmatprep.subr.bf16.mxu0 0
  %3863 = vmatpush1.bf16.msra.mxu0 0
  %3864 = vmatprep.subr.bf16.mxu0 0
  %3865 = vmatpush1.bf16.msra.mxu0 0
  %3866 = vmatprep.subr.bf16.mxu0 0
  %3867 = vmatpush1.bf16.msra.mxu0 0
  %3868 = vmatprep.subr.bf16.mxu0 0
  %3869 = vmatpush1.bf16.msra.mxu0 0
  %3870 = vmatprep.subr.bf16.mxu0 0
  %3871 = vmatpush1.bf16.msra.mxu0 0
  %3872 = vmatprep.subr.bf16.mxu0 0
  %3873 = vmatpush1.bf16.msra.mxu0 0
  %3874 = vmatprep.subr.bf16.mxu0 0
  %3875 = vmatpush1.bf16.msra.mxu0 0
  %3876 = vmatprep.subr.bf16.mxu0 0
  %3877 = vmatpush1.bf16.msra.mxu0 0
  %3878 = vmatprep.subr.bf16.mxu0 0
  %3879 = vmatpush1.bf16.msra.mxu0 0
  %3880 = vmatprep.mubr.bf16.mxu0 0
  %3881 = vmatmul.mubr.bf16.gmra.mrb[0].mxu0 %v3846
  %v3882 = vpop.f32.mrb[0].mxu0
  %v3883 = vadd.f32 0.0, %v3882
  %v3884 = vpop.f32.mrb[0].mxu0
  %v3885 = vpop.f32.mrb[0].mxu0
  %v3886 = vadd.f32 0.0, %v3885
  %v3887 = vpop.f32.mrb[0].mxu0
  %3888 = vdwg.mxu0
  %3889 = vrot.lane.b32.xlu0 %v379, 64
  %v3890 = vpop.permute.xlu0 %3889
  %v3893 = vsel %vm2058, %v2661, 0
  %3895 = vmatprep.subr.bf16.mxu0 0
  %3896 = vmatpush1.bf16.msra.mxu0 %v3890
  %3897 = vmatprep.subr.bf16.mxu0 0
  %3898 = vmatpush1.bf16.msra.mxu0 0
  %3899 = vmatprep.subr.bf16.mxu0 0
  %3900 = vmatpush1.bf16.msra.mxu0 0
  %3901 = vmatprep.subr.bf16.mxu0 0
  %3902 = vmatpush1.bf16.msra.mxu0 0
  %3903 = vmatprep.subr.bf16.mxu0 0
  %3904 = vmatpush1.bf16.msra.mxu0 0
  %3905 = vmatprep.subr.bf16.mxu0 0
  %3906 = vmatpush1.bf16.msra.mxu0 0
  %3907 = vmatprep.subr.bf16.mxu0 0
  %3908 = vmatpush1.bf16.msra.mxu0 0
  %3909 = vmatprep.subr.bf16.mxu0 0
  %3910 = vmatpush1.bf16.msra.mxu0 0
  %3911 = vmatprep.subr.bf16.mxu0 0
  %3912 = vmatpush1.bf16.msra.mxu0 0
  %3913 = vmatprep.subr.bf16.mxu0 0
  %3914 = vmatpush1.bf16.msra.mxu0 0
  %3915 = vmatprep.subr.bf16.mxu0 0
  %3916 = vmatpush1.bf16.msra.mxu0 0
  %3917 = vmatprep.subr.bf16.mxu0 0
  %3918 = vmatpush1.bf16.msra.mxu0 0
  %3919 = vmatprep.subr.bf16.mxu0 0
  %3920 = vmatpush1.bf16.msra.mxu0 0
  %3921 = vmatprep.subr.bf16.mxu0 0
  %3922 = vmatpush1.bf16.msra.mxu0 0
  %3923 = vmatprep.subr.bf16.mxu0 0
  %3924 = vmatpush1.bf16.msra.mxu0 0
  %3925 = vmatprep.subr.bf16.mxu0 0
  %3926 = vmatpush1.bf16.msra.mxu0 0
  %3927 = vmatprep.mubr.bf16.mxu0 0
  %3928 = vmatmul.mubr.bf16.gmra.mrb[0].mxu0 %v3893
  %v3929 = vpop.f32.mrb[0].mxu0
  %v3930 = vadd.f32 0.0, %v3929
  %v3931 = vpop.f32.mrb[0].mxu0
  %v3932 = vpop.f32.mrb[0].mxu0
  %v3933 = vadd.f32 0.0, %v3932
  %v3934 = vpop.f32.mrb[0].mxu0
  %3935 = vdwg.mxu0
  %3936 = vrot.lane.b32.xlu0 %v380, 64
  %v3937 = vpop.permute.xlu0 %3936
  %v3940 = vsel %vm2058, %v2662, 0
  %3942 = vmatprep.subr.bf16.mxu0 0
  %3943 = vmatpush1.bf16.msra.mxu0 %v3937
  %3944 = vmatprep.subr.bf16.mxu0 0
  %3945 = vmatpush1.bf16.msra.mxu0 0
  %3946 = vmatprep.subr.bf16.mxu0 0
  %3947 = vmatpush1.bf16.msra.mxu0 0
  %3948 = vmatprep.subr.bf16.mxu0 0
  %3949 = vmatpush1.bf16.msra.mxu0 0
  %3950 = vmatprep.subr.bf16.mxu0 0
  %3951 = vmatpush1.bf16.msra.mxu0 0
  %3952 = vmatprep.subr.bf16.mxu0 0
  %3953 = vmatpush1.bf16.msra.mxu0 0
  %3954 = vmatprep.subr.bf16.mxu0 0
  %3955 = vmatpush1.bf16.msra.mxu0 0
  %3956 = vmatprep.subr.bf16.mxu0 0
  %3957 = vmatpush1.bf16.msra.mxu0 0
  %3958 = vmatprep.subr.bf16.mxu0 0
  %3959 = vmatpush1.bf16.msra.mxu0 0
  %3960 = vmatprep.subr.bf16.mxu0 0
  %3961 = vmatpush1.bf16.msra.mxu0 0
  %3962 = vmatprep.subr.bf16.mxu0 0
  %3963 = vmatpush1.bf16.msra.mxu0 0
  %3964 = vmatprep.subr.bf16.mxu0 0
  %3965 = vmatpush1.bf16.msra.mxu0 0
  %3966 = vmatprep.subr.bf16.mxu0 0
  %3967 = vmatpush1.bf16.msra.mxu0 0
  %3968 = vmatprep.subr.bf16.mxu0 0
  %3969 = vmatpush1.bf16.msra.mxu0 0
  %3970 = vmatprep.subr.bf16.mxu0 0
  %3971 = vmatpush1.bf16.msra.mxu0 0
  %3972 = vmatprep.subr.bf16.mxu0 0
  %3973 = vmatpush1.bf16.msra.mxu0 0
  %3974 = vmatprep.mubr.bf16.mxu0 0
  %3975 = vmatmul.mubr.bf16.gmra.mrb[0].mxu0 %v3940
  %v3976 = vpop.f32.mrb[0].mxu0
  %v3977 = vadd.f32 0.0, %v3976
  %v3978 = vpop.f32.mrb[0].mxu0
  %v3979 = vpop.f32.mrb[0].mxu0
  %v3980 = vadd.f32 0.0, %v3979
  %v3981 = vpop.f32.mrb[0].mxu0
  %3982 = vdwg.mxu0
  %3983 = vrot.lane.b32.xlu0 %v381, 64
  %v3984 = vpop.permute.xlu0 %3983
  %v3987 = vsel %vm2058, %v2663, 0
  %3989 = vmatprep.subr.bf16.mxu0 0
  %3990 = vmatpush1.bf16.msra.mxu0 %v3984
  %3991 = vmatprep.subr.bf16.mxu0 0
  %3992 = vmatpush1.bf16.msra.mxu0 0
  %3993 = vmatprep.subr.bf16.mxu0 0
  %3994 = vmatpush1.bf16.msra.mxu0 0
  %3995 = vmatprep.subr.bf16.mxu0 0
  %3996 = vmatpush1.bf16.msra.mxu0 0
  %3997 = vmatprep.subr.bf16.mxu0 0
  %3998 = vmatpush1.bf16.msra.mxu0 0
  %3999 = vmatprep.subr.bf16.mxu0 0
  %4000 = vmatpush1.bf16.msra.mxu0 0
  %4001 = vmatprep.subr.bf16.mxu0 0
  %4002 = vmatpush1.bf16.msra.mxu0 0
  %4003 = vmatprep.subr.bf16.mxu0 0
  %4004 = vmatpush1.bf16.msra.mxu0 0
  %4005 = vmatprep.subr.bf16.mxu0 0
  %4006 = vmatpush1.bf16.msra.mxu0 0
  %4007 = vmatprep.subr.bf16.mxu0 0
  %4008 = vmatpush1.bf16.msra.mxu0 0
  %4009 = vmatprep.subr.bf16.mxu0 0
  %4010 = vmatpush1.bf16.msra.mxu0 0
  %4011 = vmatprep.subr.bf16.mxu0 0
  %4012 = vmatpush1.bf16.msra.mxu0 0
  %4013 = vmatprep.subr.bf16.mxu0 0
  %4014 = vmatpush1.bf16.msra.mxu0 0
  %4015 = vmatprep.subr.bf16.mxu0 0
  %4016 = vmatpush1.bf16.msra.mxu0 0
  %4017 = vmatprep.subr.bf16.mxu0 0
  %4018 = vmatpush1.bf16.msra.mxu0 0
  %4019 = vmatprep.subr.bf16.mxu0 0
  %4020 = vmatpush1.bf16.msra.mxu0 0
  %4021 = vmatprep.mubr.bf16.mxu0 0
  %4022 = vmatmul.mubr.bf16.gmra.mrb[0].mxu0 %v3987
  %v4023 = vpop.f32.mrb[0].mxu0
  %v4024 = vadd.f32 0.0, %v4023
  %v4025 = vpop.f32.mrb[0].mxu0
  %v4026 = vpop.f32.mrb[0].mxu0
  %v4027 = vadd.f32 0.0, %v4026
  %v4028 = vpop.f32.mrb[0].mxu0
  %4029 = vdwg.mxu0
  %4030 = vrot.lane.b32.xlu0 %v382, 64
  %v4031 = vpop.permute.xlu0 %4030
  %v4034 = vsel %vm2058, %v2664, 0
  %4036 = vmatprep.subr.bf16.mxu0 0
  %4037 = vmatpush1.bf16.msra.mxu0 %v4031
  %4038 = vmatprep.subr.bf16.mxu0 0
  %4039 = vmatpush1.bf16.msra.mxu0 0
  %4040 = vmatprep.subr.bf16.mxu0 0
  %4041 = vmatpush1.bf16.msra.mxu0 0
  %4042 = vmatprep.subr.bf16.mxu0 0
  %4043 = vmatpush1.bf16.msra.mxu0 0
  %4044 = vmatprep.subr.bf16.mxu0 0
  %4045 = vmatpush1.bf16.msra.mxu0 0
  %4046 = vmatprep.subr.bf16.mxu0 0
  %4047 = vmatpush1.bf16.msra.mxu0 0
  %4048 = vmatprep.subr.bf16.mxu0 0
  %4049 = vmatpush1.bf16.msra.mxu0 0
  %4050 = vmatprep.subr.bf16.mxu0 0
  %4051 = vmatpush1.bf16.msra.mxu0 0
  %4052 = vmatprep.subr.bf16.mxu0 0
  %4053 = vmatpush1.bf16.msra.mxu0 0
  %4054 = vmatprep.subr.bf16.mxu0 0
  %4055 = vmatpush1.bf16.msra.mxu0 0
  %4056 = vmatprep.subr.bf16.mxu0 0
  %4057 = vmatpush1.bf16.msra.mxu0 0
  %4058 = vmatprep.subr.bf16.mxu0 0
  %4059 = vmatpush1.bf16.msra.mxu0 0
  %4060 = vmatprep.subr.bf16.mxu0 0
  %4061 = vmatpush1.bf16.msra.mxu0 0
  %4062 = vmatprep.subr.bf16.mxu0 0
  %4063 = vmatpush1.bf16.msra.mxu0 0
  %4064 = vmatprep.subr.bf16.mxu0 0
  %4065 = vmatpush1.bf16.msra.mxu0 0
  %4066 = vmatprep.subr.bf16.mxu0 0
  %4067 = vmatpush1.bf16.msra.mxu0 0
  %4068 = vmatprep.mubr.bf16.mxu0 0
  %4069 = vmatmul.mubr.bf16.gmra.mrb[0].mxu0 %v4034
  %v4070 = vpop.f32.mrb[0].mxu0
  %v4071 = vadd.f32 0.0, %v4070
  %v4072 = vpop.f32.mrb[0].mxu0
  %v4073 = vpop.f32.mrb[0].mxu0
  %v4074 = vadd.f32 0.0, %v4073
  %v4075 = vpop.f32.mrb[0].mxu0
  %4076 = vdwg.mxu0
  %4077 = vrot.lane.b32.xlu0 %v383, 64
  %v4078 = vpop.permute.xlu0 %4077
  %v4081 = vsel %vm2058, %v2665, 0
  %4083 = vmatprep.subr.bf16.mxu0 0
  %4084 = vmatpush1.bf16.msra.mxu0 %v4078
  %4085 = vmatprep.subr.bf16.mxu0 0
  %4086 = vmatpush1.bf16.msra.mxu0 0
  %4087 = vmatprep.subr.bf16.mxu0 0
  %4088 = vmatpush1.bf16.msra.mxu0 0
  %4089 = vmatprep.subr.bf16.mxu0 0
  %4090 = vmatpush1.bf16.msra.mxu0 0
  %4091 = vmatprep.subr.bf16.mxu0 0
  %4092 = vmatpush1.bf16.msra.mxu0 0
  %4093 = vmatprep.subr.bf16.mxu0 0
  %4094 = vmatpush1.bf16.msra.mxu0 0
  %4095 = vmatprep.subr.bf16.mxu0 0
  %4096 = vmatpush1.bf16.msra.mxu0 0
  %4097 = vmatprep.subr.bf16.mxu0 0
  %4098 = vmatpush1.bf16.msra.mxu0 0
  %4099 = vmatprep.subr.bf16.mxu0 0
  %4100 = vmatpush1.bf16.msra.mxu0 0
  %4101 = vmatprep.subr.bf16.mxu0 0
  %4102 = vmatpush1.bf16.msra.mxu0 0
  %4103 = vmatprep.subr.bf16.mxu0 0
  %4104 = vmatpush1.bf16.msra.mxu0 0
  %4105 = vmatprep.subr.bf16.mxu0 0
  %4106 = vmatpush1.bf16.msra.mxu0 0
  %4107 = vmatprep.subr.bf16.mxu0 0
  %4108 = vmatpush1.bf16.msra.mxu0 0
  %4109 = vmatprep.subr.bf16.mxu0 0
  %4110 = vmatpush1.bf16.msra.mxu0 0
  %4111 = vmatprep.subr.bf16.mxu0 0
  %4112 = vmatpush1.bf16.msra.mxu0 0
  %4113 = vmatprep.subr.bf16.mxu0 0
  %4114 = vmatpush1.bf16.msra.mxu0 0
  %4115 = vmatprep.mubr.bf16.mxu0 0
  %4116 = vmatmul.mubr.bf16.gmra.mrb[0].mxu0 %v4081
  %v4117 = vpop.f32.mrb[0].mxu0
  %v4118 = vadd.f32 0.0, %v4117
  %v4119 = vpop.f32.mrb[0].mxu0
  %v4120 = vpop.f32.mrb[0].mxu0
  %v4121 = vadd.f32 0.0, %v4120
  %v4122 = vpop.f32.mrb[0].mxu0
  %4123 = vdwg.mxu0
  %4124 = vrot.lane.b32.xlu0 %v384, 64
  %v4125 = vpop.permute.xlu0 %4124
  %v4128 = vsel %vm2058, %v2666, 0
  %4130 = vmatprep.subr.bf16.mxu0 0
  %4131 = vmatpush1.bf16.msra.mxu0 %v4125
  %4132 = vmatprep.subr.bf16.mxu0 0
  %4133 = vmatpush1.bf16.msra.mxu0 0
  %4134 = vmatprep.subr.bf16.mxu0 0
  %4135 = vmatpush1.bf16.msra.mxu0 0
  %4136 = vmatprep.subr.bf16.mxu0 0
  %4137 = vmatpush1.bf16.msra.mxu0 0
  %4138 = vmatprep.subr.bf16.mxu0 0
  %4139 = vmatpush1.bf16.msra.mxu0 0
  %4140 = vmatprep.subr.bf16.mxu0 0
  %4141 = vmatpush1.bf16.msra.mxu0 0
  %4142 = vmatprep.subr.bf16.mxu0 0
  %4143 = vmatpush1.bf16.msra.mxu0 0
  %4144 = vmatprep.subr.bf16.mxu0 0
  %4145 = vmatpush1.bf16.msra.mxu0 0
  %4146 = vmatprep.subr.bf16.mxu0 0
  %4147 = vmatpush1.bf16.msra.mxu0 0
  %4148 = vmatprep.subr.bf16.mxu0 0
  %4149 = vmatpush1.bf16.msra.mxu0 0
  %4150 = vmatprep.subr.bf16.mxu0 0
  %4151 = vmatpush1.bf16.msra.mxu0 0
  %4152 = vmatprep.subr.bf16.mxu0 0
  %4153 = vmatpush1.bf16.msra.mxu0 0
  %4154 = vmatprep.subr.bf16.mxu0 0
  %4155 = vmatpush1.bf16.msra.mxu0 0
  %4156 = vmatprep.subr.bf16.mxu0 0
  %4157 = vmatpush1.bf16.msra.mxu0 0
  %4158 = vmatprep.subr.bf16.mxu0 0
  %4159 = vmatpush1.bf16.msra.mxu0 0
  %4160 = vmatprep.subr.bf16.mxu0 0
  %4161 = vmatpush1.bf16.msra.mxu0 0
  %4162 = vmatprep.mubr.bf16.mxu0 0
  %4163 = vmatmul.mubr.bf16.gmra.mrb[0].mxu0 %v4128
  %v4164 = vpop.f32.mrb[0].mxu0
  %v4165 = vadd.f32 0.0, %v4164
  %v4166 = vpop.f32.mrb[0].mxu0
  %v4167 = vpop.f32.mrb[0].mxu0
  %v4168 = vadd.f32 0.0, %v4167
  %v4169 = vpop.f32.mrb[0].mxu0
  %4170 = vdwg.mxu0
  %v4171 = vrcp.pop %v2445
  %v4172 = vrcp.pop %v2448
  %v4173 = vrcp.pop %v2451
  %v4174 = vrcp.pop %v2454
  %v4175 = vrcp.pop %v2457
  %v4176 = vrcp.pop %v2460
  %v4177 = vrcp.pop %v2463
  %v4178 = vrcp.pop %v2466
  %v4179 = vrcp.pop %v2469
  %v4180 = vrcp.pop %v2472
  %v4181 = vrcp.pop %v2475
  %v4182 = vrcp.pop %v2478
  %v4183 = vrcp.pop %v2481
  %v4184 = vrcp.pop %v2484
  %v4185 = vrcp.pop %v2487
  %v4186 = vrcp.pop %v2490
  %v4187 = vrcp.pop %v2493
  %v4188 = vrcp.pop %v2496
  %v4189 = vrcp.pop %v2499
  %v4190 = vrcp.pop %v2502
  %v4191 = vrcp.pop %v2505
  %v4192 = vrcp.pop %v2508
  %v4193 = vrcp.pop %v2511
  %v4194 = vrcp.pop %v2514
  %v4195 = vrcp.pop %v2517
  %v4196 = vrcp.pop %v2520
  %v4197 = vrcp.pop %v2523
  %v4198 = vrcp.pop %v2526
  %v4199 = vrcp.pop %v2529
  %v4200 = vrcp.pop %v2532
  %v4201 = vrcp.pop %v2535
  %v4202 = vrcp.pop %v2538
  %v4203 = vrcp.pop %v2541
  %v4204 = vrcp.pop %v2544
  %v4205 = vrcp.pop %v2547
  %v4206 = vrcp.pop %v2550
  %v4207 = vrcp.pop %v2553
  %v4208 = vrcp.pop %v2556
  %v4209 = vrcp.pop %v2559
  %v4210 = vrcp.pop %v2562
  %v4211 = vrcp.pop %v2565
  %v4212 = vrcp.pop %v2568
  %v4213 = vrcp.pop %v2571
  %v4214 = vrcp.pop %v2574
  %v4215 = vrcp.pop %v2577
  %v4216 = vrcp.pop %v2580
  %v4217 = vrcp.pop %v2583
  %v4218 = vrcp.pop %v2586
  %v4219 = vrcp.pop %v2589
  %v4220 = vrcp.pop %v2592
  %v4221 = vrcp.pop %v2595
  %v4222 = vrcp.pop %v2598
  %v4223 = vrcp.pop %v2601
  %v4224 = vrcp.pop %v2604
  %v4225 = vrcp.pop %v2607
  %v4226 = vrcp.pop %v2610
  %v4227 = vrcp.pop %v2613
  %v4228 = vrcp.pop %v2616
  %v4229 = vrcp.pop %v2619
  %v4230 = vrcp.pop %v2622
  %v4231 = vrcp.pop %v2625
  %v4232 = vrcp.pop %v2628
  %v4233 = vrcp.pop %v2631
  %v4234 = vrcp.pop %v2634
  %v4235 = vmul.f32 %v2708, %v4171
  %v4236 = vmul.f32 %v2711, %v4172
  %v4237 = vmul.f32 %v2755, %v4173
  %v4238 = vmul.f32 %v2758, %v4174
  %v4239 = vmul.f32 %v2802, %v4175
  %v4240 = vmul.f32 %v2805, %v4176
  %v4241 = vmul.f32 %v2849, %v4177
  %v4242 = vmul.f32 %v2852, %v4178
  %v4243 = vmul.f32 %v2896, %v4179
  %v4244 = vmul.f32 %v2899, %v4180
  %v4245 = vmul.f32 %v2943, %v4181
  %v4246 = vmul.f32 %v2946, %v4182
  %v4247 = vmul.f32 %v2990, %v4183
  %v4248 = vmul.f32 %v2993, %v4184
  %v4249 = vmul.f32 %v3037, %v4185
  %v4250 = vmul.f32 %v3040, %v4186
  %v4251 = vmul.f32 %v3084, %v4187
  %v4252 = vmul.f32 %v3087, %v4188
  %v4253 = vmul.f32 %v3131, %v4189
  %v4254 = vmul.f32 %v3134, %v4190
  %v4255 = vmul.f32 %v3178, %v4191
  %v4256 = vmul.f32 %v3181, %v4192
  %v4257 = vmul.f32 %v3225, %v4193
  %v4258 = vmul.f32 %v3228, %v4194
  %v4259 = vmul.f32 %v3272, %v4195
  %v4260 = vmul.f32 %v3275, %v4196
  %v4261 = vmul.f32 %v3319, %v4197
  %v4262 = vmul.f32 %v3322, %v4198
  %v4263 = vmul.f32 %v3366, %v4199
  %v4264 = vmul.f32 %v3369, %v4200
  %v4265 = vmul.f32 %v3413, %v4201
  %v4266 = vmul.f32 %v3416, %v4202
  %v4267 = vmul.f32 %v3460, %v4203
  %v4268 = vmul.f32 %v3463, %v4204
  %v4269 = vmul.f32 %v3507, %v4205
  %v4270 = vmul.f32 %v3510, %v4206
  %v4271 = vmul.f32 %v3554, %v4207
  %v4272 = vmul.f32 %v3557, %v4208
  %v4273 = vmul.f32 %v3601, %v4209
  %v4274 = vmul.f32 %v3604, %v4210
  %v4275 = vmul.f32 %v3648, %v4211
  %v4276 = vmul.f32 %v3651, %v4212
  %v4277 = vmul.f32 %v3695, %v4213
  %v4278 = vmul.f32 %v3698, %v4214
  %v4279 = vmul.f32 %v3742, %v4215
  %v4280 = vmul.f32 %v3745, %v4216
  %v4281 = vmul.f32 %v3789, %v4217
  %v4282 = vmul.f32 %v3792, %v4218
  %v4283 = vmul.f32 %v3836, %v4219
  %v4284 = vmul.f32 %v3839, %v4220
  %v4285 = vmul.f32 %v3883, %v4221
  %v4286 = vmul.f32 %v3886, %v4222
  %v4287 = vmul.f32 %v3930, %v4223
  %v4288 = vmul.f32 %v3933, %v4224
  %v4289 = vmul.f32 %v3977, %v4225
  %v4290 = vmul.f32 %v3980, %v4226
  %v4291 = vmul.f32 %v4024, %v4227
  %v4292 = vmul.f32 %v4027, %v4228
  %v4293 = vmul.f32 %v4071, %v4229
  %v4294 = vmul.f32 %v4074, %v4230
  %v4295 = vmul.f32 %v4118, %v4231
  %v4296 = vmul.f32 %v4121, %v4232
  %v4297 = vmul.f32 %v4165, %v4233
  %v4298 = vmul.f32 %v4168, %v4234
  %4315 = vrot.lane.b32.xlu0 %v4251, 8
  %v4316 = vpop.permute.xlu0 %4315
  %4317 = vrot.lane.b32.xlu0 %v4252, 8
  %v4318 = vpop.permute.xlu0 %4317
  %4319 = vrot.lane.b32.xlu0 %v4253, 8
  %v4320 = vpop.permute.xlu0 %4319
  %4321 = vrot.lane.b32.xlu0 %v4254, 8
  %v4322 = vpop.permute.xlu0 %4321
  %4323 = vrot.lane.b32.xlu0 %v4255, 8
  %v4324 = vpop.permute.xlu0 %4323
  %4325 = vrot.lane.b32.xlu0 %v4256, 8
  %v4326 = vpop.permute.xlu0 %4325
  %4327 = vrot.lane.b32.xlu0 %v4257, 8
  %v4328 = vpop.permute.xlu0 %4327
  %4329 = vrot.lane.b32.xlu0 %v4258, 8
  %v4330 = vpop.permute.xlu0 %4329
  %4331 = vrot.lane.b32.xlu0 %v4259, 8
  %v4332 = vpop.permute.xlu0 %4331
  %4333 = vrot.lane.b32.xlu0 %v4260, 8
  %v4334 = vpop.permute.xlu0 %4333
  %4335 = vrot.lane.b32.xlu0 %v4261, 8
  %v4336 = vpop.permute.xlu0 %4335
  %4337 = vrot.lane.b32.xlu0 %v4262, 8
  %v4338 = vpop.permute.xlu0 %4337
  %4339 = vrot.lane.b32.xlu0 %v4263, 8
  %v4340 = vpop.permute.xlu0 %4339
  %4341 = vrot.lane.b32.xlu0 %v4264, 8
  %v4342 = vpop.permute.xlu0 %4341
  %4343 = vrot.lane.b32.xlu0 %v4265, 8
  %v4344 = vpop.permute.xlu0 %4343
  %4345 = vrot.lane.b32.xlu0 %v4266, 8
  %v4346 = vpop.permute.xlu0 %4345
  %4379 = vrot.lane.b32.xlu0 %v4267, 16
  %v4380 = vpop.permute.xlu0 %4379
  %4381 = vrot.lane.b32.xlu0 %v4268, 16
  %v4382 = vpop.permute.xlu0 %4381
  %4383 = vrot.lane.b32.xlu0 %v4269, 16
  %v4384 = vpop.permute.xlu0 %4383
  %4385 = vrot.lane.b32.xlu0 %v4270, 16
  %v4386 = vpop.permute.xlu0 %4385
  %4387 = vrot.lane.b32.xlu0 %v4271, 16
  %v4388 = vpop.permute.xlu0 %4387
  %4389 = vrot.lane.b32.xlu0 %v4272, 16
  %v4390 = vpop.permute.xlu0 %4389
  %4391 = vrot.lane.b32.xlu0 %v4273, 16
  %v4392 = vpop.permute.xlu0 %4391
  %4393 = vrot.lane.b32.xlu0 %v4274, 16
  %v4394 = vpop.permute.xlu0 %4393
  %4395 = vrot.lane.b32.xlu0 %v4275, 16
  %v4396 = vpop.permute.xlu0 %4395
  %4397 = vrot.lane.b32.xlu0 %v4276, 16
  %v4398 = vpop.permute.xlu0 %4397
  %4399 = vrot.lane.b32.xlu0 %v4277, 16
  %v4400 = vpop.permute.xlu0 %4399
  %4401 = vrot.lane.b32.xlu0 %v4278, 16
  %v4402 = vpop.permute.xlu0 %4401
  %4403 = vrot.lane.b32.xlu0 %v4279, 16
  %v4404 = vpop.permute.xlu0 %4403
  %4405 = vrot.lane.b32.xlu0 %v4280, 16
  %v4406 = vpop.permute.xlu0 %4405
  %4407 = vrot.lane.b32.xlu0 %v4281, 16
  %v4408 = vpop.permute.xlu0 %4407
  %4409 = vrot.lane.b32.xlu0 %v4282, 16
  %v4410 = vpop.permute.xlu0 %4409
  %4443 = vrot.lane.b32.xlu0 %v4283, 24
  %v4444 = vpop.permute.xlu0 %4443
  %4445 = vrot.lane.b32.xlu0 %v4284, 24
  %v4446 = vpop.permute.xlu0 %4445
  %4447 = vrot.lane.b32.xlu0 %v4285, 24
  %v4448 = vpop.permute.xlu0 %4447
  %4449 = vrot.lane.b32.xlu0 %v4286, 24
  %v4450 = vpop.permute.xlu0 %4449
  %4451 = vrot.lane.b32.xlu0 %v4287, 24
  %v4452 = vpop.permute.xlu0 %4451
  %4453 = vrot.lane.b32.xlu0 %v4288, 24
  %v4454 = vpop.permute.xlu0 %4453
  %4455 = vrot.lane.b32.xlu0 %v4289, 24
  %v4456 = vpop.permute.xlu0 %4455
  %4457 = vrot.lane.b32.xlu0 %v4290, 24
  %v4458 = vpop.permute.xlu0 %4457
  %4459 = vrot.lane.b32.xlu0 %v4291, 24
  %v4460 = vpop.permute.xlu0 %4459
  %4461 = vrot.lane.b32.xlu0 %v4292, 24
  %v4462 = vpop.permute.xlu0 %4461
  %4463 = vrot.lane.b32.xlu0 %v4293, 24
  %v4464 = vpop.permute.xlu0 %4463
  %4465 = vrot.lane.b32.xlu0 %v4294, 24
  %v4466 = vpop.permute.xlu0 %4465
  %4467 = vrot.lane.b32.xlu0 %v4295, 24
  %v4468 = vpop.permute.xlu0 %4467
  %4469 = vrot.lane.b32.xlu0 %v4296, 24
  %v4470 = vpop.permute.xlu0 %4469
  %4471 = vrot.lane.b32.xlu0 %v4297, 24
  %v4472 = vpop.permute.xlu0 %4471
  %4473 = vrot.lane.b32.xlu0 %v4298, 24
  %v4474 = vpop.permute.xlu0 %4473
  %v4491 = vsel %vm388, %v4235, %v4316
  %v4492 = vsel %vm388, %v4236, %v4318
  %v4493 = vsel %vm388, %v4237, %v4320
  %v4494 = vsel %vm388, %v4238, %v4322
  %v4495 = vsel %vm388, %v4239, %v4324
  %v4496 = vsel %vm388, %v4240, %v4326
  %v4497 = vsel %vm388, %v4241, %v4328
  %v4498 = vsel %vm388, %v4242, %v4330
  %v4499 = vsel %vm388, %v4243, %v4332
  %v4500 = vsel %vm388, %v4244, %v4334
  %v4501 = vsel %vm388, %v4245, %v4336
  %v4502 = vsel %vm388, %v4246, %v4338
  %v4503 = vsel %vm388, %v4247, %v4340
  %v4504 = vsel %vm388, %v4248, %v4342
  %v4505 = vsel %vm388, %v4249, %v4344
  %v4506 = vsel %vm388, %v4250, %v4346
  %v4507 = vsel %vm2058, %v4491, %v4380
  %v4508 = vsel %vm2058, %v4492, %v4382
  %v4509 = vsel %vm2058, %v4493, %v4384
  %v4510 = vsel %vm2058, %v4494, %v4386
  %v4511 = vsel %vm2058, %v4495, %v4388
  %v4512 = vsel %vm2058, %v4496, %v4390
  %v4513 = vsel %vm2058, %v4497, %v4392
  %v4514 = vsel %vm2058, %v4498, %v4394
  %v4515 = vsel %vm2058, %v4499, %v4396
  %v4516 = vsel %vm2058, %v4500, %v4398
  %v4517 = vsel %vm2058, %v4501, %v4400
  %v4518 = vsel %vm2058, %v4502, %v4402
  %v4519 = vsel %vm2058, %v4503, %v4404
  %v4520 = vsel %vm2058, %v4504, %v4406
  %v4521 = vsel %vm2058, %v4505, %v4408
  %v4522 = vsel %vm2058, %v4506, %v4410
  %vm4523 = vcmask 195584
  %v4524 = vsel %vm4523, %v4507, %v4444
  %v4525 = vsel %vm4523, %v4508, %v4446
  %v4526 = vsel %vm4523, %v4509, %v4448
  %v4527 = vsel %vm4523, %v4510, %v4450
  %v4528 = vsel %vm4523, %v4511, %v4452
  %v4529 = vsel %vm4523, %v4512, %v4454
  %v4530 = vsel %vm4523, %v4513, %v4456
  %v4531 = vsel %vm4523, %v4514, %v4458
  %v4532 = vsel %vm4523, %v4515, %v4460
  %v4533 = vsel %vm4523, %v4516, %v4462
  %v4534 = vsel %vm4523, %v4517, %v4464
  %v4535 = vsel %vm4523, %v4518, %v4466
  %v4536 = vsel %vm4523, %v4519, %v4468
  %v4537 = vsel %vm4523, %v4520, %v4470
  %v4538 = vsel %vm4523, %v4521, %v4472
  %v4539 = vsel %vm4523, %v4522, %v4474
  %v4540 = vpack.c.bf16 %v4525, %v4524
  %v4541 = vpack.c.bf16 %v4527, %v4526
  %v4542 = vpack.c.bf16 %v4529, %v4528
  %v4543 = vpack.c.bf16 %v4531, %v4530
  %v4544 = vpack.c.bf16 %v4533, %v4532
  %v4545 = vpack.c.bf16 %v4535, %v4534
  %v4546 = vpack.c.bf16 %v4537, %v4536
  %v4547 = vpack.c.bf16 %v4539, %v4538
  %v4548 = vld [vmem:[%s3] sm:$0xf]
  %v4549 = vld [vmem:[%s3 + $0x4] sm:$0xf]
  %v4550 = vld [vmem:[%s3 + $0x8] sm:$0xf]
  %v4551 = vld [vmem:[%s3 + $0xc] sm:$0xf]
  %v4552 = vld [vmem:[%s4] sm:$0x1]
  %v4554 = vlaneseq
  %v4555 = vshrl.u32 %v4554, 7
  %v4556 = vsub.s32 0, %v4555
  %v4557 = vrot.slane %v4552, %v4556
  %v4563 = vunpack.c.l.b16 %v4548
  %v4564 = vunpack.c.l.b16 %v4549
  %v4565 = vunpack.c.l.b16 %v4550
  %v4566 = vunpack.c.l.b16 %v4551
  %v4567 = vpack.c.b16 %v4564, %v4563
  %v4568 = vpack.c.b16 %v4566, %v4565
  %v4572 = vsel %vm71, %v4540, 0
  %v4575 = vsel %vm71, %v4541, 0
  %v4578 = vsel %vm71, %v4542, 0
  %v4581 = vsel %vm71, %v4543, 0
  %v4584 = vsel %vm71, %v4544, 0
  %v4587 = vsel %vm71, %v4545, 0
  %v4590 = vsel %vm71, %v4546, 0
  %v4593 = vsel %vm71, %v4547, 0
  %4595 = vmatprep.subr.bf16.mxu0 0
  %4596 = vmatpush1.bf16.msra.mxu0 %v4567
  %4597 = vmatprep.subr.bf16.mxu0 0
  %4598 = vmatpush1.bf16.msra.mxu0 %v4568
  %4599 = vmatprep.subr.bf16.mxu0 0
  %4600 = vmatpush1.bf16.msra.mxu0 0
  %4601 = vmatprep.subr.bf16.mxu0 0
  %4602 = vmatpush1.bf16.msra.mxu0 0
  %4603 = vmatprep.subr.bf16.mxu0 0
  %4604 = vmatpush1.bf16.msra.mxu0 0
  %4605 = vmatprep.subr.bf16.mxu0 0
  %4606 = vmatpush1.bf16.msra.mxu0 0
  %4607 = vmatprep.subr.bf16.mxu0 0
  %4608 = vmatpush1.bf16.msra.mxu0 0
  %4609 = vmatprep.subr.bf16.mxu0 0
  %4610 = vmatpush1.bf16.msra.mxu0 0
  %4611 = vmatprep.subr.bf16.mxu0 0
  %4612 = vmatpush1.bf16.msra.mxu0 0
  %4613 = vmatprep.subr.bf16.mxu0 0
  %4614 = vmatpush1.bf16.msra.mxu0 0
  %4615 = vmatprep.subr.bf16.mxu0 0
  %4616 = vmatpush1.bf16.msra.mxu0 0
  %4617 = vmatprep.subr.bf16.mxu0 0
  %4618 = vmatpush1.bf16.msra.mxu0 0
  %4619 = vmatprep.subr.bf16.mxu0 0
  %4620 = vmatpush1.bf16.msra.mxu0 0
  %4621 = vmatprep.subr.bf16.mxu0 0
  %4622 = vmatpush1.bf16.msra.mxu0 0
  %4623 = vmatprep.subr.bf16.mxu0 0
  %4624 = vmatpush1.bf16.msra.mxu0 0
  %4625 = vmatprep.subr.bf16.mxu0 0
  %4626 = vmatpush1.bf16.msra.mxu0 0
  %4627 = vmatprep.mubr.bf16.mxu0 0
  %4628 = vmatmul.mubr.bf16.gmra.mrb[0].mxu0 %v4572
  %v4629 = vpop.f32.mrb[0].mxu0
  %v4630 = vadd.f32 %v4557, %v4629
  %v4631 = vpop.f32.mrb[0].mxu0
  %v4632 = vpop.f32.mrb[0].mxu0
  %v4633 = vadd.f32 %v4557, %v4632
  %v4634 = vpop.f32.mrb[0].mxu0
  %4635 = vmatprep.mubr.bf16.mxu0 0
  %4636 = vmatmul.mubr.bf16.gmra.mrb[0].mxu0 %v4575
  %v4637 = vpop.f32.mrb[0].mxu0
  %v4638 = vadd.f32 %v4557, %v4637
  %v4639 = vpop.f32.mrb[0].mxu0
  %v4640 = vpop.f32.mrb[0].mxu0
  %v4641 = vadd.f32 %v4557, %v4640
  %v4642 = vpop.f32.mrb[0].mxu0
  %4643 = vmatprep.mubr.bf16.mxu0 0
  %4644 = vmatmul.mubr.bf16.gmra.mrb[0].mxu0 %v4578
  %v4645 = vpop.f32.mrb[0].mxu0
  %v4646 = vadd.f32 %v4557, %v4645
  %v4647 = vpop.f32.mrb[0].mxu0
  %v4648 = vpop.f32.mrb[0].mxu0
  %v4649 = vadd.f32 %v4557, %v4648
  %v4650 = vpop.f32.mrb[0].mxu0
  %4651 = vmatprep.mubr.bf16.mxu0 0
  %4652 = vmatmul.mubr.bf16.gmra.mrb[0].mxu0 %v4581
  %v4653 = vpop.f32.mrb[0].mxu0
  %v4654 = vadd.f32 %v4557, %v4653
  %v4655 = vpop.f32.mrb[0].mxu0
  %v4656 = vpop.f32.mrb[0].mxu0
  %v4657 = vadd.f32 %v4557, %v4656
  %v4658 = vpop.f32.mrb[0].mxu0
  %4659 = vmatprep.mubr.bf16.mxu0 0
  %4660 = vmatmul.mubr.bf16.gmra.mrb[0].mxu0 %v4584
  %v4661 = vpop.f32.mrb[0].mxu0
  %v4662 = vadd.f32 %v4557, %v4661
  %v4663 = vpop.f32.mrb[0].mxu0
  %v4664 = vpop.f32.mrb[0].mxu0
  %v4665 = vadd.f32 %v4557, %v4664
  %v4666 = vpop.f32.mrb[0].mxu0
  %4667 = vmatprep.mubr.bf16.mxu0 0
  %4668 = vmatmul.mubr.bf16.gmra.mrb[0].mxu0 %v4587
  %v4669 = vpop.f32.mrb[0].mxu0
  %v4670 = vadd.f32 %v4557, %v4669
  %v4671 = vpop.f32.mrb[0].mxu0
  %v4672 = vpop.f32.mrb[0].mxu0
  %v4673 = vadd.f32 %v4557, %v4672
  %v4674 = vpop.f32.mrb[0].mxu0
  %4675 = vmatprep.mubr.bf16.mxu0 0
  %4676 = vmatmul.mubr.bf16.gmra.mrb[0].mxu0 %v4590
  %v4677 = vpop.f32.mrb[0].mxu0
  %v4678 = vadd.f32 %v4557, %v4677
  %v4679 = vpop.f32.mrb[0].mxu0
  %v4680 = vpop.f32.mrb[0].mxu0
  %v4681 = vadd.f32 %v4557, %v4680
  %v4682 = vpop.f32.mrb[0].mxu0
  %4683 = vmatprep.mubr.bf16.mxu0 0
  %4684 = vmatmul.mubr.bf16.gmra.mrb[0].mxu0 %v4593
  %v4685 = vpop.f32.mrb[0].mxu0
  %v4686 = vadd.f32 %v4557, %v4685
  %v4687 = vpop.f32.mrb[0].mxu0
  %v4688 = vpop.f32.mrb[0].mxu0
  %v4689 = vadd.f32 %v4557, %v4688
  %v4690 = vpop.f32.mrb[0].mxu0
  %4691 = vdwg.mxu0
  %4692 = vst.msk [vmem:[%s6] sm:$0xff] %vm71, %v4630
  %4693 = vst.msk [vmem:[%s6 + $0x8] sm:$0xff] %vm71, %v4633
  %4694 = vst.msk [vmem:[%s6 + $0x10] sm:$0xff] %vm71, %v4638
  %4695 = vst.msk [vmem:[%s6 + $0x18] sm:$0xff] %vm71, %v4641
  %4696 = vst.msk [vmem:[%s6 + $0x20] sm:$0xff] %vm71, %v4646
  %4697 = vst.msk [vmem:[%s6 + $0x28] sm:$0xff] %vm71, %v4649
  %4698 = vst.msk [vmem:[%s6 + $0x30] sm:$0xff] %vm71, %v4654
  %4699 = vst.msk [vmem:[%s6 + $0x38] sm:$0xff] %vm71, %v4657
  %4700 = vst.msk [vmem:[%s6 + $0x40] sm:$0xff] %vm71, %v4662
  %4701 = vst.msk [vmem:[%s6 + $0x48] sm:$0xff] %vm71, %v4665
  %4702 = vst.msk [vmem:[%s6 + $0x50] sm:$0xff] %vm71, %v4670
  %4703 = vst.msk [vmem:[%s6 + $0x58] sm:$0xff] %vm71, %v4673
  %4704 = vst.msk [vmem:[%s6 + $0x60] sm:$0xff] %vm71, %v4678
  %4705 = vst.msk [vmem:[%s6 + $0x68] sm:$0xff] %vm71, %v4681
  %4706 = vst.msk [vmem:[%s6 + $0x70] sm:$0xff] %vm71, %v4686
  %4707 = vst.msk [vmem:[%s6 + $0x78] sm:$0xff] %vm71, %v4689
  // Predicated region
  $region26: #{tpu_custom_call.1} parent=0 // pred_check
    _
  $region27: #{tpu_custom_call.1} parent=0 // pred_check_branch
    %4709 = sbr.rel (0) target = $region29
  $region28: #{tpu_custom_call.1} parent=0 // pred_region
    _
  $region29: #{tpu_custom_call.1} parent=0 // pred_fallthru
    _
  // Predicated region
  $region30: #{tpu_custom_call.1} parent=0 // pred_check
    _
  $region31: #{tpu_custom_call.1} parent=0 // pred_check_branch
    %4711 = sbr.rel (0) target = $region33
  $region32: #{tpu_custom_call.1} parent=0 // pred_region
    _
  $region33: #{tpu_custom_call.1} parent=0 // pred_fallthru
    _

</llo_original>
